<compile_context>
chip_gen: v5e
topology: v5e:2x2
jax: 0.10.0
libtpu: 0.0.40
codegen_flags: <defaults>
</compile_context>

<pallas_src>
import functools

import jax
import jax.numpy as jnp
from jax.experimental import pallas as pl
from jax.experimental.pallas import tpu as pltpu


def _lstm_decoder_kernel(x_ref, h0_ref, c0_ref, wih_ref, whh_ref, b_ref,
                         out_ref, pre_ref):
    """Stacked unidirectional LSTM over a constant input sequence.

    Shapes (padded: TB multiple of 8 sublanes, Hp multiple of 128 lanes):
      x_ref  : (1, Hp)       learned "input" vector (same token every step)
      h0_ref : (L, TB, Hp)   initial hidden state per layer
      c0_ref : (TB, Hp)      initial cell state (same c_n for every layer)
      wih_ref: (L, Hp, 4Hp)  input->gates weights, pre-transposed, gate-block padded
      whh_ref: (L, Hp, 4Hp)  hidden->gates weights, pre-transposed, gate-block padded
      b_ref  : (L, 1, 4Hp)   combined bias b_ih + b_hh, gate-block padded
      out_ref: (T, TB, Hp)   last layer's output sequence; reused in place as the
                             inter-layer sequence buffer
      pre_ref: (T, TB, 4Hp)  VMEM scratch holding the bulk input pre-gates
    """
    T, TB, Hp = out_ref.shape
    L = h0_ref.shape[0]
    G = 4 * Hp

    def run_layer(layer, get_pre):
        # Only the h @ W_hh recurrence stays inside the sequential time loop.
        def step(t, carry):
            h, c = carry
            gates = get_pre(t) + jnp.dot(
                h, whh_ref[layer], preferred_element_type=jnp.float32)  # (TB, 4Hp)
            # Gate blocks are Hp-aligned -> lane-aligned, full-vreg slices.
            # PyTorch gate order: i, f, g, o.
            i_g = jax.nn.sigmoid(gates[:, 0 * Hp:1 * Hp])
            f_g = jax.nn.sigmoid(gates[:, 1 * Hp:2 * Hp])
            g_g = jnp.tanh(gates[:, 2 * Hp:3 * Hp])
            o_g = jax.nn.sigmoid(gates[:, 3 * Hp:4 * Hp])
            c = f_g * c + i_g * g_g
            h = o_g * jnp.tanh(c)
            out_ref[t] = h        # full-width store; next layer's input at time t
            return h, c

        # Fully unrolled (T is static): gives the scheduler cross-step
        # visibility — only the (h, c) carry is a true dependency.
        jax.lax.fori_loop(0, T, step, (h0_ref[layer], c0_ref[...]), unroll=True)

    # ---- Layer 0: input is the same vector at every (t, b) -> its input
    # projection is ONE tiny matmul, bias folded, broadcast once (no (T,B,H)
    # sequence fill, no per-step input matmul).
    g0 = jnp.dot(x_ref[...], wih_ref[0],
                 preferred_element_type=jnp.float32) + b_ref[0]        # (1, 4Hp)
    g0_b = jnp.broadcast_to(g0, (TB, G))                               # hoisted
    run_layer(0, lambda t: g0_b)

    # ---- Layers 1..L-1: bulk input projection as one large MXU matmul per
    # layer (bias folded in); per-step work is just the recurrence + gates.
    for layer in range(1, L):
        seq = out_ref[...].reshape(T * TB, Hp)
        pre = jnp.dot(seq, wih_ref[layer],
                      preferred_element_type=jnp.float32) + b_ref[layer]
        pre_ref[...] = pre.reshape(T, TB, G)
        run_layer(layer, lambda t: pre_ref[t])


def _round_up(n, m):
    return ((n + m - 1) // m) * m


def init_params(key, hidden_size, num_layers):
    """Deterministic parameter init matching nn.LSTM / LSTMDecoder shapes."""
    H, L = hidden_size, num_layers
    ks = jax.random.split(key, 2 + 4 * L)
    scale = float(1.0 / (H ** 0.5))
    u = lambda k, shape: jax.random.uniform(k, shape, jnp.float32, -scale, scale)
    return {
        "hidden": jax.random.normal(ks[0], (L, H), jnp.float32),   # self.hidden
        "input": jax.random.normal(ks[1], (H,), jnp.float32),      # self.input
        "w_ih": jnp.stack([u(ks[2 + 4 * l], (4 * H, H)) for l in range(L)]),
        "w_hh": jnp.stack([u(ks[3 + 4 * l], (4 * H, H)) for l in range(L)]),
        "b_ih": jnp.stack([u(ks[4 + 4 * l], (4 * H,)) for l in range(L)]),
        "b_hh": jnp.stack([u(ks[5 + 4 * l], (4 * H,)) for l in range(L)]),
    }


@functools.partial(jax.jit, static_argnames=("max_len",))
def lstm_decoder(params, c_n, max_len):
    H = params["input"].shape[0]
    L = params["hidden"].shape[0]
    B = c_n.shape[0]
    T = max_len
    f32 = jnp.float32

    LANE, SUB = 128, 8
    Hp = _round_up(H, LANE)     # lane-align hidden dim
    Bp = _round_up(B, SUB)      # sublane-align batch dim
    TB = SUB                    # batch tile per grid step
    G = 4 * Hp

    # ---- Glue: pad & re-layout parameters (outside the hot path).  Each gate
    # block is padded separately so gate k occupies lanes [k*Hp, (k+1)*Hp).
    def pack_w(w):  # (L, 4H, H) -> (L, Hp, 4Hp), pre-transposed for x @ W
        w4 = w.reshape(L, 4, H, H).astype(f32)
        wp = jnp.zeros((L, 4, Hp, Hp), f32).at[:, :, :H, :H].set(w4)
        return jnp.transpose(wp, (0, 3, 1, 2)).reshape(L, Hp, G)

    # TODO(synk): on v6e/v7x cast weights to bfloat16 (full MXU rate, half the
    # resident VMEM) keeping f32 accumulation; kept f32 here for the 1e-5 check.
    wih = pack_w(params["w_ih"])
    whh = pack_w(params["w_hh"])
    b4 = (params["b_ih"] + params["b_hh"]).reshape(L, 4, H).astype(f32)
    bias = jnp.zeros((L, 4, Hp), f32).at[:, :, :H].set(b4).reshape(L, 1, G)

    x_in = jnp.zeros((1, Hp), f32).at[0, :H].set(params["input"].astype(f32))
    h0 = jnp.zeros((L, Hp), f32).at[:, :H].set(params["hidden"].astype(f32))
    h0 = jnp.broadcast_to(h0[:, None, :], (L, Bp, Hp))
    c0 = jnp.zeros((Bp, Hp), f32).at[:B, :H].set(c_n.astype(f32))

    # TODO(synk): for production T/B/H, keep the sequence in HBM (pl.ANY) and
    # double-buffer time chunks with pltpu.make_async_copy instead of holding
    # the whole (T, TB, Hp) buffer + (T, TB, 4Hp) pre-gates in VMEM.
    out_tbh = pl.pallas_call(
        _lstm_decoder_kernel,
        out_shape=jax.ShapeDtypeStruct((T, Bp, Hp), f32),
        grid_spec=pltpu.PrefetchScalarGridSpec(
            num_scalar_prefetch=0,
            grid=(Bp // TB,),                       # independent batch tiles
            in_specs=[
                pl.BlockSpec((1, Hp), lambda b: (0, 0)),          # input vector
                pl.BlockSpec((L, TB, Hp), lambda b: (0, b, 0)),   # h0
                pl.BlockSpec((TB, Hp), lambda b: (b, 0)),         # c0
                pl.BlockSpec((L, Hp, G), lambda b: (0, 0, 0)),    # W_ih (shared)
                pl.BlockSpec((L, Hp, G), lambda b: (0, 0, 0)),    # W_hh (shared)
                pl.BlockSpec((L, 1, G), lambda b: (0, 0, 0)),     # bias (shared)
            ],
            out_specs=pl.BlockSpec((T, TB, Hp), lambda b: (0, b, 0)),
            scratch_shapes=[pltpu.VMEM((T, TB, G), f32)],
        ),
        compiler_params=pltpu.CompilerParams(
            dimension_semantics=("parallel",)),     # batch tiles shard across TCs
    )(x_in, h0, c0, wih, whh, bias)

    x = jnp.transpose(out_tbh, (1, 0, 2))[:B, :, :H]   # (B, T, H) batch-first
    # PyTorch: x.reshape(bs, max_len, -1, H).sum(axis=2) -- identity for the
    # unidirectional (default) case since num_directions == 1.
    x = x.reshape(B, T, -1, H).sum(axis=2)
    # TODO(synk): bidirectional=True variant (reverse-time pass + direction sum)
    # is not implemented; module default is bidirectional=False.
    return x


def lstm_decoder_ref(params, c_n, max_len):
    """Pure-JAX reference (mirrors torch.nn.LSTM semantics)."""
    H = params["input"].shape[0]
    L = params["hidden"].shape[0]
    B = c_n.shape[0]
    T = max_len
    seq = jnp.broadcast_to(params["input"][None, None, :], (T, B, H))
    for l in range(L):
        wih, whh = params["w_ih"][l], params["w_hh"][l]
        b = params["b_ih"][l] + params["b_hh"][l]
        h = jnp.broadcast_to(params["hidden"][l][None, :], (B, H))
        c = c_n

        def step(carry, x_t, wih=wih, whh=whh, b=b):
            h, c = carry
            gates = x_t @ wih.T + h @ whh.T + b
            i = jax.nn.sigmoid(gates[:, :H])
            f = jax.nn.sigmoid(gates[:, H:2 * H])
            g = jnp.tanh(gates[:, 2 * H:3 * H])
            o = jax.nn.sigmoid(gates[:, 3 * H:])
            c = f * c + i * g
            h = o * jnp.tanh(c)
            return (h, c), h

        _, seq = jax.lax.scan(step, (h, c), seq)
    return jnp.transpose(seq, (1, 0, 2))


if __name__ == "__main__":
    H, L, B, T = 32, 2, 2, 8          # hidden_size, num_layers, batch, max_len
    key = jax.random.PRNGKey(0)
    pkey, ckey = jax.random.split(key)
    params = init_params(pkey, H, L)
    c_n = jax.random.normal(ckey, (B, H), jnp.float32)

    out = lstm_decoder(params, c_n, T)
    out = jax.block_until_ready(out)

    ref = lstm_decoder_ref(params, c_n, T)
    assert out.shape == (B, T, H), out.shape
    assert bool(jnp.allclose(out, ref, atol=1e-5, rtol=1e-5)), "mismatch vs reference"
    print("KERNEL_OK")
</pallas_src>

<mosaic_0001>
module attributes {stable_mosaic.version = 11 : i64} {
  func.func @_lstm_decoder_kernel(%arg0: i32, %arg1: memref<1x128xf32, #tpu.memory_space<vmem>>, %arg2: memref<2x8x128xf32, #tpu.memory_space<vmem>>, %arg3: memref<8x128xf32, #tpu.memory_space<vmem>>, %arg4: memref<2x128x512xf32, #tpu.memory_space<vmem>>, %arg5: memref<2x128x512xf32, #tpu.memory_space<vmem>>, %arg6: memref<2x1x512xf32, #tpu.memory_space<vmem>>, %arg7: memref<8x8x128xf32, #tpu.memory_space<vmem>>, %arg8: memref<8x8x512xf32, #tpu.memory_space<vmem>>) attributes {dimension_semantics = [#tpu.dimension_semantics<parallel>], iteration_bounds = array<i64: 1>, scalar_prefetch = 0 : i64, scratch_operands = 1 : i64, tpu.core_type = #tpu.core_type<tc>, window_params = [{pipeline_mode = #tpu.pipeline_mode<synchronous>, transform_indices = @transform_0, window_bounds = array<i64: 1, 128>}, {transform_indices = @transform_1, window_bounds = array<i64: 2, 8, 128>}, {transform_indices = @transform_2, window_bounds = array<i64: 8, 128>}, {pipeline_mode = #tpu.pipeline_mode<synchronous>, transform_indices = @transform_3, window_bounds = array<i64: 2, 128, 512>}, {pipeline_mode = #tpu.pipeline_mode<synchronous>, transform_indices = @transform_4, window_bounds = array<i64: 2, 128, 512>}, {pipeline_mode = #tpu.pipeline_mode<synchronous>, transform_indices = @transform_5, window_bounds = array<i64: 2, 1, 512>}, {transform_indices = @transform_6, window_bounds = array<i64: 8, 8, 128>}]} {
    %c0 = arith.constant 0 : index
    %c0_0 = arith.constant 0 : index
    %0 = vector.load %arg1[%c0, %c0_0] : memref<1x128xf32, #tpu.memory_space<vmem>>, vector<1x128xf32>
    %c0_1 = arith.constant 0 : index
    %c0_2 = arith.constant 0 : index
    %c0_3 = arith.constant 0 : index
    %1 = vector.load %arg4[%c0_1, %c0_2, %c0_3] : memref<2x128x512xf32, #tpu.memory_space<vmem>>, vector<1x128x512xf32>
    %2 = vector.shape_cast %1 : vector<1x128x512xf32> to vector<128x512xf32>
    %cst = arith.constant dense<0.000000e+00> : vector<1x512xf32>
    %3 = tpu.matmul %0, %2, %cst {dimension_numbers = #tpu.dot_dimension_numbers<[1], [0], [0], [1], [0, 0, 1, 1], [], []>} : vector<1x128xf32>, vector<128x512xf32>, vector<1x512xf32> -> vector<1x512xf32>
    %c0_4 = arith.constant 0 : index
    %c0_5 = arith.constant 0 : index
    %c0_6 = arith.constant 0 : index
    %4 = vector.load %arg6[%c0_4, %c0_5, %c0_6] : memref<2x1x512xf32, #tpu.memory_space<vmem>>, vector<1x1x512xf32>
    %5 = vector.shape_cast %4 : vector<1x1x512xf32> to vector<1x512xf32>
    %6 = arith.addf %3, %5 : vector<1x512xf32>
    %7 = vector.shape_cast %6 : vector<1x512xf32> to vector<1x512xf32>
    %8 = vector.broadcast %7 : vector<1x512xf32> to vector<8x512xf32>
    %c0_7 = arith.constant 0 : index
    %c0_8 = arith.constant 0 : index
    %c0_9 = arith.constant 0 : index
    %9 = vector.load %arg2[%c0_7, %c0_8, %c0_9] : memref<2x8x128xf32, #tpu.memory_space<vmem>>, vector<1x8x128xf32>
    %10 = vector.shape_cast %9 : vector<1x8x128xf32> to vector<8x128xf32>
    %c0_10 = arith.constant 0 : index
    %c0_11 = arith.constant 0 : index
    %11 = vector.load %arg3[%c0_10, %c0_11] : memref<8x128xf32, #tpu.memory_space<vmem>>, vector<8x128xf32>
    %c0_i32 = arith.constant 0 : i32
    %c0_12 = arith.constant 0 : index
    %c0_13 = arith.constant 0 : index
    %c0_14 = arith.constant 0 : index
    %12 = vector.load %arg5[%c0_12, %c0_13, %c0_14] : memref<2x128x512xf32, #tpu.memory_space<vmem>>, vector<1x128x512xf32>
    %13 = vector.shape_cast %12 : vector<1x128x512xf32> to vector<128x512xf32>
    %cst_15 = arith.constant dense<0.000000e+00> : vector<8x512xf32>
    %14 = tpu.matmul %10, %13, %cst_15 {dimension_numbers = #tpu.dot_dimension_numbers<[1], [0], [0], [1], [0, 0, 1, 1], [], []>} : vector<8x128xf32>, vector<128x512xf32>, vector<8x512xf32> -> vector<8x512xf32>
    %15 = arith.addf %8, %14 : vector<8x512xf32>
    %16 = vector.extract_strided_slice %15 {offsets = [0, 0], sizes = [8, 128], strides = [1, 1]} : vector<8x512xf32> to vector<8x128xf32>
    %17 = arith.negf %16 : vector<8x128xf32>
    %18 = math.exp %17 : vector<8x128xf32>
    %cst_16 = arith.constant 1.000000e+00 : f32
    %19 = vector.broadcast %cst_16 : f32 to vector<8x128xf32>
    %20 = arith.addf %19, %18 : vector<8x128xf32>
    %21 = arith.divf %19, %20 : vector<8x128xf32>
    %22 = vector.extract_strided_slice %15 {offsets = [0, 128], sizes = [8, 128], strides = [1, 1]} : vector<8x512xf32> to vector<8x128xf32>
    %23 = arith.negf %22 : vector<8x128xf32>
    %24 = math.exp %23 : vector<8x128xf32>
    %cst_17 = arith.constant 1.000000e+00 : f32
    %25 = vector.broadcast %cst_17 : f32 to vector<8x128xf32>
    %26 = arith.addf %25, %24 : vector<8x128xf32>
    %27 = arith.divf %25, %26 : vector<8x128xf32>
    %28 = vector.extract_strided_slice %15 {offsets = [0, 256], sizes = [8, 128], strides = [1, 1]} : vector<8x512xf32> to vector<8x128xf32>
    %29 = math.tanh %28 : vector<8x128xf32>
    %30 = vector.extract_strided_slice %15 {offsets = [0, 384], sizes = [8, 128], strides = [1, 1]} : vector<8x512xf32> to vector<8x128xf32>
    %31 = arith.negf %30 : vector<8x128xf32>
    %32 = math.exp %31 : vector<8x128xf32>
    %cst_18 = arith.constant 1.000000e+00 : f32
    %33 = vector.broadcast %cst_18 : f32 to vector<8x128xf32>
    %34 = arith.addf %33, %32 : vector<8x128xf32>
    %35 = arith.divf %33, %34 : vector<8x128xf32>
    %36 = arith.mulf %27, %11 : vector<8x128xf32>
    %37 = arith.mulf %21, %29 : vector<8x128xf32>
    %38 = arith.addf %36, %37 : vector<8x128xf32>
    %39 = math.tanh %38 : vector<8x128xf32>
    %40 = arith.mulf %35, %39 : vector<8x128xf32>
    %41 = arith.index_cast %c0_i32 : i32 to index
    %c0_19 = arith.constant 0 : index
    %c0_20 = arith.constant 0 : index
    %42 = vector.load %arg7[%41, %c0_19, %c0_20] : memref<8x8x128xf32, #tpu.memory_space<vmem>>, vector<1x8x128xf32>
    %43 = vector.shape_cast %42 : vector<1x8x128xf32> to vector<8x128xf32>
    %44 = vector.shape_cast %40 : vector<8x128xf32> to vector<1x8x128xf32>
    tpu.vector_store %arg7[%41, %c0_19, %c0_20], %44 {strides = array<i32>} : memref<8x8x128xf32, #tpu.memory_space<vmem>>, vector<1x8x128xf32>,
    %c1_i32 = arith.constant 1 : i32
    %c0_21 = arith.constant 0 : index
    %c0_22 = arith.constant 0 : index
    %c0_23 = arith.constant 0 : index
    %45 = vector.load %arg5[%c0_21, %c0_22, %c0_23] : memref<2x128x512xf32, #tpu.memory_space<vmem>>, vector<1x128x512xf32>
    %46 = vector.shape_cast %45 : vector<1x128x512xf32> to vector<128x512xf32>
    %cst_24 = arith.constant dense<0.000000e+00> : vector<8x512xf32>
    %47 = tpu.matmul %40, %46, %cst_24 {dimension_numbers = #tpu.dot_dimension_numbers<[1], [0], [0], [1], [0, 0, 1, 1], [], []>} : vector<8x128xf32>, vector<128x512xf32>, vector<8x512xf32> -> vector<8x512xf32>
    %48 = arith.addf %8, %47 : vector<8x512xf32>
    %49 = vector.extract_strided_slice %48 {offsets = [0, 0], sizes = [8, 128], strides = [1, 1]} : vector<8x512xf32> to vector<8x128xf32>
    %50 = arith.negf %49 : vector<8x128xf32>
    %51 = math.exp %50 : vector<8x128xf32>
    %cst_25 = arith.constant 1.000000e+00 : f32
    %52 = vector.broadcast %cst_25 : f32 to vector<8x128xf32>
    %53 = arith.addf %52, %51 : vector<8x128xf32>
    %54 = arith.divf %52, %53 : vector<8x128xf32>
    %55 = vector.extract_strided_slice %48 {offsets = [0, 128], sizes = [8, 128], strides = [1, 1]} : vector<8x512xf32> to vector<8x128xf32>
    %56 = arith.negf %55 : vector<8x128xf32>
    %57 = math.exp %56 : vector<8x128xf32>
    %cst_26 = arith.constant 1.000000e+00 : f32
    %58 = vector.broadcast %cst_26 : f32 to vector<8x128xf32>
    %59 = arith.addf %58, %57 : vector<8x128xf32>
    %60 = arith.divf %58, %59 : vector<8x128xf32>
    %61 = vector.extract_strided_slice %48 {offsets = [0, 256], sizes = [8, 128], strides = [1, 1]} : vector<8x512xf32> to vector<8x128xf32>
    %62 = math.tanh %61 : vector<8x128xf32>
    %63 = vector.extract_strided_slice %48 {offsets = [0, 384], sizes = [8, 128], strides = [1, 1]} : vector<8x512xf32> to vector<8x128xf32>
    %64 = arith.negf %63 : vector<8x128xf32>
    %65 = math.exp %64 : vector<8x128xf32>
    %cst_27 = arith.constant 1.000000e+00 : f32
    %66 = vector.broadcast %cst_27 : f32 to vector<8x128xf32>
    %67 = arith.addf %66, %65 : vector<8x128xf32>
    %68 = arith.divf %66, %67 : vector<8x128xf32>
    %69 = arith.mulf %60, %38 : vector<8x128xf32>
    %70 = arith.mulf %54, %62 : vector<8x128xf32>
    %71 = arith.addf %69, %70 : vector<8x128xf32>
    %72 = math.tanh %71 : vector<8x128xf32>
    %73 = arith.mulf %68, %72 : vector<8x128xf32>
    %74 = arith.index_cast %c1_i32 : i32 to index
    %c0_28 = arith.constant 0 : index
    %c0_29 = arith.constant 0 : index
    %75 = vector.load %arg7[%74, %c0_28, %c0_29] : memref<8x8x128xf32, #tpu.memory_space<vmem>>, vector<1x8x128xf32>
    %76 = vector.shape_cast %75 : vector<1x8x128xf32> to vector<8x128xf32>
    %77 = vector.shape_cast %73 : vector<8x128xf32> to vector<1x8x128xf32>
    tpu.vector_store %arg7[%74, %c0_28, %c0_29], %77 {strides = array<i32>} : memref<8x8x128xf32, #tpu.memory_space<vmem>>, vector<1x8x128xf32>,
    %c2_i32 = arith.constant 2 : i32
    %c0_30 = arith.constant 0 : index
    %c0_31 = arith.constant 0 : index
    %c0_32 = arith.constant 0 : index
    %78 = vector.load %arg5[%c0_30, %c0_31, %c0_32] : memref<2x128x512xf32, #tpu.memory_space<vmem>>, vector<1x128x512xf32>
    %79 = vector.shape_cast %78 : vector<1x128x512xf32> to vector<128x512xf32>
    %cst_33 = arith.constant dense<0.000000e+00> : vector<8x512xf32>
    %80 = tpu.matmul %73, %79, %cst_33 {dimension_numbers = #tpu.dot_dimension_numbers<[1], [0], [0], [1], [0, 0, 1, 1], [], []>} : vector<8x128xf32>, vector<128x512xf32>, vector<8x512xf32> -> vector<8x512xf32>
    %81 = arith.addf %8, %80 : vector<8x512xf32>
    %82 = vector.extract_strided_slice %81 {offsets = [0, 0], sizes = [8, 128], strides = [1, 1]} : vector<8x512xf32> to vector<8x128xf32>
    %83 = arith.negf %82 : vector<8x128xf32>
    %84 = math.exp %83 : vector<8x128xf32>
    %cst_34 = arith.constant 1.000000e+00 : f32
    %85 = vector.broadcast %cst_34 : f32 to vector<8x128xf32>
    %86 = arith.addf %85, %84 : vector<8x128xf32>
    %87 = arith.divf %85, %86 : vector<8x128xf32>
    %88 = vector.extract_strided_slice %81 {offsets = [0, 128], sizes = [8, 128], strides = [1, 1]} : vector<8x512xf32> to vector<8x128xf32>
    %89 = arith.negf %88 : vector<8x128xf32>
    %90 = math.exp %89 : vector<8x128xf32>
    %cst_35 = arith.constant 1.000000e+00 : f32
    %91 = vector.broadcast %cst_35 : f32 to vector<8x128xf32>
    %92 = arith.addf %91, %90 : vector<8x128xf32>
    %93 = arith.divf %91, %92 : vector<8x128xf32>
    %94 = vector.extract_strided_slice %81 {offsets = [0, 256], sizes = [8, 128], strides = [1, 1]} : vector<8x512xf32> to vector<8x128xf32>
    %95 = math.tanh %94 : vector<8x128xf32>
    %96 = vector.extract_strided_slice %81 {offsets = [0, 384], sizes = [8, 128], strides = [1, 1]} : vector<8x512xf32> to vector<8x128xf32>
    %97 = arith.negf %96 : vector<8x128xf32>
    %98 = math.exp %97 : vector<8x128xf32>
    %cst_36 = arith.constant 1.000000e+00 : f32
    %99 = vector.broadcast %cst_36 : f32 to vector<8x128xf32>
    %100 = arith.addf %99, %98 : vector<8x128xf32>
    %101 = arith.divf %99, %100 : vector<8x128xf32>
    %102 = arith.mulf %93, %71 : vector<8x128xf32>
    %103 = arith.mulf %87, %95 : vector<8x128xf32>
    %104 = arith.addf %102, %103 : vector<8x128xf32>
    %105 = math.tanh %104 : vector<8x128xf32>
    %106 = arith.mulf %101, %105 : vector<8x128xf32>
    %107 = arith.index_cast %c2_i32 : i32 to index
    %c0_37 = arith.constant 0 : index
    %c0_38 = arith.constant 0 : index
    %108 = vector.load %arg7[%107, %c0_37, %c0_38] : memref<8x8x128xf32, #tpu.memory_space<vmem>>, vector<1x8x128xf32>
    %109 = vector.shape_cast %108 : vector<1x8x128xf32> to vector<8x128xf32>
    %110 = vector.shape_cast %106 : vector<8x128xf32> to vector<1x8x128xf32>
    tpu.vector_store %arg7[%107, %c0_37, %c0_38], %110 {strides = array<i32>} : memref<8x8x128xf32, #tpu.memory_space<vmem>>, vector<1x8x128xf32>,
    %c3_i32 = arith.constant 3 : i32
    %c0_39 = arith.constant 0 : index
    %c0_40 = arith.constant 0 : index
    %c0_41 = arith.constant 0 : index
    %111 = vector.load %arg5[%c0_39, %c0_40, %c0_41] : memref<2x128x512xf32, #tpu.memory_space<vmem>>, vector<1x128x512xf32>
    %112 = vector.shape_cast %111 : vector<1x128x512xf32> to vector<128x512xf32>
    %cst_42 = arith.constant dense<0.000000e+00> : vector<8x512xf32>
    %113 = tpu.matmul %106, %112, %cst_42 {dimension_numbers = #tpu.dot_dimension_numbers<[1], [0], [0], [1], [0, 0, 1, 1], [], []>} : vector<8x128xf32>, vector<128x512xf32>, vector<8x512xf32> -> vector<8x512xf32>
    %114 = arith.addf %8, %113 : vector<8x512xf32>
    %115 = vector.extract_strided_slice %114 {offsets = [0, 0], sizes = [8, 128], strides = [1, 1]} : vector<8x512xf32> to vector<8x128xf32>
    %116 = arith.negf %115 : vector<8x128xf32>
    %117 = math.exp %116 : vector<8x128xf32>
    %cst_43 = arith.constant 1.000000e+00 : f32
    %118 = vector.broadcast %cst_43 : f32 to vector<8x128xf32>
    %119 = arith.addf %118, %117 : vector<8x128xf32>
    %120 = arith.divf %118, %119 : vector<8x128xf32>
    %121 = vector.extract_strided_slice %114 {offsets = [0, 128], sizes = [8, 128], strides = [1, 1]} : vector<8x512xf32> to vector<8x128xf32>
    %122 = arith.negf %121 : vector<8x128xf32>
    %123 = math.exp %122 : vector<8x128xf32>
    %cst_44 = arith.constant 1.000000e+00 : f32
    %124 = vector.broadcast %cst_44 : f32 to vector<8x128xf32>
    %125 = arith.addf %124, %123 : vector<8x128xf32>
    %126 = arith.divf %124, %125 : vector<8x128xf32>
    %127 = vector.extract_strided_slice %114 {offsets = [0, 256], sizes = [8, 128], strides = [1, 1]} : vector<8x512xf32> to vector<8x128xf32>
    %128 = math.tanh %127 : vector<8x128xf32>
    %129 = vector.extract_strided_slice %114 {offsets = [0, 384], sizes = [8, 128], strides = [1, 1]} : vector<8x512xf32> to vector<8x128xf32>
    %130 = arith.negf %129 : vector<8x128xf32>
    %131 = math.exp %130 : vector<8x128xf32>
    %cst_45 = arith.constant 1.000000e+00 : f32
    %132 = vector.broadcast %cst_45 : f32 to vector<8x128xf32>
    %133 = arith.addf %132, %131 : vector<8x128xf32>
    %134 = arith.divf %132, %133 : vector<8x128xf32>
    %135 = arith.mulf %126, %104 : vector<8x128xf32>
    %136 = arith.mulf %120, %128 : vector<8x128xf32>
    %137 = arith.addf %135, %136 : vector<8x128xf32>
    %138 = math.tanh %137 : vector<8x128xf32>
    %139 = arith.mulf %134, %138 : vector<8x128xf32>
    %140 = arith.index_cast %c3_i32 : i32 to index
    %c0_46 = arith.constant 0 : index
    %c0_47 = arith.constant 0 : index
    %141 = vector.load %arg7[%140, %c0_46, %c0_47] : memref<8x8x128xf32, #tpu.memory_space<vmem>>, vector<1x8x128xf32>
    %142 = vector.shape_cast %141 : vector<1x8x128xf32> to vector<8x128xf32>
    %143 = vector.shape_cast %139 : vector<8x128xf32> to vector<1x8x128xf32>
    tpu.vector_store %arg7[%140, %c0_46, %c0_47], %143 {strides = array<i32>} : memref<8x8x128xf32, #tpu.memory_space<vmem>>, vector<1x8x128xf32>,
    %c4_i32 = arith.constant 4 : i32
    %c0_48 = arith.constant 0 : index
    %c0_49 = arith.constant 0 : index
    %c0_50 = arith.constant 0 : index
    %144 = vector.load %arg5[%c0_48, %c0_49, %c0_50] : memref<2x128x512xf32, #tpu.memory_space<vmem>>, vector<1x128x512xf32>
    %145 = vector.shape_cast %144 : vector<1x128x512xf32> to vector<128x512xf32>
    %cst_51 = arith.constant dense<0.000000e+00> : vector<8x512xf32>
    %146 = tpu.matmul %139, %145, %cst_51 {dimension_numbers = #tpu.dot_dimension_numbers<[1], [0], [0], [1], [0, 0, 1, 1], [], []>} : vector<8x128xf32>, vector<128x512xf32>, vector<8x512xf32> -> vector<8x512xf32>
    %147 = arith.addf %8, %146 : vector<8x512xf32>
    %148 = vector.extract_strided_slice %147 {offsets = [0, 0], sizes = [8, 128], strides = [1, 1]} : vector<8x512xf32> to vector<8x128xf32>
    %149 = arith.negf %148 : vector<8x128xf32>
    %150 = math.exp %149 : vector<8x128xf32>
    %cst_52 = arith.constant 1.000000e+00 : f32
    %151 = vector.broadcast %cst_52 : f32 to vector<8x128xf32>
    %152 = arith.addf %151, %150 : vector<8x128xf32>
    %153 = arith.divf %151, %152 : vector<8x128xf32>
    %154 = vector.extract_strided_slice %147 {offsets = [0, 128], sizes = [8, 128], strides = [1, 1]} : vector<8x512xf32> to vector<8x128xf32>
    %155 = arith.negf %154 : vector<8x128xf32>
    %156 = math.exp %155 : vector<8x128xf32>
    %cst_53 = arith.constant 1.000000e+00 : f32
    %157 = vector.broadcast %cst_53 : f32 to vector<8x128xf32>
    %158 = arith.addf %157, %156 : vector<8x128xf32>
    %159 = arith.divf %157, %158 : vector<8x128xf32>
    %160 = vector.extract_strided_slice %147 {offsets = [0, 256], sizes = [8, 128], strides = [1, 1]} : vector<8x512xf32> to vector<8x128xf32>
    %161 = math.tanh %160 : vector<8x128xf32>
    %162 = vector.extract_strided_slice %147 {offsets = [0, 384], sizes = [8, 128], strides = [1, 1]} : vector<8x512xf32> to vector<8x128xf32>
    %163 = arith.negf %162 : vector<8x128xf32>
    %164 = math.exp %163 : vector<8x128xf32>
    %cst_54 = arith.constant 1.000000e+00 : f32
    %165 = vector.broadcast %cst_54 : f32 to vector<8x128xf32>
    %166 = arith.addf %165, %164 : vector<8x128xf32>
    %167 = arith.divf %165, %166 : vector<8x128xf32>
    %168 = arith.mulf %159, %137 : vector<8x128xf32>
    %169 = arith.mulf %153, %161 : vector<8x128xf32>
    %170 = arith.addf %168, %169 : vector<8x128xf32>
    %171 = math.tanh %170 : vector<8x128xf32>
    %172 = arith.mulf %167, %171 : vector<8x128xf32>
    %173 = arith.index_cast %c4_i32 : i32 to index
    %c0_55 = arith.constant 0 : index
    %c0_56 = arith.constant 0 : index
    %174 = vector.load %arg7[%173, %c0_55, %c0_56] : memref<8x8x128xf32, #tpu.memory_space<vmem>>, vector<1x8x128xf32>
    %175 = vector.shape_cast %174 : vector<1x8x128xf32> to vector<8x128xf32>
    %176 = vector.shape_cast %172 : vector<8x128xf32> to vector<1x8x128xf32>
    tpu.vector_store %arg7[%173, %c0_55, %c0_56], %176 {strides = array<i32>} : memref<8x8x128xf32, #tpu.memory_space<vmem>>, vector<1x8x128xf32>,
    %c5_i32 = arith.constant 5 : i32
    %c0_57 = arith.constant 0 : index
    %c0_58 = arith.constant 0 : index
    %c0_59 = arith.constant 0 : index
    %177 = vector.load %arg5[%c0_57, %c0_58, %c0_59] : memref<2x128x512xf32, #tpu.memory_space<vmem>>, vector<1x128x512xf32>
    %178 = vector.shape_cast %177 : vector<1x128x512xf32> to vector<128x512xf32>
    %cst_60 = arith.constant dense<0.000000e+00> : vector<8x512xf32>
    %179 = tpu.matmul %172, %178, %cst_60 {dimension_numbers = #tpu.dot_dimension_numbers<[1], [0], [0], [1], [0, 0, 1, 1], [], []>} : vector<8x128xf32>, vector<128x512xf32>, vector<8x512xf32> -> vector<8x512xf32>
    %180 = arith.addf %8, %179 : vector<8x512xf32>
    %181 = vector.extract_strided_slice %180 {offsets = [0, 0], sizes = [8, 128], strides = [1, 1]} : vector<8x512xf32> to vector<8x128xf32>
    %182 = arith.negf %181 : vector<8x128xf32>
    %183 = math.exp %182 : vector<8x128xf32>
    %cst_61 = arith.constant 1.000000e+00 : f32
    %184 = vector.broadcast %cst_61 : f32 to vector<8x128xf32>
    %185 = arith.addf %184, %183 : vector<8x128xf32>
    %186 = arith.divf %184, %185 : vector<8x128xf32>
    %187 = vector.extract_strided_slice %180 {offsets = [0, 128], sizes = [8, 128], strides = [1, 1]} : vector<8x512xf32> to vector<8x128xf32>
    %188 = arith.negf %187 : vector<8x128xf32>
    %189 = math.exp %188 : vector<8x128xf32>
    %cst_62 = arith.constant 1.000000e+00 : f32
    %190 = vector.broadcast %cst_62 : f32 to vector<8x128xf32>
    %191 = arith.addf %190, %189 : vector<8x128xf32>
    %192 = arith.divf %190, %191 : vector<8x128xf32>
    %193 = vector.extract_strided_slice %180 {offsets = [0, 256], sizes = [8, 128], strides = [1, 1]} : vector<8x512xf32> to vector<8x128xf32>
    %194 = math.tanh %193 : vector<8x128xf32>
    %195 = vector.extract_strided_slice %180 {offsets = [0, 384], sizes = [8, 128], strides = [1, 1]} : vector<8x512xf32> to vector<8x128xf32>
    %196 = arith.negf %195 : vector<8x128xf32>
    %197 = math.exp %196 : vector<8x128xf32>
    %cst_63 = arith.constant 1.000000e+00 : f32
    %198 = vector.broadcast %cst_63 : f32 to vector<8x128xf32>
    %199 = arith.addf %198, %197 : vector<8x128xf32>
    %200 = arith.divf %198, %199 : vector<8x128xf32>
    %201 = arith.mulf %192, %170 : vector<8x128xf32>
    %202 = arith.mulf %186, %194 : vector<8x128xf32>
    %203 = arith.addf %201, %202 : vector<8x128xf32>
    %204 = math.tanh %203 : vector<8x128xf32>
    %205 = arith.mulf %200, %204 : vector<8x128xf32>
    %206 = arith.index_cast %c5_i32 : i32 to index
    %c0_64 = arith.constant 0 : index
    %c0_65 = arith.constant 0 : index
    %207 = vector.load %arg7[%206, %c0_64, %c0_65] : memref<8x8x128xf32, #tpu.memory_space<vmem>>, vector<1x8x128xf32>
    %208 = vector.shape_cast %207 : vector<1x8x128xf32> to vector<8x128xf32>
    %209 = vector.shape_cast %205 : vector<8x128xf32> to vector<1x8x128xf32>
    tpu.vector_store %arg7[%206, %c0_64, %c0_65], %209 {strides = array<i32>} : memref<8x8x128xf32, #tpu.memory_space<vmem>>, vector<1x8x128xf32>,
    %c6_i32 = arith.constant 6 : i32
    %c0_66 = arith.constant 0 : index
    %c0_67 = arith.constant 0 : index
    %c0_68 = arith.constant 0 : index
    %210 = vector.load %arg5[%c0_66, %c0_67, %c0_68] : memref<2x128x512xf32, #tpu.memory_space<vmem>>, vector<1x128x512xf32>
    %211 = vector.shape_cast %210 : vector<1x128x512xf32> to vector<128x512xf32>
    %cst_69 = arith.constant dense<0.000000e+00> : vector<8x512xf32>
    %212 = tpu.matmul %205, %211, %cst_69 {dimension_numbers = #tpu.dot_dimension_numbers<[1], [0], [0], [1], [0, 0, 1, 1], [], []>} : vector<8x128xf32>, vector<128x512xf32>, vector<8x512xf32> -> vector<8x512xf32>
    %213 = arith.addf %8, %212 : vector<8x512xf32>
    %214 = vector.extract_strided_slice %213 {offsets = [0, 0], sizes = [8, 128], strides = [1, 1]} : vector<8x512xf32> to vector<8x128xf32>
    %215 = arith.negf %214 : vector<8x128xf32>
    %216 = math.exp %215 : vector<8x128xf32>
    %cst_70 = arith.constant 1.000000e+00 : f32
    %217 = vector.broadcast %cst_70 : f32 to vector<8x128xf32>
    %218 = arith.addf %217, %216 : vector<8x128xf32>
    %219 = arith.divf %217, %218 : vector<8x128xf32>
    %220 = vector.extract_strided_slice %213 {offsets = [0, 128], sizes = [8, 128], strides = [1, 1]} : vector<8x512xf32> to vector<8x128xf32>
    %221 = arith.negf %220 : vector<8x128xf32>
    %222 = math.exp %221 : vector<8x128xf32>
    %cst_71 = arith.constant 1.000000e+00 : f32
    %223 = vector.broadcast %cst_71 : f32 to vector<8x128xf32>
    %224 = arith.addf %223, %222 : vector<8x128xf32>
    %225 = arith.divf %223, %224 : vector<8x128xf32>
    %226 = vector.extract_strided_slice %213 {offsets = [0, 256], sizes = [8, 128], strides = [1, 1]} : vector<8x512xf32> to vector<8x128xf32>
    %227 = math.tanh %226 : vector<8x128xf32>
    %228 = vector.extract_strided_slice %213 {offsets = [0, 384], sizes = [8, 128], strides = [1, 1]} : vector<8x512xf32> to vector<8x128xf32>
    %229 = arith.negf %228 : vector<8x128xf32>
    %230 = math.exp %229 : vector<8x128xf32>
    %cst_72 = arith.constant 1.000000e+00 : f32
    %231 = vector.broadcast %cst_72 : f32 to vector<8x128xf32>
    %232 = arith.addf %231, %230 : vector<8x128xf32>
    %233 = arith.divf %231, %232 : vector<8x128xf32>
    %234 = arith.mulf %225, %203 : vector<8x128xf32>
    %235 = arith.mulf %219, %227 : vector<8x128xf32>
    %236 = arith.addf %234, %235 : vector<8x128xf32>
    %237 = math.tanh %236 : vector<8x128xf32>
    %238 = arith.mulf %233, %237 : vector<8x128xf32>
    %239 = arith.index_cast %c6_i32 : i32 to index
    %c0_73 = arith.constant 0 : index
    %c0_74 = arith.constant 0 : index
    %240 = vector.load %arg7[%239, %c0_73, %c0_74] : memref<8x8x128xf32, #tpu.memory_space<vmem>>, vector<1x8x128xf32>
    %241 = vector.shape_cast %240 : vector<1x8x128xf32> to vector<8x128xf32>
    %242 = vector.shape_cast %238 : vector<8x128xf32> to vector<1x8x128xf32>
    tpu.vector_store %arg7[%239, %c0_73, %c0_74], %242 {strides = array<i32>} : memref<8x8x128xf32, #tpu.memory_space<vmem>>, vector<1x8x128xf32>,
    %c7_i32 = arith.constant 7 : i32
    %c0_75 = arith.constant 0 : index
    %c0_76 = arith.constant 0 : index
    %c0_77 = arith.constant 0 : index
    %243 = vector.load %arg5[%c0_75, %c0_76, %c0_77] : memref<2x128x512xf32, #tpu.memory_space<vmem>>, vector<1x128x512xf32>
    %244 = vector.shape_cast %243 : vector<1x128x512xf32> to vector<128x512xf32>
    %cst_78 = arith.constant dense<0.000000e+00> : vector<8x512xf32>
    %245 = tpu.matmul %238, %244, %cst_78 {dimension_numbers = #tpu.dot_dimension_numbers<[1], [0], [0], [1], [0, 0, 1, 1], [], []>} : vector<8x128xf32>, vector<128x512xf32>, vector<8x512xf32> -> vector<8x512xf32>
    %246 = arith.addf %8, %245 : vector<8x512xf32>
    %247 = vector.extract_strided_slice %246 {offsets = [0, 0], sizes = [8, 128], strides = [1, 1]} : vector<8x512xf32> to vector<8x128xf32>
    %248 = arith.negf %247 : vector<8x128xf32>
    %249 = math.exp %248 : vector<8x128xf32>
    %cst_79 = arith.constant 1.000000e+00 : f32
    %250 = vector.broadcast %cst_79 : f32 to vector<8x128xf32>
    %251 = arith.addf %250, %249 : vector<8x128xf32>
    %252 = arith.divf %250, %251 : vector<8x128xf32>
    %253 = vector.extract_strided_slice %246 {offsets = [0, 128], sizes = [8, 128], strides = [1, 1]} : vector<8x512xf32> to vector<8x128xf32>
    %254 = arith.negf %253 : vector<8x128xf32>
    %255 = math.exp %254 : vector<8x128xf32>
    %cst_80 = arith.constant 1.000000e+00 : f32
    %256 = vector.broadcast %cst_80 : f32 to vector<8x128xf32>
    %257 = arith.addf %256, %255 : vector<8x128xf32>
    %258 = arith.divf %256, %257 : vector<8x128xf32>
    %259 = vector.extract_strided_slice %246 {offsets = [0, 256], sizes = [8, 128], strides = [1, 1]} : vector<8x512xf32> to vector<8x128xf32>
    %260 = math.tanh %259 : vector<8x128xf32>
    %261 = vector.extract_strided_slice %246 {offsets = [0, 384], sizes = [8, 128], strides = [1, 1]} : vector<8x512xf32> to vector<8x128xf32>
    %262 = arith.negf %261 : vector<8x128xf32>
    %263 = math.exp %262 : vector<8x128xf32>
    %cst_81 = arith.constant 1.000000e+00 : f32
    %264 = vector.broadcast %cst_81 : f32 to vector<8x128xf32>
    %265 = arith.addf %264, %263 : vector<8x128xf32>
    %266 = arith.divf %264, %265 : vector<8x128xf32>
    %267 = arith.mulf %258, %236 : vector<8x128xf32>
    %268 = arith.mulf %252, %260 : vector<8x128xf32>
    %269 = arith.addf %267, %268 : vector<8x128xf32>
    %270 = math.tanh %269 : vector<8x128xf32>
    %271 = arith.mulf %266, %270 : vector<8x128xf32>
    %272 = arith.index_cast %c7_i32 : i32 to index
    %c0_82 = arith.constant 0 : index
    %c0_83 = arith.constant 0 : index
    %273 = vector.load %arg7[%272, %c0_82, %c0_83] : memref<8x8x128xf32, #tpu.memory_space<vmem>>, vector<1x8x128xf32>
    %274 = vector.shape_cast %273 : vector<1x8x128xf32> to vector<8x128xf32>
    %275 = vector.shape_cast %271 : vector<8x128xf32> to vector<1x8x128xf32>
    tpu.vector_store %arg7[%272, %c0_82, %c0_83], %275 {strides = array<i32>} : memref<8x8x128xf32, #tpu.memory_space<vmem>>, vector<1x8x128xf32>,
    %c8_i32 = arith.constant 8 : i32
    %c0_84 = arith.constant 0 : index
    %c0_85 = arith.constant 0 : index
    %c0_86 = arith.constant 0 : index
    %276 = vector.load %arg7[%c0_84, %c0_85, %c0_86] : memref<8x8x128xf32, #tpu.memory_space<vmem>>, vector<8x8x128xf32>
    %277 = vector.shape_cast %276 : vector<8x8x128xf32> to vector<64x128xf32>
    %c1 = arith.constant 1 : index
    %c0_87 = arith.constant 0 : index
    %c0_88 = arith.constant 0 : index
    %278 = vector.load %arg4[%c1, %c0_87, %c0_88] : memref<2x128x512xf32, #tpu.memory_space<vmem>>, vector<1x128x512xf32>
    %279 = vector.shape_cast %278 : vector<1x128x512xf32> to vector<128x512xf32>
    %cst_89 = arith.constant dense<0.000000e+00> : vector<64x512xf32>
    %280 = tpu.matmul %277, %279, %cst_89 {dimension_numbers = #tpu.dot_dimension_numbers<[1], [0], [0], [1], [0, 0, 1, 1], [], []>} : vector<64x128xf32>, vector<128x512xf32>, vector<64x512xf32> -> vector<64x512xf32>
    %c1_90 = arith.constant 1 : index
    %c0_91 = arith.constant 0 : index
    %c0_92 = arith.constant 0 : index
    %281 = vector.load %arg6[%c1_90, %c0_91, %c0_92] : memref<2x1x512xf32, #tpu.memory_space<vmem>>, vector<1x1x512xf32>
    %282 = vector.shape_cast %281 : vector<1x1x512xf32> to vector<1x512xf32>
    %283 = vector.broadcast %282 : vector<1x512xf32> to vector<64x512xf32>
    %284 = arith.addf %280, %283 : vector<64x512xf32>
    %285 = vector.shape_cast %284 : vector<64x512xf32> to vector<8x8x512xf32>
    %c0_93 = arith.constant 0 : index
    %c0_94 = arith.constant 0 : index
    %c0_95 = arith.constant 0 : index
    %286 = vector.load %arg8[%c0_93, %c0_94, %c0_95] : memref<8x8x512xf32, #tpu.memory_space<vmem>>, vector<8x8x512xf32>
    tpu.vector_store %arg8[%c0_93, %c0_94, %c0_95], %285 {strides = array<i32>} : memref<8x8x512xf32, #tpu.memory_space<vmem>>, vector<8x8x512xf32>,
    %c1_96 = arith.constant 1 : index
    %c0_97 = arith.constant 0 : index
    %c0_98 = arith.constant 0 : index
    %287 = vector.load %arg2[%c1_96, %c0_97, %c0_98] : memref<2x8x128xf32, #tpu.memory_space<vmem>>, vector<1x8x128xf32>
    %288 = vector.shape_cast %287 : vector<1x8x128xf32> to vector<8x128xf32>
    %c0_99 = arith.constant 0 : index
    %c0_100 = arith.constant 0 : index
    %289 = vector.load %arg3[%c0_99, %c0_100] : memref<8x128xf32, #tpu.memory_space<vmem>>, vector<8x128xf32>
    %c0_i32_101 = arith.constant 0 : i32
    %290 = arith.index_cast %c0_i32_101 : i32 to index
    %c0_102 = arith.constant 0 : index
    %c0_103 = arith.constant 0 : index
    %291 = vector.load %arg8[%290, %c0_102, %c0_103] : memref<8x8x512xf32, #tpu.memory_space<vmem>>, vector<1x8x512xf32>
    %292 = vector.shape_cast %291 : vector<1x8x512xf32> to vector<8x512xf32>
    %c1_104 = arith.constant 1 : index
    %c0_105 = arith.constant 0 : index
    %c0_106 = arith.constant 0 : index
    %293 = vector.load %arg5[%c1_104, %c0_105, %c0_106] : memref<2x128x512xf32, #tpu.memory_space<vmem>>, vector<1x128x512xf32>
    %294 = vector.shape_cast %293 : vector<1x128x512xf32> to vector<128x512xf32>
    %cst_107 = arith.constant dense<0.000000e+00> : vector<8x512xf32>
    %295 = tpu.matmul %288, %294, %cst_107 {dimension_numbers = #tpu.dot_dimension_numbers<[1], [0], [0], [1], [0, 0, 1, 1], [], []>} : vector<8x128xf32>, vector<128x512xf32>, vector<8x512xf32> -> vector<8x512xf32>
    %296 = arith.addf %292, %295 : vector<8x512xf32>
    %297 = vector.extract_strided_slice %296 {offsets = [0, 0], sizes = [8, 128], strides = [1, 1]} : vector<8x512xf32> to vector<8x128xf32>
    %298 = arith.negf %297 : vector<8x128xf32>
    %299 = math.exp %298 : vector<8x128xf32>
    %cst_108 = arith.constant 1.000000e+00 : f32
    %300 = vector.broadcast %cst_108 : f32 to vector<8x128xf32>
    %301 = arith.addf %300, %299 : vector<8x128xf32>
    %302 = arith.divf %300, %301 : vector<8x128xf32>
    %303 = vector.extract_strided_slice %296 {offsets = [0, 128], sizes = [8, 128], strides = [1, 1]} : vector<8x512xf32> to vector<8x128xf32>
    %304 = arith.negf %303 : vector<8x128xf32>
    %305 = math.exp %304 : vector<8x128xf32>
    %cst_109 = arith.constant 1.000000e+00 : f32
    %306 = vector.broadcast %cst_109 : f32 to vector<8x128xf32>
    %307 = arith.addf %306, %305 : vector<8x128xf32>
    %308 = arith.divf %306, %307 : vector<8x128xf32>
    %309 = vector.extract_strided_slice %296 {offsets = [0, 256], sizes = [8, 128], strides = [1, 1]} : vector<8x512xf32> to vector<8x128xf32>
    %310 = math.tanh %309 : vector<8x128xf32>
    %311 = vector.extract_strided_slice %296 {offsets = [0, 384], sizes = [8, 128], strides = [1, 1]} : vector<8x512xf32> to vector<8x128xf32>
    %312 = arith.negf %311 : vector<8x128xf32>
    %313 = math.exp %312 : vector<8x128xf32>
    %cst_110 = arith.constant 1.000000e+00 : f32
    %314 = vector.broadcast %cst_110 : f32 to vector<8x128xf32>
    %315 = arith.addf %314, %313 : vector<8x128xf32>
    %316 = arith.divf %314, %315 : vector<8x128xf32>
    %317 = arith.mulf %308, %289 : vector<8x128xf32>
    %318 = arith.mulf %302, %310 : vector<8x128xf32>
    %319 = arith.addf %317, %318 : vector<8x128xf32>
    %320 = math.tanh %319 : vector<8x128xf32>
    %321 = arith.mulf %316, %320 : vector<8x128xf32>
    %322 = arith.index_cast %c0_i32_101 : i32 to index
    %c0_111 = arith.constant 0 : index
    %c0_112 = arith.constant 0 : index
    %323 = vector.load %arg7[%322, %c0_111, %c0_112] : memref<8x8x128xf32, #tpu.memory_space<vmem>>, vector<1x8x128xf32>
    %324 = vector.shape_cast %323 : vector<1x8x128xf32> to vector<8x128xf32>
    %325 = vector.shape_cast %321 : vector<8x128xf32> to vector<1x8x128xf32>
    tpu.vector_store %arg7[%322, %c0_111, %c0_112], %325 {strides = array<i32>} : memref<8x8x128xf32, #tpu.memory_space<vmem>>, vector<1x8x128xf32>,
    %c1_i32_113 = arith.constant 1 : i32
    %326 = arith.index_cast %c1_i32_113 : i32 to index
    %c0_114 = arith.constant 0 : index
    %c0_115 = arith.constant 0 : index
    %327 = vector.load %arg8[%326, %c0_114, %c0_115] : memref<8x8x512xf32, #tpu.memory_space<vmem>>, vector<1x8x512xf32>
    %328 = vector.shape_cast %327 : vector<1x8x512xf32> to vector<8x512xf32>
    %c1_116 = arith.constant 1 : index
    %c0_117 = arith.constant 0 : index
    %c0_118 = arith.constant 0 : index
    %329 = vector.load %arg5[%c1_116, %c0_117, %c0_118] : memref<2x128x512xf32, #tpu.memory_space<vmem>>, vector<1x128x512xf32>
    %330 = vector.shape_cast %329 : vector<1x128x512xf32> to vector<128x512xf32>
    %cst_119 = arith.constant dense<0.000000e+00> : vector<8x512xf32>
    %331 = tpu.matmul %321, %330, %cst_119 {dimension_numbers = #tpu.dot_dimension_numbers<[1], [0], [0], [1], [0, 0, 1, 1], [], []>} : vector<8x128xf32>, vector<128x512xf32>, vector<8x512xf32> -> vector<8x512xf32>
    %332 = arith.addf %328, %331 : vector<8x512xf32>
    %333 = vector.extract_strided_slice %332 {offsets = [0, 0], sizes = [8, 128], strides = [1, 1]} : vector<8x512xf32> to vector<8x128xf32>
    %334 = arith.negf %333 : vector<8x128xf32>
    %335 = math.exp %334 : vector<8x128xf32>
    %cst_120 = arith.constant 1.000000e+00 : f32
    %336 = vector.broadcast %cst_120 : f32 to vector<8x128xf32>
    %337 = arith.addf %336, %335 : vector<8x128xf32>
    %338 = arith.divf %336, %337 : vector<8x128xf32>
    %339 = vector.extract_strided_slice %332 {offsets = [0, 128], sizes = [8, 128], strides = [1, 1]} : vector<8x512xf32> to vector<8x128xf32>
    %340 = arith.negf %339 : vector<8x128xf32>
    %341 = math.exp %340 : vector<8x128xf32>
    %cst_121 = arith.constant 1.000000e+00 : f32
    %342 = vector.broadcast %cst_121 : f32 to vector<8x128xf32>
    %343 = arith.addf %342, %341 : vector<8x128xf32>
    %344 = arith.divf %342, %343 : vector<8x128xf32>
    %345 = vector.extract_strided_slice %332 {offsets = [0, 256], sizes = [8, 128], strides = [1, 1]} : vector<8x512xf32> to vector<8x128xf32>
    %346 = math.tanh %345 : vector<8x128xf32>
    %347 = vector.extract_strided_slice %332 {offsets = [0, 384], sizes = [8, 128], strides = [1, 1]} : vector<8x512xf32> to vector<8x128xf32>
    %348 = arith.negf %347 : vector<8x128xf32>
    %349 = math.exp %348 : vector<8x128xf32>
    %cst_122 = arith.constant 1.000000e+00 : f32
    %350 = vector.broadcast %cst_122 : f32 to vector<8x128xf32>
    %351 = arith.addf %350, %349 : vector<8x128xf32>
    %352 = arith.divf %350, %351 : vector<8x128xf32>
    %353 = arith.mulf %344, %319 : vector<8x128xf32>
    %354 = arith.mulf %338, %346 : vector<8x128xf32>
    %355 = arith.addf %353, %354 : vector<8x128xf32>
    %356 = math.tanh %355 : vector<8x128xf32>
    %357 = arith.mulf %352, %356 : vector<8x128xf32>
    %358 = arith.index_cast %c1_i32_113 : i32 to index
    %c0_123 = arith.constant 0 : index
    %c0_124 = arith.constant 0 : index
    %359 = vector.load %arg7[%358, %c0_123, %c0_124] : memref<8x8x128xf32, #tpu.memory_space<vmem>>, vector<1x8x128xf32>
    %360 = vector.shape_cast %359 : vector<1x8x128xf32> to vector<8x128xf32>
    %361 = vector.shape_cast %357 : vector<8x128xf32> to vector<1x8x128xf32>
    tpu.vector_store %arg7[%358, %c0_123, %c0_124], %361 {strides = array<i32>} : memref<8x8x128xf32, #tpu.memory_space<vmem>>, vector<1x8x128xf32>,
    %c2_i32_125 = arith.constant 2 : i32
    %362 = arith.index_cast %c2_i32_125 : i32 to index
    %c0_126 = arith.constant 0 : index
    %c0_127 = arith.constant 0 : index
    %363 = vector.load %arg8[%362, %c0_126, %c0_127] : memref<8x8x512xf32, #tpu.memory_space<vmem>>, vector<1x8x512xf32>
    %364 = vector.shape_cast %363 : vector<1x8x512xf32> to vector<8x512xf32>
    %c1_128 = arith.constant 1 : index
    %c0_129 = arith.constant 0 : index
    %c0_130 = arith.constant 0 : index
    %365 = vector.load %arg5[%c1_128, %c0_129, %c0_130] : memref<2x128x512xf32, #tpu.memory_space<vmem>>, vector<1x128x512xf32>
    %366 = vector.shape_cast %365 : vector<1x128x512xf32> to vector<128x512xf32>
    %cst_131 = arith.constant dense<0.000000e+00> : vector<8x512xf32>
    %367 = tpu.matmul %357, %366, %cst_131 {dimension_numbers = #tpu.dot_dimension_numbers<[1], [0], [0], [1], [0, 0, 1, 1], [], []>} : vector<8x128xf32>, vector<128x512xf32>, vector<8x512xf32> -> vector<8x512xf32>
    %368 = arith.addf %364, %367 : vector<8x512xf32>
    %369 = vector.extract_strided_slice %368 {offsets = [0, 0], sizes = [8, 128], strides = [1, 1]} : vector<8x512xf32> to vector<8x128xf32>
    %370 = arith.negf %369 : vector<8x128xf32>
    %371 = math.exp %370 : vector<8x128xf32>
    %cst_132 = arith.constant 1.000000e+00 : f32
    %372 = vector.broadcast %cst_132 : f32 to vector<8x128xf32>
    %373 = arith.addf %372, %371 : vector<8x128xf32>
    %374 = arith.divf %372, %373 : vector<8x128xf32>
    %375 = vector.extract_strided_slice %368 {offsets = [0, 128], sizes = [8, 128], strides = [1, 1]} : vector<8x512xf32> to vector<8x128xf32>
    %376 = arith.negf %375 : vector<8x128xf32>
    %377 = math.exp %376 : vector<8x128xf32>
    %cst_133 = arith.constant 1.000000e+00 : f32
    %378 = vector.broadcast %cst_133 : f32 to vector<8x128xf32>
    %379 = arith.addf %378, %377 : vector<8x128xf32>
    %380 = arith.divf %378, %379 : vector<8x128xf32>
    %381 = vector.extract_strided_slice %368 {offsets = [0, 256], sizes = [8, 128], strides = [1, 1]} : vector<8x512xf32> to vector<8x128xf32>
    %382 = math.tanh %381 : vector<8x128xf32>
    %383 = vector.extract_strided_slice %368 {offsets = [0, 384], sizes = [8, 128], strides = [1, 1]} : vector<8x512xf32> to vector<8x128xf32>
    %384 = arith.negf %383 : vector<8x128xf32>
    %385 = math.exp %384 : vector<8x128xf32>
    %cst_134 = arith.constant 1.000000e+00 : f32
    %386 = vector.broadcast %cst_134 : f32 to vector<8x128xf32>
    %387 = arith.addf %386, %385 : vector<8x128xf32>
    %388 = arith.divf %386, %387 : vector<8x128xf32>
    %389 = arith.mulf %380, %355 : vector<8x128xf32>
    %390 = arith.mulf %374, %382 : vector<8x128xf32>
    %391 = arith.addf %389, %390 : vector<8x128xf32>
    %392 = math.tanh %391 : vector<8x128xf32>
    %393 = arith.mulf %388, %392 : vector<8x128xf32>
    %394 = arith.index_cast %c2_i32_125 : i32 to index
    %c0_135 = arith.constant 0 : index
    %c0_136 = arith.constant 0 : index
    %395 = vector.load %arg7[%394, %c0_135, %c0_136] : memref<8x8x128xf32, #tpu.memory_space<vmem>>, vector<1x8x128xf32>
    %396 = vector.shape_cast %395 : vector<1x8x128xf32> to vector<8x128xf32>
    %397 = vector.shape_cast %393 : vector<8x128xf32> to vector<1x8x128xf32>
    tpu.vector_store %arg7[%394, %c0_135, %c0_136], %397 {strides = array<i32>} : memref<8x8x128xf32, #tpu.memory_space<vmem>>, vector<1x8x128xf32>,
    %c3_i32_137 = arith.constant 3 : i32
    %398 = arith.index_cast %c3_i32_137 : i32 to index
    %c0_138 = arith.constant 0 : index
    %c0_139 = arith.constant 0 : index
    %399 = vector.load %arg8[%398, %c0_138, %c0_139] : memref<8x8x512xf32, #tpu.memory_space<vmem>>, vector<1x8x512xf32>
    %400 = vector.shape_cast %399 : vector<1x8x512xf32> to vector<8x512xf32>
    %c1_140 = arith.constant 1 : index
    %c0_141 = arith.constant 0 : index
    %c0_142 = arith.constant 0 : index
    %401 = vector.load %arg5[%c1_140, %c0_141, %c0_142] : memref<2x128x512xf32, #tpu.memory_space<vmem>>, vector<1x128x512xf32>
    %402 = vector.shape_cast %401 : vector<1x128x512xf32> to vector<128x512xf32>
    %cst_143 = arith.constant dense<0.000000e+00> : vector<8x512xf32>
    %403 = tpu.matmul %393, %402, %cst_143 {dimension_numbers = #tpu.dot_dimension_numbers<[1], [0], [0], [1], [0, 0, 1, 1], [], []>} : vector<8x128xf32>, vector<128x512xf32>, vector<8x512xf32> -> vector<8x512xf32>
    %404 = arith.addf %400, %403 : vector<8x512xf32>
    %405 = vector.extract_strided_slice %404 {offsets = [0, 0], sizes = [8, 128], strides = [1, 1]} : vector<8x512xf32> to vector<8x128xf32>
    %406 = arith.negf %405 : vector<8x128xf32>
    %407 = math.exp %406 : vector<8x128xf32>
    %cst_144 = arith.constant 1.000000e+00 : f32
    %408 = vector.broadcast %cst_144 : f32 to vector<8x128xf32>
    %409 = arith.addf %408, %407 : vector<8x128xf32>
    %410 = arith.divf %408, %409 : vector<8x128xf32>
    %411 = vector.extract_strided_slice %404 {offsets = [0, 128], sizes = [8, 128], strides = [1, 1]} : vector<8x512xf32> to vector<8x128xf32>
    %412 = arith.negf %411 : vector<8x128xf32>
    %413 = math.exp %412 : vector<8x128xf32>
    %cst_145 = arith.constant 1.000000e+00 : f32
    %414 = vector.broadcast %cst_145 : f32 to vector<8x128xf32>
    %415 = arith.addf %414, %413 : vector<8x128xf32>
    %416 = arith.divf %414, %415 : vector<8x128xf32>
    %417 = vector.extract_strided_slice %404 {offsets = [0, 256], sizes = [8, 128], strides = [1, 1]} : vector<8x512xf32> to vector<8x128xf32>
    %418 = math.tanh %417 : vector<8x128xf32>
    %419 = vector.extract_strided_slice %404 {offsets = [0, 384], sizes = [8, 128], strides = [1, 1]} : vector<8x512xf32> to vector<8x128xf32>
    %420 = arith.negf %419 : vector<8x128xf32>
    %421 = math.exp %420 : vector<8x128xf32>
    %cst_146 = arith.constant 1.000000e+00 : f32
    %422 = vector.broadcast %cst_146 : f32 to vector<8x128xf32>
    %423 = arith.addf %422, %421 : vector<8x128xf32>
    %424 = arith.divf %422, %423 : vector<8x128xf32>
    %425 = arith.mulf %416, %391 : vector<8x128xf32>
    %426 = arith.mulf %410, %418 : vector<8x128xf32>
    %427 = arith.addf %425, %426 : vector<8x128xf32>
    %428 = math.tanh %427 : vector<8x128xf32>
    %429 = arith.mulf %424, %428 : vector<8x128xf32>
    %430 = arith.index_cast %c3_i32_137 : i32 to index
    %c0_147 = arith.constant 0 : index
    %c0_148 = arith.constant 0 : index
    %431 = vector.load %arg7[%430, %c0_147, %c0_148] : memref<8x8x128xf32, #tpu.memory_space<vmem>>, vector<1x8x128xf32>
    %432 = vector.shape_cast %431 : vector<1x8x128xf32> to vector<8x128xf32>
    %433 = vector.shape_cast %429 : vector<8x128xf32> to vector<1x8x128xf32>
    tpu.vector_store %arg7[%430, %c0_147, %c0_148], %433 {strides = array<i32>} : memref<8x8x128xf32, #tpu.memory_space<vmem>>, vector<1x8x128xf32>,
    %c4_i32_149 = arith.constant 4 : i32
    %434 = arith.index_cast %c4_i32_149 : i32 to index
    %c0_150 = arith.constant 0 : index
    %c0_151 = arith.constant 0 : index
    %435 = vector.load %arg8[%434, %c0_150, %c0_151] : memref<8x8x512xf32, #tpu.memory_space<vmem>>, vector<1x8x512xf32>
    %436 = vector.shape_cast %435 : vector<1x8x512xf32> to vector<8x512xf32>
    %c1_152 = arith.constant 1 : index
    %c0_153 = arith.constant 0 : index
    %c0_154 = arith.constant 0 : index
    %437 = vector.load %arg5[%c1_152, %c0_153, %c0_154] : memref<2x128x512xf32, #tpu.memory_space<vmem>>, vector<1x128x512xf32>
    %438 = vector.shape_cast %437 : vector<1x128x512xf32> to vector<128x512xf32>
    %cst_155 = arith.constant dense<0.000000e+00> : vector<8x512xf32>
    %439 = tpu.matmul %429, %438, %cst_155 {dimension_numbers = #tpu.dot_dimension_numbers<[1], [0], [0], [1], [0, 0, 1, 1], [], []>} : vector<8x128xf32>, vector<128x512xf32>, vector<8x512xf32> -> vector<8x512xf32>
    %440 = arith.addf %436, %439 : vector<8x512xf32>
    %441 = vector.extract_strided_slice %440 {offsets = [0, 0], sizes = [8, 128], strides = [1, 1]} : vector<8x512xf32> to vector<8x128xf32>
    %442 = arith.negf %441 : vector<8x128xf32>
    %443 = math.exp %442 : vector<8x128xf32>
    %cst_156 = arith.constant 1.000000e+00 : f32
    %444 = vector.broadcast %cst_156 : f32 to vector<8x128xf32>
    %445 = arith.addf %444, %443 : vector<8x128xf32>
    %446 = arith.divf %444, %445 : vector<8x128xf32>
    %447 = vector.extract_strided_slice %440 {offsets = [0, 128], sizes = [8, 128], strides = [1, 1]} : vector<8x512xf32> to vector<8x128xf32>
    %448 = arith.negf %447 : vector<8x128xf32>
    %449 = math.exp %448 : vector<8x128xf32>
    %cst_157 = arith.constant 1.000000e+00 : f32
    %450 = vector.broadcast %cst_157 : f32 to vector<8x128xf32>
    %451 = arith.addf %450, %449 : vector<8x128xf32>
    %452 = arith.divf %450, %451 : vector<8x128xf32>
    %453 = vector.extract_strided_slice %440 {offsets = [0, 256], sizes = [8, 128], strides = [1, 1]} : vector<8x512xf32> to vector<8x128xf32>
    %454 = math.tanh %453 : vector<8x128xf32>
    %455 = vector.extract_strided_slice %440 {offsets = [0, 384], sizes = [8, 128], strides = [1, 1]} : vector<8x512xf32> to vector<8x128xf32>
    %456 = arith.negf %455 : vector<8x128xf32>
    %457 = math.exp %456 : vector<8x128xf32>
    %cst_158 = arith.constant 1.000000e+00 : f32
    %458 = vector.broadcast %cst_158 : f32 to vector<8x128xf32>
    %459 = arith.addf %458, %457 : vector<8x128xf32>
    %460 = arith.divf %458, %459 : vector<8x128xf32>
    %461 = arith.mulf %452, %427 : vector<8x128xf32>
    %462 = arith.mulf %446, %454 : vector<8x128xf32>
    %463 = arith.addf %461, %462 : vector<8x128xf32>
    %464 = math.tanh %463 : vector<8x128xf32>
    %465 = arith.mulf %460, %464 : vector<8x128xf32>
    %466 = arith.index_cast %c4_i32_149 : i32 to index
    %c0_159 = arith.constant 0 : index
    %c0_160 = arith.constant 0 : index
    %467 = vector.load %arg7[%466, %c0_159, %c0_160] : memref<8x8x128xf32, #tpu.memory_space<vmem>>, vector<1x8x128xf32>
    %468 = vector.shape_cast %467 : vector<1x8x128xf32> to vector<8x128xf32>
    %469 = vector.shape_cast %465 : vector<8x128xf32> to vector<1x8x128xf32>
    tpu.vector_store %arg7[%466, %c0_159, %c0_160], %469 {strides = array<i32>} : memref<8x8x128xf32, #tpu.memory_space<vmem>>, vector<1x8x128xf32>,
    %c5_i32_161 = arith.constant 5 : i32
    %470 = arith.index_cast %c5_i32_161 : i32 to index
    %c0_162 = arith.constant 0 : index
    %c0_163 = arith.constant 0 : index
    %471 = vector.load %arg8[%470, %c0_162, %c0_163] : memref<8x8x512xf32, #tpu.memory_space<vmem>>, vector<1x8x512xf32>
    %472 = vector.shape_cast %471 : vector<1x8x512xf32> to vector<8x512xf32>
    %c1_164 = arith.constant 1 : index
    %c0_165 = arith.constant 0 : index
    %c0_166 = arith.constant 0 : index
    %473 = vector.load %arg5[%c1_164, %c0_165, %c0_166] : memref<2x128x512xf32, #tpu.memory_space<vmem>>, vector<1x128x512xf32>
    %474 = vector.shape_cast %473 : vector<1x128x512xf32> to vector<128x512xf32>
    %cst_167 = arith.constant dense<0.000000e+00> : vector<8x512xf32>
    %475 = tpu.matmul %465, %474, %cst_167 {dimension_numbers = #tpu.dot_dimension_numbers<[1], [0], [0], [1], [0, 0, 1, 1], [], []>} : vector<8x128xf32>, vector<128x512xf32>, vector<8x512xf32> -> vector<8x512xf32>
    %476 = arith.addf %472, %475 : vector<8x512xf32>
    %477 = vector.extract_strided_slice %476 {offsets = [0, 0], sizes = [8, 128], strides = [1, 1]} : vector<8x512xf32> to vector<8x128xf32>
    %478 = arith.negf %477 : vector<8x128xf32>
    %479 = math.exp %478 : vector<8x128xf32>
    %cst_168 = arith.constant 1.000000e+00 : f32
    %480 = vector.broadcast %cst_168 : f32 to vector<8x128xf32>
    %481 = arith.addf %480, %479 : vector<8x128xf32>
    %482 = arith.divf %480, %481 : vector<8x128xf32>
    %483 = vector.extract_strided_slice %476 {offsets = [0, 128], sizes = [8, 128], strides = [1, 1]} : vector<8x512xf32> to vector<8x128xf32>
    %484 = arith.negf %483 : vector<8x128xf32>
    %485 = math.exp %484 : vector<8x128xf32>
    %cst_169 = arith.constant 1.000000e+00 : f32
    %486 = vector.broadcast %cst_169 : f32 to vector<8x128xf32>
    %487 = arith.addf %486, %485 : vector<8x128xf32>
    %488 = arith.divf %486, %487 : vector<8x128xf32>
    %489 = vector.extract_strided_slice %476 {offsets = [0, 256], sizes = [8, 128], strides = [1, 1]} : vector<8x512xf32> to vector<8x128xf32>
    %490 = math.tanh %489 : vector<8x128xf32>
    %491 = vector.extract_strided_slice %476 {offsets = [0, 384], sizes = [8, 128], strides = [1, 1]} : vector<8x512xf32> to vector<8x128xf32>
    %492 = arith.negf %491 : vector<8x128xf32>
    %493 = math.exp %492 : vector<8x128xf32>
    %cst_170 = arith.constant 1.000000e+00 : f32
    %494 = vector.broadcast %cst_170 : f32 to vector<8x128xf32>
    %495 = arith.addf %494, %493 : vector<8x128xf32>
    %496 = arith.divf %494, %495 : vector<8x128xf32>
    %497 = arith.mulf %488, %463 : vector<8x128xf32>
    %498 = arith.mulf %482, %490 : vector<8x128xf32>
    %499 = arith.addf %497, %498 : vector<8x128xf32>
    %500 = math.tanh %499 : vector<8x128xf32>
    %501 = arith.mulf %496, %500 : vector<8x128xf32>
    %502 = arith.index_cast %c5_i32_161 : i32 to index
    %c0_171 = arith.constant 0 : index
    %c0_172 = arith.constant 0 : index
    %503 = vector.load %arg7[%502, %c0_171, %c0_172] : memref<8x8x128xf32, #tpu.memory_space<vmem>>, vector<1x8x128xf32>
    %504 = vector.shape_cast %503 : vector<1x8x128xf32> to vector<8x128xf32>
    %505 = vector.shape_cast %501 : vector<8x128xf32> to vector<1x8x128xf32>
    tpu.vector_store %arg7[%502, %c0_171, %c0_172], %505 {strides = array<i32>} : memref<8x8x128xf32, #tpu.memory_space<vmem>>, vector<1x8x128xf32>,
    %c6_i32_173 = arith.constant 6 : i32
    %506 = arith.index_cast %c6_i32_173 : i32 to index
    %c0_174 = arith.constant 0 : index
    %c0_175 = arith.constant 0 : index
    %507 = vector.load %arg8[%506, %c0_174, %c0_175] : memref<8x8x512xf32, #tpu.memory_space<vmem>>, vector<1x8x512xf32>
    %508 = vector.shape_cast %507 : vector<1x8x512xf32> to vector<8x512xf32>
    %c1_176 = arith.constant 1 : index
    %c0_177 = arith.constant 0 : index
    %c0_178 = arith.constant 0 : index
    %509 = vector.load %arg5[%c1_176, %c0_177, %c0_178] : memref<2x128x512xf32, #tpu.memory_space<vmem>>, vector<1x128x512xf32>
    %510 = vector.shape_cast %509 : vector<1x128x512xf32> to vector<128x512xf32>
    %cst_179 = arith.constant dense<0.000000e+00> : vector<8x512xf32>
    %511 = tpu.matmul %501, %510, %cst_179 {dimension_numbers = #tpu.dot_dimension_numbers<[1], [0], [0], [1], [0, 0, 1, 1], [], []>} : vector<8x128xf32>, vector<128x512xf32>, vector<8x512xf32> -> vector<8x512xf32>
    %512 = arith.addf %508, %511 : vector<8x512xf32>
    %513 = vector.extract_strided_slice %512 {offsets = [0, 0], sizes = [8, 128], strides = [1, 1]} : vector<8x512xf32> to vector<8x128xf32>
    %514 = arith.negf %513 : vector<8x128xf32>
    %515 = math.exp %514 : vector<8x128xf32>
    %cst_180 = arith.constant 1.000000e+00 : f32
    %516 = vector.broadcast %cst_180 : f32 to vector<8x128xf32>
    %517 = arith.addf %516, %515 : vector<8x128xf32>
    %518 = arith.divf %516, %517 : vector<8x128xf32>
    %519 = vector.extract_strided_slice %512 {offsets = [0, 128], sizes = [8, 128], strides = [1, 1]} : vector<8x512xf32> to vector<8x128xf32>
    %520 = arith.negf %519 : vector<8x128xf32>
    %521 = math.exp %520 : vector<8x128xf32>
    %cst_181 = arith.constant 1.000000e+00 : f32
    %522 = vector.broadcast %cst_181 : f32 to vector<8x128xf32>
    %523 = arith.addf %522, %521 : vector<8x128xf32>
    %524 = arith.divf %522, %523 : vector<8x128xf32>
    %525 = vector.extract_strided_slice %512 {offsets = [0, 256], sizes = [8, 128], strides = [1, 1]} : vector<8x512xf32> to vector<8x128xf32>
    %526 = math.tanh %525 : vector<8x128xf32>
    %527 = vector.extract_strided_slice %512 {offsets = [0, 384], sizes = [8, 128], strides = [1, 1]} : vector<8x512xf32> to vector<8x128xf32>
    %528 = arith.negf %527 : vector<8x128xf32>
    %529 = math.exp %528 : vector<8x128xf32>
    %cst_182 = arith.constant 1.000000e+00 : f32
    %530 = vector.broadcast %cst_182 : f32 to vector<8x128xf32>
    %531 = arith.addf %530, %529 : vector<8x128xf32>
    %532 = arith.divf %530, %531 : vector<8x128xf32>
    %533 = arith.mulf %524, %499 : vector<8x128xf32>
    %534 = arith.mulf %518, %526 : vector<8x128xf32>
    %535 = arith.addf %533, %534 : vector<8x128xf32>
    %536 = math.tanh %535 : vector<8x128xf32>
    %537 = arith.mulf %532, %536 : vector<8x128xf32>
    %538 = arith.index_cast %c6_i32_173 : i32 to index
    %c0_183 = arith.constant 0 : index
    %c0_184 = arith.constant 0 : index
    %539 = vector.load %arg7[%538, %c0_183, %c0_184] : memref<8x8x128xf32, #tpu.memory_space<vmem>>, vector<1x8x128xf32>
    %540 = vector.shape_cast %539 : vector<1x8x128xf32> to vector<8x128xf32>
    %541 = vector.shape_cast %537 : vector<8x128xf32> to vector<1x8x128xf32>
    tpu.vector_store %arg7[%538, %c0_183, %c0_184], %541 {strides = array<i32>} : memref<8x8x128xf32, #tpu.memory_space<vmem>>, vector<1x8x128xf32>,
    %c7_i32_185 = arith.constant 7 : i32
    %542 = arith.index_cast %c7_i32_185 : i32 to index
    %c0_186 = arith.constant 0 : index
    %c0_187 = arith.constant 0 : index
    %543 = vector.load %arg8[%542, %c0_186, %c0_187] : memref<8x8x512xf32, #tpu.memory_space<vmem>>, vector<1x8x512xf32>
    %544 = vector.shape_cast %543 : vector<1x8x512xf32> to vector<8x512xf32>
    %c1_188 = arith.constant 1 : index
    %c0_189 = arith.constant 0 : index
    %c0_190 = arith.constant 0 : index
    %545 = vector.load %arg5[%c1_188, %c0_189, %c0_190] : memref<2x128x512xf32, #tpu.memory_space<vmem>>, vector<1x128x512xf32>
    %546 = vector.shape_cast %545 : vector<1x128x512xf32> to vector<128x512xf32>
    %cst_191 = arith.constant dense<0.000000e+00> : vector<8x512xf32>
    %547 = tpu.matmul %537, %546, %cst_191 {dimension_numbers = #tpu.dot_dimension_numbers<[1], [0], [0], [1], [0, 0, 1, 1], [], []>} : vector<8x128xf32>, vector<128x512xf32>, vector<8x512xf32> -> vector<8x512xf32>
    %548 = arith.addf %544, %547 : vector<8x512xf32>
    %549 = vector.extract_strided_slice %548 {offsets = [0, 0], sizes = [8, 128], strides = [1, 1]} : vector<8x512xf32> to vector<8x128xf32>
    %550 = arith.negf %549 : vector<8x128xf32>
    %551 = math.exp %550 : vector<8x128xf32>
    %cst_192 = arith.constant 1.000000e+00 : f32
    %552 = vector.broadcast %cst_192 : f32 to vector<8x128xf32>
    %553 = arith.addf %552, %551 : vector<8x128xf32>
    %554 = arith.divf %552, %553 : vector<8x128xf32>
    %555 = vector.extract_strided_slice %548 {offsets = [0, 128], sizes = [8, 128], strides = [1, 1]} : vector<8x512xf32> to vector<8x128xf32>
    %556 = arith.negf %555 : vector<8x128xf32>
    %557 = math.exp %556 : vector<8x128xf32>
    %cst_193 = arith.constant 1.000000e+00 : f32
    %558 = vector.broadcast %cst_193 : f32 to vector<8x128xf32>
    %559 = arith.addf %558, %557 : vector<8x128xf32>
    %560 = arith.divf %558, %559 : vector<8x128xf32>
    %561 = vector.extract_strided_slice %548 {offsets = [0, 256], sizes = [8, 128], strides = [1, 1]} : vector<8x512xf32> to vector<8x128xf32>
    %562 = math.tanh %561 : vector<8x128xf32>
    %563 = vector.extract_strided_slice %548 {offsets = [0, 384], sizes = [8, 128], strides = [1, 1]} : vector<8x512xf32> to vector<8x128xf32>
    %564 = arith.negf %563 : vector<8x128xf32>
    %565 = math.exp %564 : vector<8x128xf32>
    %cst_194 = arith.constant 1.000000e+00 : f32
    %566 = vector.broadcast %cst_194 : f32 to vector<8x128xf32>
    %567 = arith.addf %566, %565 : vector<8x128xf32>
    %568 = arith.divf %566, %567 : vector<8x128xf32>
    %569 = arith.mulf %560, %535 : vector<8x128xf32>
    %570 = arith.mulf %554, %562 : vector<8x128xf32>
    %571 = arith.addf %569, %570 : vector<8x128xf32>
    %572 = math.tanh %571 : vector<8x128xf32>
    %573 = arith.mulf %568, %572 : vector<8x128xf32>
    %574 = arith.index_cast %c7_i32_185 : i32 to index
    %c0_195 = arith.constant 0 : index
    %c0_196 = arith.constant 0 : index
    %575 = vector.load %arg7[%574, %c0_195, %c0_196] : memref<8x8x128xf32, #tpu.memory_space<vmem>>, vector<1x8x128xf32>
    %576 = vector.shape_cast %575 : vector<1x8x128xf32> to vector<8x128xf32>
    %577 = vector.shape_cast %573 : vector<8x128xf32> to vector<1x8x128xf32>
    tpu.vector_store %arg7[%574, %c0_195, %c0_196], %577 {strides = array<i32>} : memref<8x8x128xf32, #tpu.memory_space<vmem>>, vector<1x8x128xf32>,
    %c8_i32_197 = arith.constant 8 : i32
    return
  }
  func.func @transform_0(%arg0: i32) -> (i32, i32) {
    %c0_i32 = arith.constant 0 : i32
    %c0_i32_0 = arith.constant 0 : i32
    %c0_i32_1 = arith.constant 0 : i32
    return %c0_i32, %c0_i32_0 : i32, i32
  }
  func.func @transform_1(%arg0: i32) -> (i32, i32, i32) {
    %c0_i32 = arith.constant 0 : i32
    %c0_i32_0 = arith.constant 0 : i32
    %c0_i32_1 = arith.constant 0 : i32
    return %c0_i32, %arg0, %c0_i32_0 : i32, i32, i32
  }
  func.func @transform_2(%arg0: i32) -> (i32, i32) {
    %c0_i32 = arith.constant 0 : i32
    %c0_i32_0 = arith.constant 0 : i32
    return %arg0, %c0_i32 : i32, i32
  }
  func.func @transform_3(%arg0: i32) -> (i32, i32, i32) {
    %c0_i32 = arith.constant 0 : i32
    %c0_i32_0 = arith.constant 0 : i32
    %c0_i32_1 = arith.constant 0 : i32
    %c0_i32_2 = arith.constant 0 : i32
    return %c0_i32, %c0_i32_0, %c0_i32_1 : i32, i32, i32
  }
  func.func @transform_4(%arg0: i32) -> (i32, i32, i32) {
    %c0_i32 = arith.constant 0 : i32
    %c0_i32_0 = arith.constant 0 : i32
    %c0_i32_1 = arith.constant 0 : i32
    %c0_i32_2 = arith.constant 0 : i32
    return %c0_i32, %c0_i32_0, %c0_i32_1 : i32, i32, i32
  }
  func.func @transform_5(%arg0: i32) -> (i32, i32, i32) {
    %c0_i32 = arith.constant 0 : i32
    %c0_i32_0 = arith.constant 0 : i32
    %c0_i32_1 = arith.constant 0 : i32
    %c0_i32_2 = arith.constant 0 : i32
    return %c0_i32, %c0_i32_0, %c0_i32_1 : i32, i32, i32
  }
  func.func @transform_6(%arg0: i32) -> (i32, i32, i32) {
    %c0_i32 = arith.constant 0 : i32
    %c0_i32_0 = arith.constant 0 : i32
    %c0_i32_1 = arith.constant 0 : i32
    return %c0_i32, %arg0, %c0_i32_0 : i32, i32, i32
  }
}

</mosaic_0001>

<llo_original>
// kernel: lstm_decoder.1
$region0: #{lstm_decoder.1}
  #allocation0 [shape = 'u32[]', space=smem, size = 0x4, offset = 0x4, fixed_abs, tag = 'smem constant byte address 0x4 - core index']
  #allocation1 [shape = 'u32[72,128]{1,0:T(1,128)}', space=vmem, size = 0x9000, scoped, tag = 'internal scratch']
  #allocation2 [shape = 'f32[8,8,512]{2,1,0:T(8,128)}', space=vmem, size = 0x20000, scoped, tag = 'scratch operand']
  %s0 = inlined_call_operand.vmem [shape: f32[1,128], index: 0, kind: input, shape index: {}]
  %s1 = inlined_call_operand.vmem [shape: f32[2,8,128], index: 1, kind: input, shape index: {}]
  %s2 = inlined_call_operand.vmem [shape: f32[8,128], index: 2, kind: input, shape index: {}]
  %s3 = inlined_call_operand.vmem [shape: f32[2,128,512], index: 3, kind: input, shape index: {}]
  %s4 = inlined_call_operand.vmem [shape: f32[2,128,512], index: 4, kind: input, shape index: {}]
  %s5 = inlined_call_operand.vmem [shape: f32[2,1,512], index: 5, kind: input, shape index: {}]
  %s6 = inlined_call_operand.vmem [shape: f32[8,8,128], index: 6, kind: output, shape index: {}]
  %s7 = sld [smem:[#allocation0]]
  $region34: #{lstm_decoder.1} parent=0
    _
  %s9 = ssub.s32 1, %s7
  %s10 = scalar_select 0, %s9, %s7
  // Predicated region
  $region2: #{lstm_decoder.1} parent=0 // pred_check
    _
  $region3: #{lstm_decoder.1} parent=0 // pred_check_branch
    %12 = sbr.rel (0) target = $region5
  $region4: #{lstm_decoder.1} parent=0 // pred_region
    _
  $region5: #{lstm_decoder.1} parent=0 // pred_fallthru
    _
  // Predicated region
  $region6: #{lstm_decoder.1} parent=0 // pred_check
    _
  $region7: #{lstm_decoder.1} parent=0 // pred_check_branch
    %14 = sbr.rel (0) target = $region9
  $region8: #{lstm_decoder.1} parent=0 // pred_region
    _
  $region9: #{lstm_decoder.1} parent=0 // pred_fallthru
    _
  // Predicated region
  $region10: #{lstm_decoder.1} parent=0 // pred_check
    _
  $region11: #{lstm_decoder.1} parent=0 // pred_check_branch
    %16 = sbr.rel (0) target = $region13
  $region12: #{lstm_decoder.1} parent=0 // pred_region
    _
  $region13: #{lstm_decoder.1} parent=0 // pred_fallthru
    _
  // Predicated region
  $region14: #{lstm_decoder.1} parent=0 // pred_check
    _
  $region15: #{lstm_decoder.1} parent=0 // pred_check_branch
    %18 = sbr.rel (0) target = $region17
  $region16: #{lstm_decoder.1} parent=0 // pred_region
    _
  $region17: #{lstm_decoder.1} parent=0 // pred_fallthru
    _
  // Predicated region
  $region18: #{lstm_decoder.1} parent=0 // pred_check
    _
  $region19: #{lstm_decoder.1} parent=0 // pred_check_branch
    %20 = sbr.rel (0) target = $region21
  $region20: #{lstm_decoder.1} parent=0 // pred_region
    _
  $region21: #{lstm_decoder.1} parent=0 // pred_fallthru
    _
  // Predicated region
  $region22: #{lstm_decoder.1} parent=0 // pred_check
    _
  $region23: #{lstm_decoder.1} parent=0 // pred_check_branch
    %22 = sbr.rel (0) target = $region25
  $region24: #{lstm_decoder.1} parent=0 // pred_region
    _
  $region25: #{lstm_decoder.1} parent=0 // pred_fallthru
    _
  %v23 = vld [vmem:[%s0] sm:$0x1]
  %v24 = vld [vmem:[%s3] sm:$0xff]
  %v25 = vld [vmem:[%s3 + $0x8] sm:$0xff]
  %v26 = vld [vmem:[%s3 + $0x10] sm:$0xff]
  %v27 = vld [vmem:[%s3 + $0x18] sm:$0xff]
  %v28 = vld [vmem:[%s3 + $0x20] sm:$0xff]
  %v29 = vld [vmem:[%s3 + $0x28] sm:$0xff]
  %v30 = vld [vmem:[%s3 + $0x30] sm:$0xff]
  %v31 = vld [vmem:[%s3 + $0x38] sm:$0xff]
  %v32 = vld [vmem:[%s3 + $0x40] sm:$0xff]
  %v33 = vld [vmem:[%s3 + $0x48] sm:$0xff]
  %v34 = vld [vmem:[%s3 + $0x50] sm:$0xff]
  %v35 = vld [vmem:[%s3 + $0x58] sm:$0xff]
  %v36 = vld [vmem:[%s3 + $0x60] sm:$0xff]
  %v37 = vld [vmem:[%s3 + $0x68] sm:$0xff]
  %v38 = vld [vmem:[%s3 + $0x70] sm:$0xff]
  %v39 = vld [vmem:[%s3 + $0x78] sm:$0xff]
  %v40 = vld [vmem:[%s3 + $0x80] sm:$0xff]
  %v41 = vld [vmem:[%s3 + $0x88] sm:$0xff]
  %v42 = vld [vmem:[%s3 + $0x90] sm:$0xff]
  %v43 = vld [vmem:[%s3 + $0x98] sm:$0xff]
  %v44 = vld [vmem:[%s3 + $0xa0] sm:$0xff]
  %v45 = vld [vmem:[%s3 + $0xa8] sm:$0xff]
  %v46 = vld [vmem:[%s3 + $0xb0] sm:$0xff]
  %v47 = vld [vmem:[%s3 + $0xb8] sm:$0xff]
  %v48 = vld [vmem:[%s3 + $0xc0] sm:$0xff]
  %v49 = vld [vmem:[%s3 + $0xc8] sm:$0xff]
  %v50 = vld [vmem:[%s3 + $0xd0] sm:$0xff]
  %v51 = vld [vmem:[%s3 + $0xd8] sm:$0xff]
  %v52 = vld [vmem:[%s3 + $0xe0] sm:$0xff]
  %v53 = vld [vmem:[%s3 + $0xe8] sm:$0xff]
  %v54 = vld [vmem:[%s3 + $0xf0] sm:$0xff]
  %v55 = vld [vmem:[%s3 + $0xf8] sm:$0xff]
  %v56 = vld [vmem:[%s3 + $0x100] sm:$0xff]
  %v57 = vld [vmem:[%s3 + $0x108] sm:$0xff]
  %v58 = vld [vmem:[%s3 + $0x110] sm:$0xff]
  %v59 = vld [vmem:[%s3 + $0x118] sm:$0xff]
  %v60 = vld [vmem:[%s3 + $0x120] sm:$0xff]
  %v61 = vld [vmem:[%s3 + $0x128] sm:$0xff]
  %v62 = vld [vmem:[%s3 + $0x130] sm:$0xff]
  %v63 = vld [vmem:[%s3 + $0x138] sm:$0xff]
  %v64 = vld [vmem:[%s3 + $0x140] sm:$0xff]
  %v65 = vld [vmem:[%s3 + $0x148] sm:$0xff]
  %v66 = vld [vmem:[%s3 + $0x150] sm:$0xff]
  %v67 = vld [vmem:[%s3 + $0x158] sm:$0xff]
  %v68 = vld [vmem:[%s3 + $0x160] sm:$0xff]
  %v69 = vld [vmem:[%s3 + $0x168] sm:$0xff]
  %v70 = vld [vmem:[%s3 + $0x170] sm:$0xff]
  %v71 = vld [vmem:[%s3 + $0x178] sm:$0xff]
  %v72 = vld [vmem:[%s3 + $0x180] sm:$0xff]
  %v73 = vld [vmem:[%s3 + $0x188] sm:$0xff]
  %v74 = vld [vmem:[%s3 + $0x190] sm:$0xff]
  %v75 = vld [vmem:[%s3 + $0x198] sm:$0xff]
  %v76 = vld [vmem:[%s3 + $0x1a0] sm:$0xff]
  %v77 = vld [vmem:[%s3 + $0x1a8] sm:$0xff]
  %v78 = vld [vmem:[%s3 + $0x1b0] sm:$0xff]
  %v79 = vld [vmem:[%s3 + $0x1b8] sm:$0xff]
  %v80 = vld [vmem:[%s3 + $0x1c0] sm:$0xff]
  %v81 = vld [vmem:[%s3 + $0x1c8] sm:$0xff]
  %v82 = vld [vmem:[%s3 + $0x1d0] sm:$0xff]
  %v83 = vld [vmem:[%s3 + $0x1d8] sm:$0xff]
  %v84 = vld [vmem:[%s3 + $0x1e0] sm:$0xff]
  %v85 = vld [vmem:[%s3 + $0x1e8] sm:$0xff]
  %v86 = vld [vmem:[%s3 + $0x1f0] sm:$0xff]
  %v87 = vld [vmem:[%s3 + $0x1f8] sm:$0xff]
  %v88 = vld [vmem:[%s5] sm:$0xf]
  %v90 = vperm.slane %v88, 0
  %v91 = vperm.slane %v88, 1
  %v92 = vperm.slane %v88, 2
  %v93 = vperm.slane %v88, 3
  %98 = vmatpush.msra.mxu0 %v84
  %99 = vmatpush.msra.mxu0 %v80
  %100 = vmatpush.msra.mxu0 %v76
  %101 = vmatpush.msra.mxu0 %v72
  %102 = vmatpush.msra.mxu0 %v68
  %103 = vmatpush.msra.mxu0 %v64
  %104 = vmatpush.msra.mxu0 %v60
  %105 = vmatpush.msra.mxu0 %v56
  %106 = vmatpush.msra.mxu0 %v52
  %107 = vmatpush.msra.mxu0 %v48
  %108 = vmatpush.msra.mxu0 %v44
  %109 = vmatpush.msra.mxu0 %v40
  %110 = vmatpush.msra.mxu0 %v36
  %111 = vmatpush.msra.mxu0 %v32
  %112 = vmatpush.msra.mxu0 %v28
  %113 = vmatpush.msra.mxu0 %v24
  %114 = vmatmul.f32.gmra.mxu0 %v23
  %v115 = vpop.f32.mrf.mxu0
  %v116 = vadd.f32 %v90, %v115
  %117 = vdwg.mxu0
  %118 = vmatpush.msra.mxu0 %v85
  %119 = vmatpush.msra.mxu0 %v81
  %120 = vmatpush.msra.mxu0 %v77
  %121 = vmatpush.msra.mxu0 %v73
  %122 = vmatpush.msra.mxu0 %v69
  %123 = vmatpush.msra.mxu0 %v65
  %124 = vmatpush.msra.mxu0 %v61
  %125 = vmatpush.msra.mxu0 %v57
  %126 = vmatpush.msra.mxu0 %v53
  %127 = vmatpush.msra.mxu0 %v49
  %128 = vmatpush.msra.mxu0 %v45
  %129 = vmatpush.msra.mxu0 %v41
  %130 = vmatpush.msra.mxu0 %v37
  %131 = vmatpush.msra.mxu0 %v33
  %132 = vmatpush.msra.mxu0 %v29
  %133 = vmatpush.msra.mxu0 %v25
  %134 = vmatmul.f32.gmra.mxu0 %v23
  %v135 = vpop.f32.mrf.mxu0
  %v136 = vadd.f32 %v91, %v135
  %137 = vdwg.mxu0
  %138 = vmatpush.msra.mxu0 %v86
  %139 = vmatpush.msra.mxu0 %v82
  %140 = vmatpush.msra.mxu0 %v78
  %141 = vmatpush.msra.mxu0 %v74
  %142 = vmatpush.msra.mxu0 %v70
  %143 = vmatpush.msra.mxu0 %v66
  %144 = vmatpush.msra.mxu0 %v62
  %145 = vmatpush.msra.mxu0 %v58
  %146 = vmatpush.msra.mxu0 %v54
  %147 = vmatpush.msra.mxu0 %v50
  %148 = vmatpush.msra.mxu0 %v46
  %149 = vmatpush.msra.mxu0 %v42
  %150 = vmatpush.msra.mxu0 %v38
  %151 = vmatpush.msra.mxu0 %v34
  %152 = vmatpush.msra.mxu0 %v30
  %153 = vmatpush.msra.mxu0 %v26
  %154 = vmatmul.f32.gmra.mxu0 %v23
  %v155 = vpop.f32.mrf.mxu0
  %v156 = vadd.f32 %v92, %v155
  %157 = vdwg.mxu0
  %158 = vmatpush.msra.mxu0 %v87
  %159 = vmatpush.msra.mxu0 %v83
  %160 = vmatpush.msra.mxu0 %v79
  %161 = vmatpush.msra.mxu0 %v75
  %162 = vmatpush.msra.mxu0 %v71
  %163 = vmatpush.msra.mxu0 %v67
  %164 = vmatpush.msra.mxu0 %v63
  %165 = vmatpush.msra.mxu0 %v59
  %166 = vmatpush.msra.mxu0 %v55
  %167 = vmatpush.msra.mxu0 %v51
  %168 = vmatpush.msra.mxu0 %v47
  %169 = vmatpush.msra.mxu0 %v43
  %170 = vmatpush.msra.mxu0 %v39
  %171 = vmatpush.msra.mxu0 %v35
  %172 = vmatpush.msra.mxu0 %v31
  %173 = vmatpush.msra.mxu0 %v27
  %174 = vmatmul.f32.gmra.mxu0 %v23
  %v175 = vpop.f32.mrf.mxu0
  %v176 = vadd.f32 %v93, %v175
  %177 = vdwg.mxu0
  %v178 = vperm.slane %v116, 0
  %v179 = vperm.slane %v136, 0
  %v180 = vperm.slane %v156, 0
  %v181 = vperm.slane %v176, 0
  %v182 = vld [vmem:[%s1] sm:$0xff]
  %v183 = vld [vmem:[%s2] sm:$0xff]
  %v184 = vld [vmem:[%s4] sm:$0xff]
  %v185 = vld [vmem:[%s4 + $0x8] sm:$0xff]
  %v186 = vld [vmem:[%s4 + $0x10] sm:$0xff]
  %v187 = vld [vmem:[%s4 + $0x18] sm:$0xff]
  %v188 = vld [vmem:[%s4 + $0x20] sm:$0xff]
  %v189 = vld [vmem:[%s4 + $0x28] sm:$0xff]
  %v190 = vld [vmem:[%s4 + $0x30] sm:$0xff]
  %v191 = vld [vmem:[%s4 + $0x38] sm:$0xff]
  %v192 = vld [vmem:[%s4 + $0x40] sm:$0xff]
  %v193 = vld [vmem:[%s4 + $0x48] sm:$0xff]
  %v194 = vld [vmem:[%s4 + $0x50] sm:$0xff]
  %v195 = vld [vmem:[%s4 + $0x58] sm:$0xff]
  %v196 = vld [vmem:[%s4 + $0x60] sm:$0xff]
  %v197 = vld [vmem:[%s4 + $0x68] sm:$0xff]
  %v198 = vld [vmem:[%s4 + $0x70] sm:$0xff]
  %v199 = vld [vmem:[%s4 + $0x78] sm:$0xff]
  %v200 = vld [vmem:[%s4 + $0x80] sm:$0xff]
  %v201 = vld [vmem:[%s4 + $0x88] sm:$0xff]
  %v202 = vld [vmem:[%s4 + $0x90] sm:$0xff]
  %v203 = vld [vmem:[%s4 + $0x98] sm:$0xff]
  %v204 = vld [vmem:[%s4 + $0xa0] sm:$0xff]
  %v205 = vld [vmem:[%s4 + $0xa8] sm:$0xff]
  %v206 = vld [vmem:[%s4 + $0xb0] sm:$0xff]
  %v207 = vld [vmem:[%s4 + $0xb8] sm:$0xff]
  %v208 = vld [vmem:[%s4 + $0xc0] sm:$0xff]
  %v209 = vld [vmem:[%s4 + $0xc8] sm:$0xff]
  %v210 = vld [vmem:[%s4 + $0xd0] sm:$0xff]
  %v211 = vld [vmem:[%s4 + $0xd8] sm:$0xff]
  %v212 = vld [vmem:[%s4 + $0xe0] sm:$0xff]
  %v213 = vld [vmem:[%s4 + $0xe8] sm:$0xff]
  %v214 = vld [vmem:[%s4 + $0xf0] sm:$0xff]
  %v215 = vld [vmem:[%s4 + $0xf8] sm:$0xff]
  %v216 = vld [vmem:[%s4 + $0x100] sm:$0xff]
  %v217 = vld [vmem:[%s4 + $0x108] sm:$0xff]
  %v218 = vld [vmem:[%s4 + $0x110] sm:$0xff]
  %v219 = vld [vmem:[%s4 + $0x118] sm:$0xff]
  %v220 = vld [vmem:[%s4 + $0x120] sm:$0xff]
  %v221 = vld [vmem:[%s4 + $0x128] sm:$0xff]
  %v222 = vld [vmem:[%s4 + $0x130] sm:$0xff]
  %v223 = vld [vmem:[%s4 + $0x138] sm:$0xff]
  %v224 = vld [vmem:[%s4 + $0x140] sm:$0xff]
  %v225 = vld [vmem:[%s4 + $0x148] sm:$0xff]
  %v226 = vld [vmem:[%s4 + $0x150] sm:$0xff]
  %v227 = vld [vmem:[%s4 + $0x158] sm:$0xff]
  %v228 = vld [vmem:[%s4 + $0x160] sm:$0xff]
  %v229 = vld [vmem:[%s4 + $0x168] sm:$0xff]
  %v230 = vld [vmem:[%s4 + $0x170] sm:$0xff]
  %v231 = vld [vmem:[%s4 + $0x178] sm:$0xff]
  %v232 = vld [vmem:[%s4 + $0x180] sm:$0xff]
  %v233 = vld [vmem:[%s4 + $0x188] sm:$0xff]
  %v234 = vld [vmem:[%s4 + $0x190] sm:$0xff]
  %v235 = vld [vmem:[%s4 + $0x198] sm:$0xff]
  %v236 = vld [vmem:[%s4 + $0x1a0] sm:$0xff]
  %v237 = vld [vmem:[%s4 + $0x1a8] sm:$0xff]
  %v238 = vld [vmem:[%s4 + $0x1b0] sm:$0xff]
  %v239 = vld [vmem:[%s4 + $0x1b8] sm:$0xff]
  %v240 = vld [vmem:[%s4 + $0x1c0] sm:$0xff]
  %v241 = vld [vmem:[%s4 + $0x1c8] sm:$0xff]
  %v242 = vld [vmem:[%s4 + $0x1d0] sm:$0xff]
  %v243 = vld [vmem:[%s4 + $0x1d8] sm:$0xff]
  %v244 = vld [vmem:[%s4 + $0x1e0] sm:$0xff]
  %v245 = vld [vmem:[%s4 + $0x1e8] sm:$0xff]
  %v246 = vld [vmem:[%s4 + $0x1f0] sm:$0xff]
  %v247 = vld [vmem:[%s4 + $0x1f8] sm:$0xff]
  %248 = vmatpush.msra.mxu0 %v244
  %249 = vmatpush.msra.mxu0 %v240
  %250 = vmatpush.msra.mxu0 %v236
  %251 = vmatpush.msra.mxu0 %v232
  %252 = vmatpush.msra.mxu0 %v228
  %253 = vmatpush.msra.mxu0 %v224
  %254 = vmatpush.msra.mxu0 %v220
  %255 = vmatpush.msra.mxu0 %v216
  %256 = vmatpush.msra.mxu0 %v212
  %257 = vmatpush.msra.mxu0 %v208
  %258 = vmatpush.msra.mxu0 %v204
  %259 = vmatpush.msra.mxu0 %v200
  %260 = vmatpush.msra.mxu0 %v196
  %261 = vmatpush.msra.mxu0 %v192
  %262 = vmatpush.msra.mxu0 %v188
  %263 = vmatpush.msra.mxu0 %v184
  %264 = vmatmul.f32.gmra.mxu0 %v182
  %v265 = vpop.f32.mrf.mxu0
  %v266 = vadd.f32 0.0, %v265
  %267 = vdwg.mxu0
  %268 = vmatpush.msra.mxu0 %v245
  %269 = vmatpush.msra.mxu0 %v241
  %270 = vmatpush.msra.mxu0 %v237
  %271 = vmatpush.msra.mxu0 %v233
  %272 = vmatpush.msra.mxu0 %v229
  %273 = vmatpush.msra.mxu0 %v225
  %274 = vmatpush.msra.mxu0 %v221
  %275 = vmatpush.msra.mxu0 %v217
  %276 = vmatpush.msra.mxu0 %v213
  %277 = vmatpush.msra.mxu0 %v209
  %278 = vmatpush.msra.mxu0 %v205
  %279 = vmatpush.msra.mxu0 %v201
  %280 = vmatpush.msra.mxu0 %v197
  %281 = vmatpush.msra.mxu0 %v193
  %282 = vmatpush.msra.mxu0 %v189
  %283 = vmatpush.msra.mxu0 %v185
  %284 = vmatmul.f32.gmra.mxu0 %v182
  %v285 = vpop.f32.mrf.mxu0
  %v286 = vadd.f32 0.0, %v285
  %287 = vdwg.mxu0
  %288 = vmatpush.msra.mxu0 %v246
  %289 = vmatpush.msra.mxu0 %v242
  %290 = vmatpush.msra.mxu0 %v238
  %291 = vmatpush.msra.mxu0 %v234
  %292 = vmatpush.msra.mxu0 %v230
  %293 = vmatpush.msra.mxu0 %v226
  %294 = vmatpush.msra.mxu0 %v222
  %295 = vmatpush.msra.mxu0 %v218
  %296 = vmatpush.msra.mxu0 %v214
  %297 = vmatpush.msra.mxu0 %v210
  %298 = vmatpush.msra.mxu0 %v206
  %299 = vmatpush.msra.mxu0 %v202
  %300 = vmatpush.msra.mxu0 %v198
  %301 = vmatpush.msra.mxu0 %v194
  %302 = vmatpush.msra.mxu0 %v190
  %303 = vmatpush.msra.mxu0 %v186
  %304 = vmatmul.f32.gmra.mxu0 %v182
  %v305 = vpop.f32.mrf.mxu0
  %v306 = vadd.f32 0.0, %v305
  %307 = vdwg.mxu0
  %308 = vmatpush.msra.mxu0 %v247
  %309 = vmatpush.msra.mxu0 %v243
  %310 = vmatpush.msra.mxu0 %v239
  %311 = vmatpush.msra.mxu0 %v235
  %312 = vmatpush.msra.mxu0 %v231
  %313 = vmatpush.msra.mxu0 %v227
  %314 = vmatpush.msra.mxu0 %v223
  %315 = vmatpush.msra.mxu0 %v219
  %316 = vmatpush.msra.mxu0 %v215
  %317 = vmatpush.msra.mxu0 %v211
  %318 = vmatpush.msra.mxu0 %v207
  %319 = vmatpush.msra.mxu0 %v203
  %320 = vmatpush.msra.mxu0 %v199
  %321 = vmatpush.msra.mxu0 %v195
  %322 = vmatpush.msra.mxu0 %v191
  %323 = vmatpush.msra.mxu0 %v187
  %324 = vmatmul.f32.gmra.mxu0 %v182
  %v325 = vpop.f32.mrf.mxu0
  %v326 = vadd.f32 0.0, %v325
  %327 = vdwg.mxu0
  %v328 = vadd.f32 %v178, %v266
  %v329 = vadd.f32 %v179, %v286
  %v330 = vadd.f32 %v180, %v306
  %v331 = vadd.f32 %v181, %v326
  %v332 = vxor.u32 %v328, 2147483648
  %v333 = vmul.f32 %v332, 1.442695
  %v334 = vpow.pop %v333
  %v335 = vadd.f32 %v334, 1.0
  %v336 = vrcp.pop %v335
  %v337 = vmul.f32 %v335, %v336
  %v338 = vsub.f32 1.0, %v337
  %v339 = vmul.f32 %v336, %v338
  %v340 = vadd.f32 %v336, %v339
  %vm341 = vweird.f32 %v335
  %vm342 = vweird.f32 %v336
  %vm343 = vmor %vm341, %vm342
  %v344 = vsel %vm343, %v336, %v340
  %v345 = vand.u32 2147483647, %v335
  %vm346 = vcmp.eq.f32.partialorder %v345, 8.507059e+37
  %v347 = vand.u32 %v335, 2147483648
  %v348 = vor.u32 1.1754944e-38, %v347
  %v349 = vsel %vm346, %v348, %v344
  %v350 = vmul.f32 1.0, %v349
  %v351 = vxor.u32 %v329, 2147483648
  %v352 = vmul.f32 %v351, 1.442695
  %v353 = vpow.pop %v352
  %v354 = vadd.f32 %v353, 1.0
  %v355 = vrcp.pop %v354
  %v356 = vmul.f32 %v354, %v355
  %v357 = vsub.f32 1.0, %v356
  %v358 = vmul.f32 %v355, %v357
  %v359 = vadd.f32 %v355, %v358
  %vm360 = vweird.f32 %v354
  %vm361 = vweird.f32 %v355
  %vm362 = vmor %vm360, %vm361
  %v363 = vsel %vm362, %v355, %v359
  %v364 = vand.u32 2147483647, %v354
  %vm365 = vcmp.eq.f32.partialorder %v364, 8.507059e+37
  %v366 = vand.u32 %v354, 2147483648
  %v367 = vor.u32 1.1754944e-38, %v366
  %v368 = vsel %vm365, %v367, %v363
  %v369 = vmul.f32 1.0, %v368
  %v370 = vtanh.pop %v330
  %v371 = vxor.u32 %v331, 2147483648
  %v372 = vmul.f32 %v371, 1.442695
  %v373 = vpow.pop %v372
  %v374 = vadd.f32 %v373, 1.0
  %v375 = vrcp.pop %v374
  %v376 = vmul.f32 %v374, %v375
  %v377 = vsub.f32 1.0, %v376
  %v378 = vmul.f32 %v375, %v377
  %v379 = vadd.f32 %v375, %v378
  %vm380 = vweird.f32 %v374
  %vm381 = vweird.f32 %v375
  %vm382 = vmor %vm380, %vm381
  %v383 = vsel %vm382, %v375, %v379
  %v384 = vand.u32 2147483647, %v374
  %vm385 = vcmp.eq.f32.partialorder %v384, 8.507059e+37
  %v386 = vand.u32 %v374, 2147483648
  %v387 = vor.u32 1.1754944e-38, %v386
  %v388 = vsel %vm385, %v387, %v383
  %v389 = vmul.f32 1.0, %v388
  %v390 = vmul.f32 %v369, %v183
  %v391 = vmul.f32 %v350, %v370
  %v392 = vadd.f32 %v390, %v391
  %v393 = vtanh.pop %v392
  %v394 = vmul.f32 %v389, %v393
  %395 = vst [vmem:[%s6] sm:$0xff] %v394
  %v396 = vld [vmem:[%s4] sm:$0xff]
  %v397 = vld [vmem:[%s4 + $0x8] sm:$0xff]
  %v398 = vld [vmem:[%s4 + $0x10] sm:$0xff]
  %v399 = vld [vmem:[%s4 + $0x18] sm:$0xff]
  %v400 = vld [vmem:[%s4 + $0x20] sm:$0xff]
  %v401 = vld [vmem:[%s4 + $0x28] sm:$0xff]
  %v402 = vld [vmem:[%s4 + $0x30] sm:$0xff]
  %v403 = vld [vmem:[%s4 + $0x38] sm:$0xff]
  %v404 = vld [vmem:[%s4 + $0x40] sm:$0xff]
  %v405 = vld [vmem:[%s4 + $0x48] sm:$0xff]
  %v406 = vld [vmem:[%s4 + $0x50] sm:$0xff]
  %v407 = vld [vmem:[%s4 + $0x58] sm:$0xff]
  %v408 = vld [vmem:[%s4 + $0x60] sm:$0xff]
  %v409 = vld [vmem:[%s4 + $0x68] sm:$0xff]
  %v410 = vld [vmem:[%s4 + $0x70] sm:$0xff]
  %v411 = vld [vmem:[%s4 + $0x78] sm:$0xff]
  %v412 = vld [vmem:[%s4 + $0x80] sm:$0xff]
  %v413 = vld [vmem:[%s4 + $0x88] sm:$0xff]
  %v414 = vld [vmem:[%s4 + $0x90] sm:$0xff]
  %v415 = vld [vmem:[%s4 + $0x98] sm:$0xff]
  %v416 = vld [vmem:[%s4 + $0xa0] sm:$0xff]
  %v417 = vld [vmem:[%s4 + $0xa8] sm:$0xff]
  %v418 = vld [vmem:[%s4 + $0xb0] sm:$0xff]
  %v419 = vld [vmem:[%s4 + $0xb8] sm:$0xff]
  %v420 = vld [vmem:[%s4 + $0xc0] sm:$0xff]
  %v421 = vld [vmem:[%s4 + $0xc8] sm:$0xff]
  %v422 = vld [vmem:[%s4 + $0xd0] sm:$0xff]
  %v423 = vld [vmem:[%s4 + $0xd8] sm:$0xff]
  %v424 = vld [vmem:[%s4 + $0xe0] sm:$0xff]
  %v425 = vld [vmem:[%s4 + $0xe8] sm:$0xff]
  %v426 = vld [vmem:[%s4 + $0xf0] sm:$0xff]
  %v427 = vld [vmem:[%s4 + $0xf8] sm:$0xff]
  %v428 = vld [vmem:[%s4 + $0x100] sm:$0xff]
  %v429 = vld [vmem:[%s4 + $0x108] sm:$0xff]
  %v430 = vld [vmem:[%s4 + $0x110] sm:$0xff]
  %v431 = vld [vmem:[%s4 + $0x118] sm:$0xff]
  %v432 = vld [vmem:[%s4 + $0x120] sm:$0xff]
  %v433 = vld [vmem:[%s4 + $0x128] sm:$0xff]
  %v434 = vld [vmem:[%s4 + $0x130] sm:$0xff]
  %v435 = vld [vmem:[%s4 + $0x138] sm:$0xff]
  %v436 = vld [vmem:[%s4 + $0x140] sm:$0xff]
  %v437 = vld [vmem:[%s4 + $0x148] sm:$0xff]
  %v438 = vld [vmem:[%s4 + $0x150] sm:$0xff]
  %v439 = vld [vmem:[%s4 + $0x158] sm:$0xff]
  %v440 = vld [vmem:[%s4 + $0x160] sm:$0xff]
  %v441 = vld [vmem:[%s4 + $0x168] sm:$0xff]
  %v442 = vld [vmem:[%s4 + $0x170] sm:$0xff]
  %v443 = vld [vmem:[%s4 + $0x178] sm:$0xff]
  %v444 = vld [vmem:[%s4 + $0x180] sm:$0xff]
  %v445 = vld [vmem:[%s4 + $0x188] sm:$0xff]
  %v446 = vld [vmem:[%s4 + $0x190] sm:$0xff]
  %v447 = vld [vmem:[%s4 + $0x198] sm:$0xff]
  %v448 = vld [vmem:[%s4 + $0x1a0] sm:$0xff]
  %v449 = vld [vmem:[%s4 + $0x1a8] sm:$0xff]
  %v450 = vld [vmem:[%s4 + $0x1b0] sm:$0xff]
  %v451 = vld [vmem:[%s4 + $0x1b8] sm:$0xff]
  %v452 = vld [vmem:[%s4 + $0x1c0] sm:$0xff]
  %v453 = vld [vmem:[%s4 + $0x1c8] sm:$0xff]
  %v454 = vld [vmem:[%s4 + $0x1d0] sm:$0xff]
  %v455 = vld [vmem:[%s4 + $0x1d8] sm:$0xff]
  %v456 = vld [vmem:[%s4 + $0x1e0] sm:$0xff]
  %v457 = vld [vmem:[%s4 + $0x1e8] sm:$0xff]
  %v458 = vld [vmem:[%s4 + $0x1f0] sm:$0xff]
  %v459 = vld [vmem:[%s4 + $0x1f8] sm:$0xff]
  %460 = vmatpush.msra.mxu0 %v456
  %461 = vmatpush.msra.mxu0 %v452
  %462 = vmatpush.msra.mxu0 %v448
  %463 = vmatpush.msra.mxu0 %v444
  %464 = vmatpush.msra.mxu0 %v440
  %465 = vmatpush.msra.mxu0 %v436
  %466 = vmatpush.msra.mxu0 %v432
  %467 = vmatpush.msra.mxu0 %v428
  %468 = vmatpush.msra.mxu0 %v424
  %469 = vmatpush.msra.mxu0 %v420
  %470 = vmatpush.msra.mxu0 %v416
  %471 = vmatpush.msra.mxu0 %v412
  %472 = vmatpush.msra.mxu0 %v408
  %473 = vmatpush.msra.mxu0 %v404
  %474 = vmatpush.msra.mxu0 %v400
  %475 = vmatpush.msra.mxu0 %v396
  %476 = vmatmul.f32.gmra.mxu0 %v394
  %v477 = vpop.f32.mrf.mxu0
  %v478 = vadd.f32 0.0, %v477
  %479 = vdwg.mxu0
  %480 = vmatpush.msra.mxu0 %v457
  %481 = vmatpush.msra.mxu0 %v453
  %482 = vmatpush.msra.mxu0 %v449
  %483 = vmatpush.msra.mxu0 %v445
  %484 = vmatpush.msra.mxu0 %v441
  %485 = vmatpush.msra.mxu0 %v437
  %486 = vmatpush.msra.mxu0 %v433
  %487 = vmatpush.msra.mxu0 %v429
  %488 = vmatpush.msra.mxu0 %v425
  %489 = vmatpush.msra.mxu0 %v421
  %490 = vmatpush.msra.mxu0 %v417
  %491 = vmatpush.msra.mxu0 %v413
  %492 = vmatpush.msra.mxu0 %v409
  %493 = vmatpush.msra.mxu0 %v405
  %494 = vmatpush.msra.mxu0 %v401
  %495 = vmatpush.msra.mxu0 %v397
  %496 = vmatmul.f32.gmra.mxu0 %v394
  %v497 = vpop.f32.mrf.mxu0
  %v498 = vadd.f32 0.0, %v497
  %499 = vdwg.mxu0
  %500 = vmatpush.msra.mxu0 %v458
  %501 = vmatpush.msra.mxu0 %v454
  %502 = vmatpush.msra.mxu0 %v450
  %503 = vmatpush.msra.mxu0 %v446
  %504 = vmatpush.msra.mxu0 %v442
  %505 = vmatpush.msra.mxu0 %v438
  %506 = vmatpush.msra.mxu0 %v434
  %507 = vmatpush.msra.mxu0 %v430
  %508 = vmatpush.msra.mxu0 %v426
  %509 = vmatpush.msra.mxu0 %v422
  %510 = vmatpush.msra.mxu0 %v418
  %511 = vmatpush.msra.mxu0 %v414
  %512 = vmatpush.msra.mxu0 %v410
  %513 = vmatpush.msra.mxu0 %v406
  %514 = vmatpush.msra.mxu0 %v402
  %515 = vmatpush.msra.mxu0 %v398
  %516 = vmatmul.f32.gmra.mxu0 %v394
  %v517 = vpop.f32.mrf.mxu0
  %v518 = vadd.f32 0.0, %v517
  %519 = vdwg.mxu0
  %520 = vmatpush.msra.mxu0 %v459
  %521 = vmatpush.msra.mxu0 %v455
  %522 = vmatpush.msra.mxu0 %v451
  %523 = vmatpush.msra.mxu0 %v447
  %524 = vmatpush.msra.mxu0 %v443
  %525 = vmatpush.msra.mxu0 %v439
  %526 = vmatpush.msra.mxu0 %v435
  %527 = vmatpush.msra.mxu0 %v431
  %528 = vmatpush.msra.mxu0 %v427
  %529 = vmatpush.msra.mxu0 %v423
  %530 = vmatpush.msra.mxu0 %v419
  %531 = vmatpush.msra.mxu0 %v415
  %532 = vmatpush.msra.mxu0 %v411
  %533 = vmatpush.msra.mxu0 %v407
  %534 = vmatpush.msra.mxu0 %v403
  %535 = vmatpush.msra.mxu0 %v399
  %536 = vmatmul.f32.gmra.mxu0 %v394
  %v537 = vpop.f32.mrf.mxu0
  %v538 = vadd.f32 0.0, %v537
  %539 = vdwg.mxu0
  %v540 = vadd.f32 %v178, %v478
  %v541 = vadd.f32 %v179, %v498
  %v542 = vadd.f32 %v180, %v518
  %v543 = vadd.f32 %v181, %v538
  %v544 = vxor.u32 %v540, 2147483648
  %v545 = vmul.f32 %v544, 1.442695
  %v546 = vpow.pop %v545
  %v547 = vadd.f32 %v546, 1.0
  %v548 = vrcp.pop %v547
  %v549 = vmul.f32 %v547, %v548
  %v550 = vsub.f32 1.0, %v549
  %v551 = vmul.f32 %v548, %v550
  %v552 = vadd.f32 %v548, %v551
  %vm553 = vweird.f32 %v547
  %vm554 = vweird.f32 %v548
  %vm555 = vmor %vm553, %vm554
  %v556 = vsel %vm555, %v548, %v552
  %v557 = vand.u32 2147483647, %v547
  %vm558 = vcmp.eq.f32.partialorder %v557, 8.507059e+37
  %v559 = vand.u32 %v547, 2147483648
  %v560 = vor.u32 1.1754944e-38, %v559
  %v561 = vsel %vm558, %v560, %v556
  %v562 = vmul.f32 1.0, %v561
  %v563 = vxor.u32 %v541, 2147483648
  %v564 = vmul.f32 %v563, 1.442695
  %v565 = vpow.pop %v564
  %v566 = vadd.f32 %v565, 1.0
  %v567 = vrcp.pop %v566
  %v568 = vmul.f32 %v566, %v567
  %v569 = vsub.f32 1.0, %v568
  %v570 = vmul.f32 %v567, %v569
  %v571 = vadd.f32 %v567, %v570
  %vm572 = vweird.f32 %v566
  %vm573 = vweird.f32 %v567
  %vm574 = vmor %vm572, %vm573
  %v575 = vsel %vm574, %v567, %v571
  %v576 = vand.u32 2147483647, %v566
  %vm577 = vcmp.eq.f32.partialorder %v576, 8.507059e+37
  %v578 = vand.u32 %v566, 2147483648
  %v579 = vor.u32 1.1754944e-38, %v578
  %v580 = vsel %vm577, %v579, %v575
  %v581 = vmul.f32 1.0, %v580
  %v582 = vtanh.pop %v542
  %v583 = vxor.u32 %v543, 2147483648
  %v584 = vmul.f32 %v583, 1.442695
  %v585 = vpow.pop %v584
  %v586 = vadd.f32 %v585, 1.0
  %v587 = vrcp.pop %v586
  %v588 = vmul.f32 %v586, %v587
  %v589 = vsub.f32 1.0, %v588
  %v590 = vmul.f32 %v587, %v589
  %v591 = vadd.f32 %v587, %v590
  %vm592 = vweird.f32 %v586
  %vm593 = vweird.f32 %v587
  %vm594 = vmor %vm592, %vm593
  %v595 = vsel %vm594, %v587, %v591
  %v596 = vand.u32 2147483647, %v586
  %vm597 = vcmp.eq.f32.partialorder %v596, 8.507059e+37
  %v598 = vand.u32 %v586, 2147483648
  %v599 = vor.u32 1.1754944e-38, %v598
  %v600 = vsel %vm597, %v599, %v595
  %v601 = vmul.f32 1.0, %v600
  %v602 = vmul.f32 %v581, %v392
  %v603 = vmul.f32 %v562, %v582
  %v604 = vadd.f32 %v602, %v603
  %v605 = vtanh.pop %v604
  %v606 = vmul.f32 %v601, %v605
  %s607 = scalar_lea.vmem %s6, 8
  %608 = vst [vmem:[%s607] sm:$0xff] %v606
  %v609 = vld [vmem:[%s4] sm:$0xff]
  %v610 = vld [vmem:[%s4 + $0x8] sm:$0xff]
  %v611 = vld [vmem:[%s4 + $0x10] sm:$0xff]
  %v612 = vld [vmem:[%s4 + $0x18] sm:$0xff]
  %v613 = vld [vmem:[%s4 + $0x20] sm:$0xff]
  %v614 = vld [vmem:[%s4 + $0x28] sm:$0xff]
  %v615 = vld [vmem:[%s4 + $0x30] sm:$0xff]
  %v616 = vld [vmem:[%s4 + $0x38] sm:$0xff]
  %v617 = vld [vmem:[%s4 + $0x40] sm:$0xff]
  %v618 = vld [vmem:[%s4 + $0x48] sm:$0xff]
  %v619 = vld [vmem:[%s4 + $0x50] sm:$0xff]
  %v620 = vld [vmem:[%s4 + $0x58] sm:$0xff]
  %v621 = vld [vmem:[%s4 + $0x60] sm:$0xff]
  %v622 = vld [vmem:[%s4 + $0x68] sm:$0xff]
  %v623 = vld [vmem:[%s4 + $0x70] sm:$0xff]
  %v624 = vld [vmem:[%s4 + $0x78] sm:$0xff]
  %v625 = vld [vmem:[%s4 + $0x80] sm:$0xff]
  %v626 = vld [vmem:[%s4 + $0x88] sm:$0xff]
  %v627 = vld [vmem:[%s4 + $0x90] sm:$0xff]
  %v628 = vld [vmem:[%s4 + $0x98] sm:$0xff]
  %v629 = vld [vmem:[%s4 + $0xa0] sm:$0xff]
  %v630 = vld [vmem:[%s4 + $0xa8] sm:$0xff]
  %v631 = vld [vmem:[%s4 + $0xb0] sm:$0xff]
  %v632 = vld [vmem:[%s4 + $0xb8] sm:$0xff]
  %v633 = vld [vmem:[%s4 + $0xc0] sm:$0xff]
  %v634 = vld [vmem:[%s4 + $0xc8] sm:$0xff]
  %v635 = vld [vmem:[%s4 + $0xd0] sm:$0xff]
  %v636 = vld [vmem:[%s4 + $0xd8] sm:$0xff]
  %v637 = vld [vmem:[%s4 + $0xe0] sm:$0xff]
  %v638 = vld [vmem:[%s4 + $0xe8] sm:$0xff]
  %v639 = vld [vmem:[%s4 + $0xf0] sm:$0xff]
  %v640 = vld [vmem:[%s4 + $0xf8] sm:$0xff]
  %v641 = vld [vmem:[%s4 + $0x100] sm:$0xff]
  %v642 = vld [vmem:[%s4 + $0x108] sm:$0xff]
  %v643 = vld [vmem:[%s4 + $0x110] sm:$0xff]
  %v644 = vld [vmem:[%s4 + $0x118] sm:$0xff]
  %v645 = vld [vmem:[%s4 + $0x120] sm:$0xff]
  %v646 = vld [vmem:[%s4 + $0x128] sm:$0xff]
  %v647 = vld [vmem:[%s4 + $0x130] sm:$0xff]
  %v648 = vld [vmem:[%s4 + $0x138] sm:$0xff]
  %v649 = vld [vmem:[%s4 + $0x140] sm:$0xff]
  %v650 = vld [vmem:[%s4 + $0x148] sm:$0xff]
  %v651 = vld [vmem:[%s4 + $0x150] sm:$0xff]
  %v652 = vld [vmem:[%s4 + $0x158] sm:$0xff]
  %v653 = vld [vmem:[%s4 + $0x160] sm:$0xff]
  %v654 = vld [vmem:[%s4 + $0x168] sm:$0xff]
  %v655 = vld [vmem:[%s4 + $0x170] sm:$0xff]
  %v656 = vld [vmem:[%s4 + $0x178] sm:$0xff]
  %v657 = vld [vmem:[%s4 + $0x180] sm:$0xff]
  %v658 = vld [vmem:[%s4 + $0x188] sm:$0xff]
  %v659 = vld [vmem:[%s4 + $0x190] sm:$0xff]
  %v660 = vld [vmem:[%s4 + $0x198] sm:$0xff]
  %v661 = vld [vmem:[%s4 + $0x1a0] sm:$0xff]
  %v662 = vld [vmem:[%s4 + $0x1a8] sm:$0xff]
  %v663 = vld [vmem:[%s4 + $0x1b0] sm:$0xff]
  %v664 = vld [vmem:[%s4 + $0x1b8] sm:$0xff]
  %v665 = vld [vmem:[%s4 + $0x1c0] sm:$0xff]
  %v666 = vld [vmem:[%s4 + $0x1c8] sm:$0xff]
  %v667 = vld [vmem:[%s4 + $0x1d0] sm:$0xff]
  %v668 = vld [vmem:[%s4 + $0x1d8] sm:$0xff]
  %v669 = vld [vmem:[%s4 + $0x1e0] sm:$0xff]
  %v670 = vld [vmem:[%s4 + $0x1e8] sm:$0xff]
  %v671 = vld [vmem:[%s4 + $0x1f0] sm:$0xff]
  %v672 = vld [vmem:[%s4 + $0x1f8] sm:$0xff]
  %673 = vmatpush.msra.mxu0 %v669
  %674 = vmatpush.msra.mxu0 %v665
  %675 = vmatpush.msra.mxu0 %v661
  %676 = vmatpush.msra.mxu0 %v657
  %677 = vmatpush.msra.mxu0 %v653
  %678 = vmatpush.msra.mxu0 %v649
  %679 = vmatpush.msra.mxu0 %v645
  %680 = vmatpush.msra.mxu0 %v641
  %681 = vmatpush.msra.mxu0 %v637
  %682 = vmatpush.msra.mxu0 %v633
  %683 = vmatpush.msra.mxu0 %v629
  %684 = vmatpush.msra.mxu0 %v625
  %685 = vmatpush.msra.mxu0 %v621
  %686 = vmatpush.msra.mxu0 %v617
  %687 = vmatpush.msra.mxu0 %v613
  %688 = vmatpush.msra.mxu0 %v609
  %689 = vmatmul.f32.gmra.mxu0 %v606
  %v690 = vpop.f32.mrf.mxu0
  %v691 = vadd.f32 0.0, %v690
  %692 = vdwg.mxu0
  %693 = vmatpush.msra.mxu0 %v670
  %694 = vmatpush.msra.mxu0 %v666
  %695 = vmatpush.msra.mxu0 %v662
  %696 = vmatpush.msra.mxu0 %v658
  %697 = vmatpush.msra.mxu0 %v654
  %698 = vmatpush.msra.mxu0 %v650
  %699 = vmatpush.msra.mxu0 %v646
  %700 = vmatpush.msra.mxu0 %v642
  %701 = vmatpush.msra.mxu0 %v638
  %702 = vmatpush.msra.mxu0 %v634
  %703 = vmatpush.msra.mxu0 %v630
  %704 = vmatpush.msra.mxu0 %v626
  %705 = vmatpush.msra.mxu0 %v622
  %706 = vmatpush.msra.mxu0 %v618
  %707 = vmatpush.msra.mxu0 %v614
  %708 = vmatpush.msra.mxu0 %v610
  %709 = vmatmul.f32.gmra.mxu0 %v606
  %v710 = vpop.f32.mrf.mxu0
  %v711 = vadd.f32 0.0, %v710
  %712 = vdwg.mxu0
  %713 = vmatpush.msra.mxu0 %v671
  %714 = vmatpush.msra.mxu0 %v667
  %715 = vmatpush.msra.mxu0 %v663
  %716 = vmatpush.msra.mxu0 %v659
  %717 = vmatpush.msra.mxu0 %v655
  %718 = vmatpush.msra.mxu0 %v651
  %719 = vmatpush.msra.mxu0 %v647
  %720 = vmatpush.msra.mxu0 %v643
  %721 = vmatpush.msra.mxu0 %v639
  %722 = vmatpush.msra.mxu0 %v635
  %723 = vmatpush.msra.mxu0 %v631
  %724 = vmatpush.msra.mxu0 %v627
  %725 = vmatpush.msra.mxu0 %v623
  %726 = vmatpush.msra.mxu0 %v619
  %727 = vmatpush.msra.mxu0 %v615
  %728 = vmatpush.msra.mxu0 %v611
  %729 = vmatmul.f32.gmra.mxu0 %v606
  %v730 = vpop.f32.mrf.mxu0
  %v731 = vadd.f32 0.0, %v730
  %732 = vdwg.mxu0
  %733 = vmatpush.msra.mxu0 %v672
  %734 = vmatpush.msra.mxu0 %v668
  %735 = vmatpush.msra.mxu0 %v664
  %736 = vmatpush.msra.mxu0 %v660
  %737 = vmatpush.msra.mxu0 %v656
  %738 = vmatpush.msra.mxu0 %v652
  %739 = vmatpush.msra.mxu0 %v648
  %740 = vmatpush.msra.mxu0 %v644
  %741 = vmatpush.msra.mxu0 %v640
  %742 = vmatpush.msra.mxu0 %v636
  %743 = vmatpush.msra.mxu0 %v632
  %744 = vmatpush.msra.mxu0 %v628
  %745 = vmatpush.msra.mxu0 %v624
  %746 = vmatpush.msra.mxu0 %v620
  %747 = vmatpush.msra.mxu0 %v616
  %748 = vmatpush.msra.mxu0 %v612
  %749 = vmatmul.f32.gmra.mxu0 %v606
  %v750 = vpop.f32.mrf.mxu0
  %v751 = vadd.f32 0.0, %v750
  %752 = vdwg.mxu0
  %v753 = vadd.f32 %v178, %v691
  %v754 = vadd.f32 %v179, %v711
  %v755 = vadd.f32 %v180, %v731
  %v756 = vadd.f32 %v181, %v751
  %v757 = vxor.u32 %v753, 2147483648
  %v758 = vmul.f32 %v757, 1.442695
  %v759 = vpow.pop %v758
  %v760 = vadd.f32 %v759, 1.0
  %v761 = vrcp.pop %v760
  %v762 = vmul.f32 %v760, %v761
  %v763 = vsub.f32 1.0, %v762
  %v764 = vmul.f32 %v761, %v763
  %v765 = vadd.f32 %v761, %v764
  %vm766 = vweird.f32 %v760
  %vm767 = vweird.f32 %v761
  %vm768 = vmor %vm766, %vm767
  %v769 = vsel %vm768, %v761, %v765
  %v770 = vand.u32 2147483647, %v760
  %vm771 = vcmp.eq.f32.partialorder %v770, 8.507059e+37
  %v772 = vand.u32 %v760, 2147483648
  %v773 = vor.u32 1.1754944e-38, %v772
  %v774 = vsel %vm771, %v773, %v769
  %v775 = vmul.f32 1.0, %v774
  %v776 = vxor.u32 %v754, 2147483648
  %v777 = vmul.f32 %v776, 1.442695
  %v778 = vpow.pop %v777
  %v779 = vadd.f32 %v778, 1.0
  %v780 = vrcp.pop %v779
  %v781 = vmul.f32 %v779, %v780
  %v782 = vsub.f32 1.0, %v781
  %v783 = vmul.f32 %v780, %v782
  %v784 = vadd.f32 %v780, %v783
  %vm785 = vweird.f32 %v779
  %vm786 = vweird.f32 %v780
  %vm787 = vmor %vm785, %vm786
  %v788 = vsel %vm787, %v780, %v784
  %v789 = vand.u32 2147483647, %v779
  %vm790 = vcmp.eq.f32.partialorder %v789, 8.507059e+37
  %v791 = vand.u32 %v779, 2147483648
  %v792 = vor.u32 1.1754944e-38, %v791
  %v793 = vsel %vm790, %v792, %v788
  %v794 = vmul.f32 1.0, %v793
  %v795 = vtanh.pop %v755
  %v796 = vxor.u32 %v756, 2147483648
  %v797 = vmul.f32 %v796, 1.442695
  %v798 = vpow.pop %v797
  %v799 = vadd.f32 %v798, 1.0
  %v800 = vrcp.pop %v799
  %v801 = vmul.f32 %v799, %v800
  %v802 = vsub.f32 1.0, %v801
  %v803 = vmul.f32 %v800, %v802
  %v804 = vadd.f32 %v800, %v803
  %vm805 = vweird.f32 %v799
  %vm806 = vweird.f32 %v800
  %vm807 = vmor %vm805, %vm806
  %v808 = vsel %vm807, %v800, %v804
  %v809 = vand.u32 2147483647, %v799
  %vm810 = vcmp.eq.f32.partialorder %v809, 8.507059e+37
  %v811 = vand.u32 %v799, 2147483648
  %v812 = vor.u32 1.1754944e-38, %v811
  %v813 = vsel %vm810, %v812, %v808
  %v814 = vmul.f32 1.0, %v813
  %v815 = vmul.f32 %v794, %v604
  %v816 = vmul.f32 %v775, %v795
  %v817 = vadd.f32 %v815, %v816
  %v818 = vtanh.pop %v817
  %v819 = vmul.f32 %v814, %v818
  %s820 = scalar_lea.vmem %s6, 16
  %821 = vst [vmem:[%s820] sm:$0xff] %v819
  %v822 = vld [vmem:[%s4] sm:$0xff]
  %v823 = vld [vmem:[%s4 + $0x8] sm:$0xff]
  %v824 = vld [vmem:[%s4 + $0x10] sm:$0xff]
  %v825 = vld [vmem:[%s4 + $0x18] sm:$0xff]
  %v826 = vld [vmem:[%s4 + $0x20] sm:$0xff]
  %v827 = vld [vmem:[%s4 + $0x28] sm:$0xff]
  %v828 = vld [vmem:[%s4 + $0x30] sm:$0xff]
  %v829 = vld [vmem:[%s4 + $0x38] sm:$0xff]
  %v830 = vld [vmem:[%s4 + $0x40] sm:$0xff]
  %v831 = vld [vmem:[%s4 + $0x48] sm:$0xff]
  %v832 = vld [vmem:[%s4 + $0x50] sm:$0xff]
  %v833 = vld [vmem:[%s4 + $0x58] sm:$0xff]
  %v834 = vld [vmem:[%s4 + $0x60] sm:$0xff]
  %v835 = vld [vmem:[%s4 + $0x68] sm:$0xff]
  %v836 = vld [vmem:[%s4 + $0x70] sm:$0xff]
  %v837 = vld [vmem:[%s4 + $0x78] sm:$0xff]
  %v838 = vld [vmem:[%s4 + $0x80] sm:$0xff]
  %v839 = vld [vmem:[%s4 + $0x88] sm:$0xff]
  %v840 = vld [vmem:[%s4 + $0x90] sm:$0xff]
  %v841 = vld [vmem:[%s4 + $0x98] sm:$0xff]
  %v842 = vld [vmem:[%s4 + $0xa0] sm:$0xff]
  %v843 = vld [vmem:[%s4 + $0xa8] sm:$0xff]
  %v844 = vld [vmem:[%s4 + $0xb0] sm:$0xff]
  %v845 = vld [vmem:[%s4 + $0xb8] sm:$0xff]
  %v846 = vld [vmem:[%s4 + $0xc0] sm:$0xff]
  %v847 = vld [vmem:[%s4 + $0xc8] sm:$0xff]
  %v848 = vld [vmem:[%s4 + $0xd0] sm:$0xff]
  %v849 = vld [vmem:[%s4 + $0xd8] sm:$0xff]
  %v850 = vld [vmem:[%s4 + $0xe0] sm:$0xff]
  %v851 = vld [vmem:[%s4 + $0xe8] sm:$0xff]
  %v852 = vld [vmem:[%s4 + $0xf0] sm:$0xff]
  %v853 = vld [vmem:[%s4 + $0xf8] sm:$0xff]
  %v854 = vld [vmem:[%s4 + $0x100] sm:$0xff]
  %v855 = vld [vmem:[%s4 + $0x108] sm:$0xff]
  %v856 = vld [vmem:[%s4 + $0x110] sm:$0xff]
  %v857 = vld [vmem:[%s4 + $0x118] sm:$0xff]
  %v858 = vld [vmem:[%s4 + $0x120] sm:$0xff]
  %v859 = vld [vmem:[%s4 + $0x128] sm:$0xff]
  %v860 = vld [vmem:[%s4 + $0x130] sm:$0xff]
  %v861 = vld [vmem:[%s4 + $0x138] sm:$0xff]
  %v862 = vld [vmem:[%s4 + $0x140] sm:$0xff]
  %v863 = vld [vmem:[%s4 + $0x148] sm:$0xff]
  %v864 = vld [vmem:[%s4 + $0x150] sm:$0xff]
  %v865 = vld [vmem:[%s4 + $0x158] sm:$0xff]
  %v866 = vld [vmem:[%s4 + $0x160] sm:$0xff]
  %v867 = vld [vmem:[%s4 + $0x168] sm:$0xff]
  %v868 = vld [vmem:[%s4 + $0x170] sm:$0xff]
  %v869 = vld [vmem:[%s4 + $0x178] sm:$0xff]
  %v870 = vld [vmem:[%s4 + $0x180] sm:$0xff]
  %v871 = vld [vmem:[%s4 + $0x188] sm:$0xff]
  %v872 = vld [vmem:[%s4 + $0x190] sm:$0xff]
  %v873 = vld [vmem:[%s4 + $0x198] sm:$0xff]
  %v874 = vld [vmem:[%s4 + $0x1a0] sm:$0xff]
  %v875 = vld [vmem:[%s4 + $0x1a8] sm:$0xff]
  %v876 = vld [vmem:[%s4 + $0x1b0] sm:$0xff]
  %v877 = vld [vmem:[%s4 + $0x1b8] sm:$0xff]
  %v878 = vld [vmem:[%s4 + $0x1c0] sm:$0xff]
  %v879 = vld [vmem:[%s4 + $0x1c8] sm:$0xff]
  %v880 = vld [vmem:[%s4 + $0x1d0] sm:$0xff]
  %v881 = vld [vmem:[%s4 + $0x1d8] sm:$0xff]
  %v882 = vld [vmem:[%s4 + $0x1e0] sm:$0xff]
  %v883 = vld [vmem:[%s4 + $0x1e8] sm:$0xff]
  %v884 = vld [vmem:[%s4 + $0x1f0] sm:$0xff]
  %v885 = vld [vmem:[%s4 + $0x1f8] sm:$0xff]
  %886 = vmatpush.msra.mxu0 %v882
  %887 = vmatpush.msra.mxu0 %v878
  %888 = vmatpush.msra.mxu0 %v874
  %889 = vmatpush.msra.mxu0 %v870
  %890 = vmatpush.msra.mxu0 %v866
  %891 = vmatpush.msra.mxu0 %v862
  %892 = vmatpush.msra.mxu0 %v858
  %893 = vmatpush.msra.mxu0 %v854
  %894 = vmatpush.msra.mxu0 %v850
  %895 = vmatpush.msra.mxu0 %v846
  %896 = vmatpush.msra.mxu0 %v842
  %897 = vmatpush.msra.mxu0 %v838
  %898 = vmatpush.msra.mxu0 %v834
  %899 = vmatpush.msra.mxu0 %v830
  %900 = vmatpush.msra.mxu0 %v826
  %901 = vmatpush.msra.mxu0 %v822
  %902 = vmatmul.f32.gmra.mxu0 %v819
  %v903 = vpop.f32.mrf.mxu0
  %v904 = vadd.f32 0.0, %v903
  %905 = vdwg.mxu0
  %906 = vmatpush.msra.mxu0 %v883
  %907 = vmatpush.msra.mxu0 %v879
  %908 = vmatpush.msra.mxu0 %v875
  %909 = vmatpush.msra.mxu0 %v871
  %910 = vmatpush.msra.mxu0 %v867
  %911 = vmatpush.msra.mxu0 %v863
  %912 = vmatpush.msra.mxu0 %v859
  %913 = vmatpush.msra.mxu0 %v855
  %914 = vmatpush.msra.mxu0 %v851
  %915 = vmatpush.msra.mxu0 %v847
  %916 = vmatpush.msra.mxu0 %v843
  %917 = vmatpush.msra.mxu0 %v839
  %918 = vmatpush.msra.mxu0 %v835
  %919 = vmatpush.msra.mxu0 %v831
  %920 = vmatpush.msra.mxu0 %v827
  %921 = vmatpush.msra.mxu0 %v823
  %922 = vmatmul.f32.gmra.mxu0 %v819
  %v923 = vpop.f32.mrf.mxu0
  %v924 = vadd.f32 0.0, %v923
  %925 = vdwg.mxu0
  %926 = vmatpush.msra.mxu0 %v884
  %927 = vmatpush.msra.mxu0 %v880
  %928 = vmatpush.msra.mxu0 %v876
  %929 = vmatpush.msra.mxu0 %v872
  %930 = vmatpush.msra.mxu0 %v868
  %931 = vmatpush.msra.mxu0 %v864
  %932 = vmatpush.msra.mxu0 %v860
  %933 = vmatpush.msra.mxu0 %v856
  %934 = vmatpush.msra.mxu0 %v852
  %935 = vmatpush.msra.mxu0 %v848
  %936 = vmatpush.msra.mxu0 %v844
  %937 = vmatpush.msra.mxu0 %v840
  %938 = vmatpush.msra.mxu0 %v836
  %939 = vmatpush.msra.mxu0 %v832
  %940 = vmatpush.msra.mxu0 %v828
  %941 = vmatpush.msra.mxu0 %v824
  %942 = vmatmul.f32.gmra.mxu0 %v819
  %v943 = vpop.f32.mrf.mxu0
  %v944 = vadd.f32 0.0, %v943
  %945 = vdwg.mxu0
  %946 = vmatpush.msra.mxu0 %v885
  %947 = vmatpush.msra.mxu0 %v881
  %948 = vmatpush.msra.mxu0 %v877
  %949 = vmatpush.msra.mxu0 %v873
  %950 = vmatpush.msra.mxu0 %v869
  %951 = vmatpush.msra.mxu0 %v865
  %952 = vmatpush.msra.mxu0 %v861
  %953 = vmatpush.msra.mxu0 %v857
  %954 = vmatpush.msra.mxu0 %v853
  %955 = vmatpush.msra.mxu0 %v849
  %956 = vmatpush.msra.mxu0 %v845
  %957 = vmatpush.msra.mxu0 %v841
  %958 = vmatpush.msra.mxu0 %v837
  %959 = vmatpush.msra.mxu0 %v833
  %960 = vmatpush.msra.mxu0 %v829
  %961 = vmatpush.msra.mxu0 %v825
  %962 = vmatmul.f32.gmra.mxu0 %v819
  %v963 = vpop.f32.mrf.mxu0
  %v964 = vadd.f32 0.0, %v963
  %965 = vdwg.mxu0
  %v966 = vadd.f32 %v178, %v904
  %v967 = vadd.f32 %v179, %v924
  %v968 = vadd.f32 %v180, %v944
  %v969 = vadd.f32 %v181, %v964
  %v970 = vxor.u32 %v966, 2147483648
  %v971 = vmul.f32 %v970, 1.442695
  %v972 = vpow.pop %v971
  %v973 = vadd.f32 %v972, 1.0
  %v974 = vrcp.pop %v973
  %v975 = vmul.f32 %v973, %v974
  %v976 = vsub.f32 1.0, %v975
  %v977 = vmul.f32 %v974, %v976
  %v978 = vadd.f32 %v974, %v977
  %vm979 = vweird.f32 %v973
  %vm980 = vweird.f32 %v974
  %vm981 = vmor %vm979, %vm980
  %v982 = vsel %vm981, %v974, %v978
  %v983 = vand.u32 2147483647, %v973
  %vm984 = vcmp.eq.f32.partialorder %v983, 8.507059e+37
  %v985 = vand.u32 %v973, 2147483648
  %v986 = vor.u32 1.1754944e-38, %v985
  %v987 = vsel %vm984, %v986, %v982
  %v988 = vmul.f32 1.0, %v987
  %v989 = vxor.u32 %v967, 2147483648
  %v990 = vmul.f32 %v989, 1.442695
  %v991 = vpow.pop %v990
  %v992 = vadd.f32 %v991, 1.0
  %v993 = vrcp.pop %v992
  %v994 = vmul.f32 %v992, %v993
  %v995 = vsub.f32 1.0, %v994
  %v996 = vmul.f32 %v993, %v995
  %v997 = vadd.f32 %v993, %v996
  %vm998 = vweird.f32 %v992
  %vm999 = vweird.f32 %v993
  %vm1000 = vmor %vm998, %vm999
  %v1001 = vsel %vm1000, %v993, %v997
  %v1002 = vand.u32 2147483647, %v992
  %vm1003 = vcmp.eq.f32.partialorder %v1002, 8.507059e+37
  %v1004 = vand.u32 %v992, 2147483648
  %v1005 = vor.u32 1.1754944e-38, %v1004
  %v1006 = vsel %vm1003, %v1005, %v1001
  %v1007 = vmul.f32 1.0, %v1006
  %v1008 = vtanh.pop %v968
  %v1009 = vxor.u32 %v969, 2147483648
  %v1010 = vmul.f32 %v1009, 1.442695
  %v1011 = vpow.pop %v1010
  %v1012 = vadd.f32 %v1011, 1.0
  %v1013 = vrcp.pop %v1012
  %v1014 = vmul.f32 %v1012, %v1013
  %v1015 = vsub.f32 1.0, %v1014
  %v1016 = vmul.f32 %v1013, %v1015
  %v1017 = vadd.f32 %v1013, %v1016
  %vm1018 = vweird.f32 %v1012
  %vm1019 = vweird.f32 %v1013
  %vm1020 = vmor %vm1018, %vm1019
  %v1021 = vsel %vm1020, %v1013, %v1017
  %v1022 = vand.u32 2147483647, %v1012
  %vm1023 = vcmp.eq.f32.partialorder %v1022, 8.507059e+37
  %v1024 = vand.u32 %v1012, 2147483648
  %v1025 = vor.u32 1.1754944e-38, %v1024
  %v1026 = vsel %vm1023, %v1025, %v1021
  %v1027 = vmul.f32 1.0, %v1026
  %v1028 = vmul.f32 %v1007, %v817
  %v1029 = vmul.f32 %v988, %v1008
  %v1030 = vadd.f32 %v1028, %v1029
  %v1031 = vtanh.pop %v1030
  %v1032 = vmul.f32 %v1027, %v1031
  %s1033 = scalar_lea.vmem %s6, 24
  %1034 = vst [vmem:[%s1033] sm:$0xff] %v1032
  %v1035 = vld [vmem:[%s4] sm:$0xff]
  %v1036 = vld [vmem:[%s4 + $0x8] sm:$0xff]
  %v1037 = vld [vmem:[%s4 + $0x10] sm:$0xff]
  %v1038 = vld [vmem:[%s4 + $0x18] sm:$0xff]
  %v1039 = vld [vmem:[%s4 + $0x20] sm:$0xff]
  %v1040 = vld [vmem:[%s4 + $0x28] sm:$0xff]
  %v1041 = vld [vmem:[%s4 + $0x30] sm:$0xff]
  %v1042 = vld [vmem:[%s4 + $0x38] sm:$0xff]
  %v1043 = vld [vmem:[%s4 + $0x40] sm:$0xff]
  %v1044 = vld [vmem:[%s4 + $0x48] sm:$0xff]
  %v1045 = vld [vmem:[%s4 + $0x50] sm:$0xff]
  %v1046 = vld [vmem:[%s4 + $0x58] sm:$0xff]
  %v1047 = vld [vmem:[%s4 + $0x60] sm:$0xff]
  %v1048 = vld [vmem:[%s4 + $0x68] sm:$0xff]
  %v1049 = vld [vmem:[%s4 + $0x70] sm:$0xff]
  %v1050 = vld [vmem:[%s4 + $0x78] sm:$0xff]
  %v1051 = vld [vmem:[%s4 + $0x80] sm:$0xff]
  %v1052 = vld [vmem:[%s4 + $0x88] sm:$0xff]
  %v1053 = vld [vmem:[%s4 + $0x90] sm:$0xff]
  %v1054 = vld [vmem:[%s4 + $0x98] sm:$0xff]
  %v1055 = vld [vmem:[%s4 + $0xa0] sm:$0xff]
  %v1056 = vld [vmem:[%s4 + $0xa8] sm:$0xff]
  %v1057 = vld [vmem:[%s4 + $0xb0] sm:$0xff]
  %v1058 = vld [vmem:[%s4 + $0xb8] sm:$0xff]
  %v1059 = vld [vmem:[%s4 + $0xc0] sm:$0xff]
  %v1060 = vld [vmem:[%s4 + $0xc8] sm:$0xff]
  %v1061 = vld [vmem:[%s4 + $0xd0] sm:$0xff]
  %v1062 = vld [vmem:[%s4 + $0xd8] sm:$0xff]
  %v1063 = vld [vmem:[%s4 + $0xe0] sm:$0xff]
  %v1064 = vld [vmem:[%s4 + $0xe8] sm:$0xff]
  %v1065 = vld [vmem:[%s4 + $0xf0] sm:$0xff]
  %v1066 = vld [vmem:[%s4 + $0xf8] sm:$0xff]
  %v1067 = vld [vmem:[%s4 + $0x100] sm:$0xff]
  %v1068 = vld [vmem:[%s4 + $0x108] sm:$0xff]
  %v1069 = vld [vmem:[%s4 + $0x110] sm:$0xff]
  %v1070 = vld [vmem:[%s4 + $0x118] sm:$0xff]
  %v1071 = vld [vmem:[%s4 + $0x120] sm:$0xff]
  %v1072 = vld [vmem:[%s4 + $0x128] sm:$0xff]
  %v1073 = vld [vmem:[%s4 + $0x130] sm:$0xff]
  %v1074 = vld [vmem:[%s4 + $0x138] sm:$0xff]
  %v1075 = vld [vmem:[%s4 + $0x140] sm:$0xff]
  %v1076 = vld [vmem:[%s4 + $0x148] sm:$0xff]
  %v1077 = vld [vmem:[%s4 + $0x150] sm:$0xff]
  %v1078 = vld [vmem:[%s4 + $0x158] sm:$0xff]
  %v1079 = vld [vmem:[%s4 + $0x160] sm:$0xff]
  %v1080 = vld [vmem:[%s4 + $0x168] sm:$0xff]
  %v1081 = vld [vmem:[%s4 + $0x170] sm:$0xff]
  %v1082 = vld [vmem:[%s4 + $0x178] sm:$0xff]
  %v1083 = vld [vmem:[%s4 + $0x180] sm:$0xff]
  %v1084 = vld [vmem:[%s4 + $0x188] sm:$0xff]
  %v1085 = vld [vmem:[%s4 + $0x190] sm:$0xff]
  %v1086 = vld [vmem:[%s4 + $0x198] sm:$0xff]
  %v1087 = vld [vmem:[%s4 + $0x1a0] sm:$0xff]
  %v1088 = vld [vmem:[%s4 + $0x1a8] sm:$0xff]
  %v1089 = vld [vmem:[%s4 + $0x1b0] sm:$0xff]
  %v1090 = vld [vmem:[%s4 + $0x1b8] sm:$0xff]
  %v1091 = vld [vmem:[%s4 + $0x1c0] sm:$0xff]
  %v1092 = vld [vmem:[%s4 + $0x1c8] sm:$0xff]
  %v1093 = vld [vmem:[%s4 + $0x1d0] sm:$0xff]
  %v1094 = vld [vmem:[%s4 + $0x1d8] sm:$0xff]
  %v1095 = vld [vmem:[%s4 + $0x1e0] sm:$0xff]
  %v1096 = vld [vmem:[%s4 + $0x1e8] sm:$0xff]
  %v1097 = vld [vmem:[%s4 + $0x1f0] sm:$0xff]
  %v1098 = vld [vmem:[%s4 + $0x1f8] sm:$0xff]
  %1099 = vmatpush.msra.mxu0 %v1095
  %1100 = vmatpush.msra.mxu0 %v1091
  %1101 = vmatpush.msra.mxu0 %v1087
  %1102 = vmatpush.msra.mxu0 %v1083
  %1103 = vmatpush.msra.mxu0 %v1079
  %1104 = vmatpush.msra.mxu0 %v1075
  %1105 = vmatpush.msra.mxu0 %v1071
  %1106 = vmatpush.msra.mxu0 %v1067
  %1107 = vmatpush.msra.mxu0 %v1063
  %1108 = vmatpush.msra.mxu0 %v1059
  %1109 = vmatpush.msra.mxu0 %v1055
  %1110 = vmatpush.msra.mxu0 %v1051
  %1111 = vmatpush.msra.mxu0 %v1047
  %1112 = vmatpush.msra.mxu0 %v1043
  %1113 = vmatpush.msra.mxu0 %v1039
  %1114 = vmatpush.msra.mxu0 %v1035
  %1115 = vmatmul.f32.gmra.mxu0 %v1032
  %v1116 = vpop.f32.mrf.mxu0
  %v1117 = vadd.f32 0.0, %v1116
  %1118 = vdwg.mxu0
  %1119 = vmatpush.msra.mxu0 %v1096
  %1120 = vmatpush.msra.mxu0 %v1092
  %1121 = vmatpush.msra.mxu0 %v1088
  %1122 = vmatpush.msra.mxu0 %v1084
  %1123 = vmatpush.msra.mxu0 %v1080
  %1124 = vmatpush.msra.mxu0 %v1076
  %1125 = vmatpush.msra.mxu0 %v1072
  %1126 = vmatpush.msra.mxu0 %v1068
  %1127 = vmatpush.msra.mxu0 %v1064
  %1128 = vmatpush.msra.mxu0 %v1060
  %1129 = vmatpush.msra.mxu0 %v1056
  %1130 = vmatpush.msra.mxu0 %v1052
  %1131 = vmatpush.msra.mxu0 %v1048
  %1132 = vmatpush.msra.mxu0 %v1044
  %1133 = vmatpush.msra.mxu0 %v1040
  %1134 = vmatpush.msra.mxu0 %v1036
  %1135 = vmatmul.f32.gmra.mxu0 %v1032
  %v1136 = vpop.f32.mrf.mxu0
  %v1137 = vadd.f32 0.0, %v1136
  %1138 = vdwg.mxu0
  %1139 = vmatpush.msra.mxu0 %v1097
  %1140 = vmatpush.msra.mxu0 %v1093
  %1141 = vmatpush.msra.mxu0 %v1089
  %1142 = vmatpush.msra.mxu0 %v1085
  %1143 = vmatpush.msra.mxu0 %v1081
  %1144 = vmatpush.msra.mxu0 %v1077
  %1145 = vmatpush.msra.mxu0 %v1073
  %1146 = vmatpush.msra.mxu0 %v1069
  %1147 = vmatpush.msra.mxu0 %v1065
  %1148 = vmatpush.msra.mxu0 %v1061
  %1149 = vmatpush.msra.mxu0 %v1057
  %1150 = vmatpush.msra.mxu0 %v1053
  %1151 = vmatpush.msra.mxu0 %v1049
  %1152 = vmatpush.msra.mxu0 %v1045
  %1153 = vmatpush.msra.mxu0 %v1041
  %1154 = vmatpush.msra.mxu0 %v1037
  %1155 = vmatmul.f32.gmra.mxu0 %v1032
  %v1156 = vpop.f32.mrf.mxu0
  %v1157 = vadd.f32 0.0, %v1156
  %1158 = vdwg.mxu0
  %1159 = vmatpush.msra.mxu0 %v1098
  %1160 = vmatpush.msra.mxu0 %v1094
  %1161 = vmatpush.msra.mxu0 %v1090
  %1162 = vmatpush.msra.mxu0 %v1086
  %1163 = vmatpush.msra.mxu0 %v1082
  %1164 = vmatpush.msra.mxu0 %v1078
  %1165 = vmatpush.msra.mxu0 %v1074
  %1166 = vmatpush.msra.mxu0 %v1070
  %1167 = vmatpush.msra.mxu0 %v1066
  %1168 = vmatpush.msra.mxu0 %v1062
  %1169 = vmatpush.msra.mxu0 %v1058
  %1170 = vmatpush.msra.mxu0 %v1054
  %1171 = vmatpush.msra.mxu0 %v1050
  %1172 = vmatpush.msra.mxu0 %v1046
  %1173 = vmatpush.msra.mxu0 %v1042
  %1174 = vmatpush.msra.mxu0 %v1038
  %1175 = vmatmul.f32.gmra.mxu0 %v1032
  %v1176 = vpop.f32.mrf.mxu0
  %v1177 = vadd.f32 0.0, %v1176
  %1178 = vdwg.mxu0
  %v1179 = vadd.f32 %v178, %v1117
  %v1180 = vadd.f32 %v179, %v1137
  %v1181 = vadd.f32 %v180, %v1157
  %v1182 = vadd.f32 %v181, %v1177
  %v1183 = vxor.u32 %v1179, 2147483648
  %v1184 = vmul.f32 %v1183, 1.442695
  %v1185 = vpow.pop %v1184
  %v1186 = vadd.f32 %v1185, 1.0
  %v1187 = vrcp.pop %v1186
  %v1188 = vmul.f32 %v1186, %v1187
  %v1189 = vsub.f32 1.0, %v1188
  %v1190 = vmul.f32 %v1187, %v1189
  %v1191 = vadd.f32 %v1187, %v1190
  %vm1192 = vweird.f32 %v1186
  %vm1193 = vweird.f32 %v1187
  %vm1194 = vmor %vm1192, %vm1193
  %v1195 = vsel %vm1194, %v1187, %v1191
  %v1196 = vand.u32 2147483647, %v1186
  %vm1197 = vcmp.eq.f32.partialorder %v1196, 8.507059e+37
  %v1198 = vand.u32 %v1186, 2147483648
  %v1199 = vor.u32 1.1754944e-38, %v1198
  %v1200 = vsel %vm1197, %v1199, %v1195
  %v1201 = vmul.f32 1.0, %v1200
  %v1202 = vxor.u32 %v1180, 2147483648
  %v1203 = vmul.f32 %v1202, 1.442695
  %v1204 = vpow.pop %v1203
  %v1205 = vadd.f32 %v1204, 1.0
  %v1206 = vrcp.pop %v1205
  %v1207 = vmul.f32 %v1205, %v1206
  %v1208 = vsub.f32 1.0, %v1207
  %v1209 = vmul.f32 %v1206, %v1208
  %v1210 = vadd.f32 %v1206, %v1209
  %vm1211 = vweird.f32 %v1205
  %vm1212 = vweird.f32 %v1206
  %vm1213 = vmor %vm1211, %vm1212
  %v1214 = vsel %vm1213, %v1206, %v1210
  %v1215 = vand.u32 2147483647, %v1205
  %vm1216 = vcmp.eq.f32.partialorder %v1215, 8.507059e+37
  %v1217 = vand.u32 %v1205, 2147483648
  %v1218 = vor.u32 1.1754944e-38, %v1217
  %v1219 = vsel %vm1216, %v1218, %v1214
  %v1220 = vmul.f32 1.0, %v1219
  %v1221 = vtanh.pop %v1181
  %v1222 = vxor.u32 %v1182, 2147483648
  %v1223 = vmul.f32 %v1222, 1.442695
  %v1224 = vpow.pop %v1223
  %v1225 = vadd.f32 %v1224, 1.0
  %v1226 = vrcp.pop %v1225
  %v1227 = vmul.f32 %v1225, %v1226
  %v1228 = vsub.f32 1.0, %v1227
  %v1229 = vmul.f32 %v1226, %v1228
  %v1230 = vadd.f32 %v1226, %v1229
  %vm1231 = vweird.f32 %v1225
  %vm1232 = vweird.f32 %v1226
  %vm1233 = vmor %vm1231, %vm1232
  %v1234 = vsel %vm1233, %v1226, %v1230
  %v1235 = vand.u32 2147483647, %v1225
  %vm1236 = vcmp.eq.f32.partialorder %v1235, 8.507059e+37
  %v1237 = vand.u32 %v1225, 2147483648
  %v1238 = vor.u32 1.1754944e-38, %v1237
  %v1239 = vsel %vm1236, %v1238, %v1234
  %v1240 = vmul.f32 1.0, %v1239
  %v1241 = vmul.f32 %v1220, %v1030
  %v1242 = vmul.f32 %v1201, %v1221
  %v1243 = vadd.f32 %v1241, %v1242
  %v1244 = vtanh.pop %v1243
  %v1245 = vmul.f32 %v1240, %v1244
  %s1246 = scalar_lea.vmem %s6, 32
  %1247 = vst [vmem:[%s1246] sm:$0xff] %v1245
  %v1248 = vld [vmem:[%s4] sm:$0xff]
  %v1249 = vld [vmem:[%s4 + $0x8] sm:$0xff]
  %v1250 = vld [vmem:[%s4 + $0x10] sm:$0xff]
  %v1251 = vld [vmem:[%s4 + $0x18] sm:$0xff]
  %v1252 = vld [vmem:[%s4 + $0x20] sm:$0xff]
  %v1253 = vld [vmem:[%s4 + $0x28] sm:$0xff]
  %v1254 = vld [vmem:[%s4 + $0x30] sm:$0xff]
  %v1255 = vld [vmem:[%s4 + $0x38] sm:$0xff]
  %v1256 = vld [vmem:[%s4 + $0x40] sm:$0xff]
  %v1257 = vld [vmem:[%s4 + $0x48] sm:$0xff]
  %v1258 = vld [vmem:[%s4 + $0x50] sm:$0xff]
  %v1259 = vld [vmem:[%s4 + $0x58] sm:$0xff]
  %v1260 = vld [vmem:[%s4 + $0x60] sm:$0xff]
  %v1261 = vld [vmem:[%s4 + $0x68] sm:$0xff]
  %v1262 = vld [vmem:[%s4 + $0x70] sm:$0xff]
  %v1263 = vld [vmem:[%s4 + $0x78] sm:$0xff]
  %v1264 = vld [vmem:[%s4 + $0x80] sm:$0xff]
  %v1265 = vld [vmem:[%s4 + $0x88] sm:$0xff]
  %v1266 = vld [vmem:[%s4 + $0x90] sm:$0xff]
  %v1267 = vld [vmem:[%s4 + $0x98] sm:$0xff]
  %v1268 = vld [vmem:[%s4 + $0xa0] sm:$0xff]
  %v1269 = vld [vmem:[%s4 + $0xa8] sm:$0xff]
  %v1270 = vld [vmem:[%s4 + $0xb0] sm:$0xff]
  %v1271 = vld [vmem:[%s4 + $0xb8] sm:$0xff]
  %v1272 = vld [vmem:[%s4 + $0xc0] sm:$0xff]
  %v1273 = vld [vmem:[%s4 + $0xc8] sm:$0xff]
  %v1274 = vld [vmem:[%s4 + $0xd0] sm:$0xff]
  %v1275 = vld [vmem:[%s4 + $0xd8] sm:$0xff]
  %v1276 = vld [vmem:[%s4 + $0xe0] sm:$0xff]
  %v1277 = vld [vmem:[%s4 + $0xe8] sm:$0xff]
  %v1278 = vld [vmem:[%s4 + $0xf0] sm:$0xff]
  %v1279 = vld [vmem:[%s4 + $0xf8] sm:$0xff]
  %v1280 = vld [vmem:[%s4 + $0x100] sm:$0xff]
  %v1281 = vld [vmem:[%s4 + $0x108] sm:$0xff]
  %v1282 = vld [vmem:[%s4 + $0x110] sm:$0xff]
  %v1283 = vld [vmem:[%s4 + $0x118] sm:$0xff]
  %v1284 = vld [vmem:[%s4 + $0x120] sm:$0xff]
  %v1285 = vld [vmem:[%s4 + $0x128] sm:$0xff]
  %v1286 = vld [vmem:[%s4 + $0x130] sm:$0xff]
  %v1287 = vld [vmem:[%s4 + $0x138] sm:$0xff]
  %v1288 = vld [vmem:[%s4 + $0x140] sm:$0xff]
  %v1289 = vld [vmem:[%s4 + $0x148] sm:$0xff]
  %v1290 = vld [vmem:[%s4 + $0x150] sm:$0xff]
  %v1291 = vld [vmem:[%s4 + $0x158] sm:$0xff]
  %v1292 = vld [vmem:[%s4 + $0x160] sm:$0xff]
  %v1293 = vld [vmem:[%s4 + $0x168] sm:$0xff]
  %v1294 = vld [vmem:[%s4 + $0x170] sm:$0xff]
  %v1295 = vld [vmem:[%s4 + $0x178] sm:$0xff]
  %v1296 = vld [vmem:[%s4 + $0x180] sm:$0xff]
  %v1297 = vld [vmem:[%s4 + $0x188] sm:$0xff]
  %v1298 = vld [vmem:[%s4 + $0x190] sm:$0xff]
  %v1299 = vld [vmem:[%s4 + $0x198] sm:$0xff]
  %v1300 = vld [vmem:[%s4 + $0x1a0] sm:$0xff]
  %v1301 = vld [vmem:[%s4 + $0x1a8] sm:$0xff]
  %v1302 = vld [vmem:[%s4 + $0x1b0] sm:$0xff]
  %v1303 = vld [vmem:[%s4 + $0x1b8] sm:$0xff]
  %v1304 = vld [vmem:[%s4 + $0x1c0] sm:$0xff]
  %v1305 = vld [vmem:[%s4 + $0x1c8] sm:$0xff]
  %v1306 = vld [vmem:[%s4 + $0x1d0] sm:$0xff]
  %v1307 = vld [vmem:[%s4 + $0x1d8] sm:$0xff]
  %v1308 = vld [vmem:[%s4 + $0x1e0] sm:$0xff]
  %v1309 = vld [vmem:[%s4 + $0x1e8] sm:$0xff]
  %v1310 = vld [vmem:[%s4 + $0x1f0] sm:$0xff]
  %v1311 = vld [vmem:[%s4 + $0x1f8] sm:$0xff]
  %1312 = vmatpush.msra.mxu0 %v1308
  %1313 = vmatpush.msra.mxu0 %v1304
  %1314 = vmatpush.msra.mxu0 %v1300
  %1315 = vmatpush.msra.mxu0 %v1296
  %1316 = vmatpush.msra.mxu0 %v1292
  %1317 = vmatpush.msra.mxu0 %v1288
  %1318 = vmatpush.msra.mxu0 %v1284
  %1319 = vmatpush.msra.mxu0 %v1280
  %1320 = vmatpush.msra.mxu0 %v1276
  %1321 = vmatpush.msra.mxu0 %v1272
  %1322 = vmatpush.msra.mxu0 %v1268
  %1323 = vmatpush.msra.mxu0 %v1264
  %1324 = vmatpush.msra.mxu0 %v1260
  %1325 = vmatpush.msra.mxu0 %v1256
  %1326 = vmatpush.msra.mxu0 %v1252
  %1327 = vmatpush.msra.mxu0 %v1248
  %1328 = vmatmul.f32.gmra.mxu0 %v1245
  %v1329 = vpop.f32.mrf.mxu0
  %v1330 = vadd.f32 0.0, %v1329
  %1331 = vdwg.mxu0
  %1332 = vmatpush.msra.mxu0 %v1309
  %1333 = vmatpush.msra.mxu0 %v1305
  %1334 = vmatpush.msra.mxu0 %v1301
  %1335 = vmatpush.msra.mxu0 %v1297
  %1336 = vmatpush.msra.mxu0 %v1293
  %1337 = vmatpush.msra.mxu0 %v1289
  %1338 = vmatpush.msra.mxu0 %v1285
  %1339 = vmatpush.msra.mxu0 %v1281
  %1340 = vmatpush.msra.mxu0 %v1277
  %1341 = vmatpush.msra.mxu0 %v1273
  %1342 = vmatpush.msra.mxu0 %v1269
  %1343 = vmatpush.msra.mxu0 %v1265
  %1344 = vmatpush.msra.mxu0 %v1261
  %1345 = vmatpush.msra.mxu0 %v1257
  %1346 = vmatpush.msra.mxu0 %v1253
  %1347 = vmatpush.msra.mxu0 %v1249
  %1348 = vmatmul.f32.gmra.mxu0 %v1245
  %v1349 = vpop.f32.mrf.mxu0
  %v1350 = vadd.f32 0.0, %v1349
  %1351 = vdwg.mxu0
  %1352 = vmatpush.msra.mxu0 %v1310
  %1353 = vmatpush.msra.mxu0 %v1306
  %1354 = vmatpush.msra.mxu0 %v1302
  %1355 = vmatpush.msra.mxu0 %v1298
  %1356 = vmatpush.msra.mxu0 %v1294
  %1357 = vmatpush.msra.mxu0 %v1290
  %1358 = vmatpush.msra.mxu0 %v1286
  %1359 = vmatpush.msra.mxu0 %v1282
  %1360 = vmatpush.msra.mxu0 %v1278
  %1361 = vmatpush.msra.mxu0 %v1274
  %1362 = vmatpush.msra.mxu0 %v1270
  %1363 = vmatpush.msra.mxu0 %v1266
  %1364 = vmatpush.msra.mxu0 %v1262
  %1365 = vmatpush.msra.mxu0 %v1258
  %1366 = vmatpush.msra.mxu0 %v1254
  %1367 = vmatpush.msra.mxu0 %v1250
  %1368 = vmatmul.f32.gmra.mxu0 %v1245
  %v1369 = vpop.f32.mrf.mxu0
  %v1370 = vadd.f32 0.0, %v1369
  %1371 = vdwg.mxu0
  %1372 = vmatpush.msra.mxu0 %v1311
  %1373 = vmatpush.msra.mxu0 %v1307
  %1374 = vmatpush.msra.mxu0 %v1303
  %1375 = vmatpush.msra.mxu0 %v1299
  %1376 = vmatpush.msra.mxu0 %v1295
  %1377 = vmatpush.msra.mxu0 %v1291
  %1378 = vmatpush.msra.mxu0 %v1287
  %1379 = vmatpush.msra.mxu0 %v1283
  %1380 = vmatpush.msra.mxu0 %v1279
  %1381 = vmatpush.msra.mxu0 %v1275
  %1382 = vmatpush.msra.mxu0 %v1271
  %1383 = vmatpush.msra.mxu0 %v1267
  %1384 = vmatpush.msra.mxu0 %v1263
  %1385 = vmatpush.msra.mxu0 %v1259
  %1386 = vmatpush.msra.mxu0 %v1255
  %1387 = vmatpush.msra.mxu0 %v1251
  %1388 = vmatmul.f32.gmra.mxu0 %v1245
  %v1389 = vpop.f32.mrf.mxu0
  %v1390 = vadd.f32 0.0, %v1389
  %1391 = vdwg.mxu0
  %v1392 = vadd.f32 %v178, %v1330
  %v1393 = vadd.f32 %v179, %v1350
  %v1394 = vadd.f32 %v180, %v1370
  %v1395 = vadd.f32 %v181, %v1390
  %v1396 = vxor.u32 %v1392, 2147483648
  %v1397 = vmul.f32 %v1396, 1.442695
  %v1398 = vpow.pop %v1397
  %v1399 = vadd.f32 %v1398, 1.0
  %v1400 = vrcp.pop %v1399
  %v1401 = vmul.f32 %v1399, %v1400
  %v1402 = vsub.f32 1.0, %v1401
  %v1403 = vmul.f32 %v1400, %v1402
  %v1404 = vadd.f32 %v1400, %v1403
  %vm1405 = vweird.f32 %v1399
  %vm1406 = vweird.f32 %v1400
  %vm1407 = vmor %vm1405, %vm1406
  %v1408 = vsel %vm1407, %v1400, %v1404
  %v1409 = vand.u32 2147483647, %v1399
  %vm1410 = vcmp.eq.f32.partialorder %v1409, 8.507059e+37
  %v1411 = vand.u32 %v1399, 2147483648
  %v1412 = vor.u32 1.1754944e-38, %v1411
  %v1413 = vsel %vm1410, %v1412, %v1408
  %v1414 = vmul.f32 1.0, %v1413
  %v1415 = vxor.u32 %v1393, 2147483648
  %v1416 = vmul.f32 %v1415, 1.442695
  %v1417 = vpow.pop %v1416
  %v1418 = vadd.f32 %v1417, 1.0
  %v1419 = vrcp.pop %v1418
  %v1420 = vmul.f32 %v1418, %v1419
  %v1421 = vsub.f32 1.0, %v1420
  %v1422 = vmul.f32 %v1419, %v1421
  %v1423 = vadd.f32 %v1419, %v1422
  %vm1424 = vweird.f32 %v1418
  %vm1425 = vweird.f32 %v1419
  %vm1426 = vmor %vm1424, %vm1425
  %v1427 = vsel %vm1426, %v1419, %v1423
  %v1428 = vand.u32 2147483647, %v1418
  %vm1429 = vcmp.eq.f32.partialorder %v1428, 8.507059e+37
  %v1430 = vand.u32 %v1418, 2147483648
  %v1431 = vor.u32 1.1754944e-38, %v1430
  %v1432 = vsel %vm1429, %v1431, %v1427
  %v1433 = vmul.f32 1.0, %v1432
  %v1434 = vtanh.pop %v1394
  %v1435 = vxor.u32 %v1395, 2147483648
  %v1436 = vmul.f32 %v1435, 1.442695
  %v1437 = vpow.pop %v1436
  %v1438 = vadd.f32 %v1437, 1.0
  %v1439 = vrcp.pop %v1438
  %v1440 = vmul.f32 %v1438, %v1439
  %v1441 = vsub.f32 1.0, %v1440
  %v1442 = vmul.f32 %v1439, %v1441
  %v1443 = vadd.f32 %v1439, %v1442
  %vm1444 = vweird.f32 %v1438
  %vm1445 = vweird.f32 %v1439
  %vm1446 = vmor %vm1444, %vm1445
  %v1447 = vsel %vm1446, %v1439, %v1443
  %v1448 = vand.u32 2147483647, %v1438
  %vm1449 = vcmp.eq.f32.partialorder %v1448, 8.507059e+37
  %v1450 = vand.u32 %v1438, 2147483648
  %v1451 = vor.u32 1.1754944e-38, %v1450
  %v1452 = vsel %vm1449, %v1451, %v1447
  %v1453 = vmul.f32 1.0, %v1452
  %v1454 = vmul.f32 %v1433, %v1243
  %v1455 = vmul.f32 %v1414, %v1434
  %v1456 = vadd.f32 %v1454, %v1455
  %v1457 = vtanh.pop %v1456
  %v1458 = vmul.f32 %v1453, %v1457
  %s1459 = scalar_lea.vmem %s6, 40
  %1460 = vst [vmem:[%s1459] sm:$0xff] %v1458
  %v1461 = vld [vmem:[%s4] sm:$0xff]
  %v1462 = vld [vmem:[%s4 + $0x8] sm:$0xff]
  %v1463 = vld [vmem:[%s4 + $0x10] sm:$0xff]
  %v1464 = vld [vmem:[%s4 + $0x18] sm:$0xff]
  %v1465 = vld [vmem:[%s4 + $0x20] sm:$0xff]
  %v1466 = vld [vmem:[%s4 + $0x28] sm:$0xff]
  %v1467 = vld [vmem:[%s4 + $0x30] sm:$0xff]
  %v1468 = vld [vmem:[%s4 + $0x38] sm:$0xff]
  %v1469 = vld [vmem:[%s4 + $0x40] sm:$0xff]
  %v1470 = vld [vmem:[%s4 + $0x48] sm:$0xff]
  %v1471 = vld [vmem:[%s4 + $0x50] sm:$0xff]
  %v1472 = vld [vmem:[%s4 + $0x58] sm:$0xff]
  %v1473 = vld [vmem:[%s4 + $0x60] sm:$0xff]
  %v1474 = vld [vmem:[%s4 + $0x68] sm:$0xff]
  %v1475 = vld [vmem:[%s4 + $0x70] sm:$0xff]
  %v1476 = vld [vmem:[%s4 + $0x78] sm:$0xff]
  %v1477 = vld [vmem:[%s4 + $0x80] sm:$0xff]
  %v1478 = vld [vmem:[%s4 + $0x88] sm:$0xff]
  %v1479 = vld [vmem:[%s4 + $0x90] sm:$0xff]
  %v1480 = vld [vmem:[%s4 + $0x98] sm:$0xff]
  %v1481 = vld [vmem:[%s4 + $0xa0] sm:$0xff]
  %v1482 = vld [vmem:[%s4 + $0xa8] sm:$0xff]
  %v1483 = vld [vmem:[%s4 + $0xb0] sm:$0xff]
  %v1484 = vld [vmem:[%s4 + $0xb8] sm:$0xff]
  %v1485 = vld [vmem:[%s4 + $0xc0] sm:$0xff]
  %v1486 = vld [vmem:[%s4 + $0xc8] sm:$0xff]
  %v1487 = vld [vmem:[%s4 + $0xd0] sm:$0xff]
  %v1488 = vld [vmem:[%s4 + $0xd8] sm:$0xff]
  %v1489 = vld [vmem:[%s4 + $0xe0] sm:$0xff]
  %v1490 = vld [vmem:[%s4 + $0xe8] sm:$0xff]
  %v1491 = vld [vmem:[%s4 + $0xf0] sm:$0xff]
  %v1492 = vld [vmem:[%s4 + $0xf8] sm:$0xff]
  %v1493 = vld [vmem:[%s4 + $0x100] sm:$0xff]
  %v1494 = vld [vmem:[%s4 + $0x108] sm:$0xff]
  %v1495 = vld [vmem:[%s4 + $0x110] sm:$0xff]
  %v1496 = vld [vmem:[%s4 + $0x118] sm:$0xff]
  %v1497 = vld [vmem:[%s4 + $0x120] sm:$0xff]
  %v1498 = vld [vmem:[%s4 + $0x128] sm:$0xff]
  %v1499 = vld [vmem:[%s4 + $0x130] sm:$0xff]
  %v1500 = vld [vmem:[%s4 + $0x138] sm:$0xff]
  %v1501 = vld [vmem:[%s4 + $0x140] sm:$0xff]
  %v1502 = vld [vmem:[%s4 + $0x148] sm:$0xff]
  %v1503 = vld [vmem:[%s4 + $0x150] sm:$0xff]
  %v1504 = vld [vmem:[%s4 + $0x158] sm:$0xff]
  %v1505 = vld [vmem:[%s4 + $0x160] sm:$0xff]
  %v1506 = vld [vmem:[%s4 + $0x168] sm:$0xff]
  %v1507 = vld [vmem:[%s4 + $0x170] sm:$0xff]
  %v1508 = vld [vmem:[%s4 + $0x178] sm:$0xff]
  %v1509 = vld [vmem:[%s4 + $0x180] sm:$0xff]
  %v1510 = vld [vmem:[%s4 + $0x188] sm:$0xff]
  %v1511 = vld [vmem:[%s4 + $0x190] sm:$0xff]
  %v1512 = vld [vmem:[%s4 + $0x198] sm:$0xff]
  %v1513 = vld [vmem:[%s4 + $0x1a0] sm:$0xff]
  %v1514 = vld [vmem:[%s4 + $0x1a8] sm:$0xff]
  %v1515 = vld [vmem:[%s4 + $0x1b0] sm:$0xff]
  %v1516 = vld [vmem:[%s4 + $0x1b8] sm:$0xff]
  %v1517 = vld [vmem:[%s4 + $0x1c0] sm:$0xff]
  %v1518 = vld [vmem:[%s4 + $0x1c8] sm:$0xff]
  %v1519 = vld [vmem:[%s4 + $0x1d0] sm:$0xff]
  %v1520 = vld [vmem:[%s4 + $0x1d8] sm:$0xff]
  %v1521 = vld [vmem:[%s4 + $0x1e0] sm:$0xff]
  %v1522 = vld [vmem:[%s4 + $0x1e8] sm:$0xff]
  %v1523 = vld [vmem:[%s4 + $0x1f0] sm:$0xff]
  %v1524 = vld [vmem:[%s4 + $0x1f8] sm:$0xff]
  %1525 = vmatpush.msra.mxu0 %v1521
  %1526 = vmatpush.msra.mxu0 %v1517
  %1527 = vmatpush.msra.mxu0 %v1513
  %1528 = vmatpush.msra.mxu0 %v1509
  %1529 = vmatpush.msra.mxu0 %v1505
  %1530 = vmatpush.msra.mxu0 %v1501
  %1531 = vmatpush.msra.mxu0 %v1497
  %1532 = vmatpush.msra.mxu0 %v1493
  %1533 = vmatpush.msra.mxu0 %v1489
  %1534 = vmatpush.msra.mxu0 %v1485
  %1535 = vmatpush.msra.mxu0 %v1481
  %1536 = vmatpush.msra.mxu0 %v1477
  %1537 = vmatpush.msra.mxu0 %v1473
  %1538 = vmatpush.msra.mxu0 %v1469
  %1539 = vmatpush.msra.mxu0 %v1465
  %1540 = vmatpush.msra.mxu0 %v1461
  %1541 = vmatmul.f32.gmra.mxu0 %v1458
  %v1542 = vpop.f32.mrf.mxu0
  %v1543 = vadd.f32 0.0, %v1542
  %1544 = vdwg.mxu0
  %1545 = vmatpush.msra.mxu0 %v1522
  %1546 = vmatpush.msra.mxu0 %v1518
  %1547 = vmatpush.msra.mxu0 %v1514
  %1548 = vmatpush.msra.mxu0 %v1510
  %1549 = vmatpush.msra.mxu0 %v1506
  %1550 = vmatpush.msra.mxu0 %v1502
  %1551 = vmatpush.msra.mxu0 %v1498
  %1552 = vmatpush.msra.mxu0 %v1494
  %1553 = vmatpush.msra.mxu0 %v1490
  %1554 = vmatpush.msra.mxu0 %v1486
  %1555 = vmatpush.msra.mxu0 %v1482
  %1556 = vmatpush.msra.mxu0 %v1478
  %1557 = vmatpush.msra.mxu0 %v1474
  %1558 = vmatpush.msra.mxu0 %v1470
  %1559 = vmatpush.msra.mxu0 %v1466
  %1560 = vmatpush.msra.mxu0 %v1462
  %1561 = vmatmul.f32.gmra.mxu0 %v1458
  %v1562 = vpop.f32.mrf.mxu0
  %v1563 = vadd.f32 0.0, %v1562
  %1564 = vdwg.mxu0
  %1565 = vmatpush.msra.mxu0 %v1523
  %1566 = vmatpush.msra.mxu0 %v1519
  %1567 = vmatpush.msra.mxu0 %v1515
  %1568 = vmatpush.msra.mxu0 %v1511
  %1569 = vmatpush.msra.mxu0 %v1507
  %1570 = vmatpush.msra.mxu0 %v1503
  %1571 = vmatpush.msra.mxu0 %v1499
  %1572 = vmatpush.msra.mxu0 %v1495
  %1573 = vmatpush.msra.mxu0 %v1491
  %1574 = vmatpush.msra.mxu0 %v1487
  %1575 = vmatpush.msra.mxu0 %v1483
  %1576 = vmatpush.msra.mxu0 %v1479
  %1577 = vmatpush.msra.mxu0 %v1475
  %1578 = vmatpush.msra.mxu0 %v1471
  %1579 = vmatpush.msra.mxu0 %v1467
  %1580 = vmatpush.msra.mxu0 %v1463
  %1581 = vmatmul.f32.gmra.mxu0 %v1458
  %v1582 = vpop.f32.mrf.mxu0
  %v1583 = vadd.f32 0.0, %v1582
  %1584 = vdwg.mxu0
  %1585 = vmatpush.msra.mxu0 %v1524
  %1586 = vmatpush.msra.mxu0 %v1520
  %1587 = vmatpush.msra.mxu0 %v1516
  %1588 = vmatpush.msra.mxu0 %v1512
  %1589 = vmatpush.msra.mxu0 %v1508
  %1590 = vmatpush.msra.mxu0 %v1504
  %1591 = vmatpush.msra.mxu0 %v1500
  %1592 = vmatpush.msra.mxu0 %v1496
  %1593 = vmatpush.msra.mxu0 %v1492
  %1594 = vmatpush.msra.mxu0 %v1488
  %1595 = vmatpush.msra.mxu0 %v1484
  %1596 = vmatpush.msra.mxu0 %v1480
  %1597 = vmatpush.msra.mxu0 %v1476
  %1598 = vmatpush.msra.mxu0 %v1472
  %1599 = vmatpush.msra.mxu0 %v1468
  %1600 = vmatpush.msra.mxu0 %v1464
  %1601 = vmatmul.f32.gmra.mxu0 %v1458
  %v1602 = vpop.f32.mrf.mxu0
  %v1603 = vadd.f32 0.0, %v1602
  %1604 = vdwg.mxu0
  %v1605 = vadd.f32 %v178, %v1543
  %v1606 = vadd.f32 %v179, %v1563
  %v1607 = vadd.f32 %v180, %v1583
  %v1608 = vadd.f32 %v181, %v1603
  %v1609 = vxor.u32 %v1605, 2147483648
  %v1610 = vmul.f32 %v1609, 1.442695
  %v1611 = vpow.pop %v1610
  %v1612 = vadd.f32 %v1611, 1.0
  %v1613 = vrcp.pop %v1612
  %v1614 = vmul.f32 %v1612, %v1613
  %v1615 = vsub.f32 1.0, %v1614
  %v1616 = vmul.f32 %v1613, %v1615
  %v1617 = vadd.f32 %v1613, %v1616
  %vm1618 = vweird.f32 %v1612
  %vm1619 = vweird.f32 %v1613
  %vm1620 = vmor %vm1618, %vm1619
  %v1621 = vsel %vm1620, %v1613, %v1617
  %v1622 = vand.u32 2147483647, %v1612
  %vm1623 = vcmp.eq.f32.partialorder %v1622, 8.507059e+37
  %v1624 = vand.u32 %v1612, 2147483648
  %v1625 = vor.u32 1.1754944e-38, %v1624
  %v1626 = vsel %vm1623, %v1625, %v1621
  %v1627 = vmul.f32 1.0, %v1626
  %v1628 = vxor.u32 %v1606, 2147483648
  %v1629 = vmul.f32 %v1628, 1.442695
  %v1630 = vpow.pop %v1629
  %v1631 = vadd.f32 %v1630, 1.0
  %v1632 = vrcp.pop %v1631
  %v1633 = vmul.f32 %v1631, %v1632
  %v1634 = vsub.f32 1.0, %v1633
  %v1635 = vmul.f32 %v1632, %v1634
  %v1636 = vadd.f32 %v1632, %v1635
  %vm1637 = vweird.f32 %v1631
  %vm1638 = vweird.f32 %v1632
  %vm1639 = vmor %vm1637, %vm1638
  %v1640 = vsel %vm1639, %v1632, %v1636
  %v1641 = vand.u32 2147483647, %v1631
  %vm1642 = vcmp.eq.f32.partialorder %v1641, 8.507059e+37
  %v1643 = vand.u32 %v1631, 2147483648
  %v1644 = vor.u32 1.1754944e-38, %v1643
  %v1645 = vsel %vm1642, %v1644, %v1640
  %v1646 = vmul.f32 1.0, %v1645
  %v1647 = vtanh.pop %v1607
  %v1648 = vxor.u32 %v1608, 2147483648
  %v1649 = vmul.f32 %v1648, 1.442695
  %v1650 = vpow.pop %v1649
  %v1651 = vadd.f32 %v1650, 1.0
  %v1652 = vrcp.pop %v1651
  %v1653 = vmul.f32 %v1651, %v1652
  %v1654 = vsub.f32 1.0, %v1653
  %v1655 = vmul.f32 %v1652, %v1654
  %v1656 = vadd.f32 %v1652, %v1655
  %vm1657 = vweird.f32 %v1651
  %vm1658 = vweird.f32 %v1652
  %vm1659 = vmor %vm1657, %vm1658
  %v1660 = vsel %vm1659, %v1652, %v1656
  %v1661 = vand.u32 2147483647, %v1651
  %vm1662 = vcmp.eq.f32.partialorder %v1661, 8.507059e+37
  %v1663 = vand.u32 %v1651, 2147483648
  %v1664 = vor.u32 1.1754944e-38, %v1663
  %v1665 = vsel %vm1662, %v1664, %v1660
  %v1666 = vmul.f32 1.0, %v1665
  %v1667 = vmul.f32 %v1646, %v1456
  %v1668 = vmul.f32 %v1627, %v1647
  %v1669 = vadd.f32 %v1667, %v1668
  %v1670 = vtanh.pop %v1669
  %v1671 = vmul.f32 %v1666, %v1670
  %s1672 = scalar_lea.vmem %s6, 48
  %1673 = vst [vmem:[%s1672] sm:$0xff] %v1671
  %v1674 = vld [vmem:[%s4] sm:$0xff]
  %v1675 = vld [vmem:[%s4 + $0x8] sm:$0xff]
  %v1676 = vld [vmem:[%s4 + $0x10] sm:$0xff]
  %v1677 = vld [vmem:[%s4 + $0x18] sm:$0xff]
  %v1678 = vld [vmem:[%s4 + $0x20] sm:$0xff]
  %v1679 = vld [vmem:[%s4 + $0x28] sm:$0xff]
  %v1680 = vld [vmem:[%s4 + $0x30] sm:$0xff]
  %v1681 = vld [vmem:[%s4 + $0x38] sm:$0xff]
  %v1682 = vld [vmem:[%s4 + $0x40] sm:$0xff]
  %v1683 = vld [vmem:[%s4 + $0x48] sm:$0xff]
  %v1684 = vld [vmem:[%s4 + $0x50] sm:$0xff]
  %v1685 = vld [vmem:[%s4 + $0x58] sm:$0xff]
  %v1686 = vld [vmem:[%s4 + $0x60] sm:$0xff]
  %v1687 = vld [vmem:[%s4 + $0x68] sm:$0xff]
  %v1688 = vld [vmem:[%s4 + $0x70] sm:$0xff]
  %v1689 = vld [vmem:[%s4 + $0x78] sm:$0xff]
  %v1690 = vld [vmem:[%s4 + $0x80] sm:$0xff]
  %v1691 = vld [vmem:[%s4 + $0x88] sm:$0xff]
  %v1692 = vld [vmem:[%s4 + $0x90] sm:$0xff]
  %v1693 = vld [vmem:[%s4 + $0x98] sm:$0xff]
  %v1694 = vld [vmem:[%s4 + $0xa0] sm:$0xff]
  %v1695 = vld [vmem:[%s4 + $0xa8] sm:$0xff]
  %v1696 = vld [vmem:[%s4 + $0xb0] sm:$0xff]
  %v1697 = vld [vmem:[%s4 + $0xb8] sm:$0xff]
  %v1698 = vld [vmem:[%s4 + $0xc0] sm:$0xff]
  %v1699 = vld [vmem:[%s4 + $0xc8] sm:$0xff]
  %v1700 = vld [vmem:[%s4 + $0xd0] sm:$0xff]
  %v1701 = vld [vmem:[%s4 + $0xd8] sm:$0xff]
  %v1702 = vld [vmem:[%s4 + $0xe0] sm:$0xff]
  %v1703 = vld [vmem:[%s4 + $0xe8] sm:$0xff]
  %v1704 = vld [vmem:[%s4 + $0xf0] sm:$0xff]
  %v1705 = vld [vmem:[%s4 + $0xf8] sm:$0xff]
  %v1706 = vld [vmem:[%s4 + $0x100] sm:$0xff]
  %v1707 = vld [vmem:[%s4 + $0x108] sm:$0xff]
  %v1708 = vld [vmem:[%s4 + $0x110] sm:$0xff]
  %v1709 = vld [vmem:[%s4 + $0x118] sm:$0xff]
  %v1710 = vld [vmem:[%s4 + $0x120] sm:$0xff]
  %v1711 = vld [vmem:[%s4 + $0x128] sm:$0xff]
  %v1712 = vld [vmem:[%s4 + $0x130] sm:$0xff]
  %v1713 = vld [vmem:[%s4 + $0x138] sm:$0xff]
  %v1714 = vld [vmem:[%s4 + $0x140] sm:$0xff]
  %v1715 = vld [vmem:[%s4 + $0x148] sm:$0xff]
  %v1716 = vld [vmem:[%s4 + $0x150] sm:$0xff]
  %v1717 = vld [vmem:[%s4 + $0x158] sm:$0xff]
  %v1718 = vld [vmem:[%s4 + $0x160] sm:$0xff]
  %v1719 = vld [vmem:[%s4 + $0x168] sm:$0xff]
  %v1720 = vld [vmem:[%s4 + $0x170] sm:$0xff]
  %v1721 = vld [vmem:[%s4 + $0x178] sm:$0xff]
  %v1722 = vld [vmem:[%s4 + $0x180] sm:$0xff]
  %v1723 = vld [vmem:[%s4 + $0x188] sm:$0xff]
  %v1724 = vld [vmem:[%s4 + $0x190] sm:$0xff]
  %v1725 = vld [vmem:[%s4 + $0x198] sm:$0xff]
  %v1726 = vld [vmem:[%s4 + $0x1a0] sm:$0xff]
  %v1727 = vld [vmem:[%s4 + $0x1a8] sm:$0xff]
  %v1728 = vld [vmem:[%s4 + $0x1b0] sm:$0xff]
  %v1729 = vld [vmem:[%s4 + $0x1b8] sm:$0xff]
  %v1730 = vld [vmem:[%s4 + $0x1c0] sm:$0xff]
  %v1731 = vld [vmem:[%s4 + $0x1c8] sm:$0xff]
  %v1732 = vld [vmem:[%s4 + $0x1d0] sm:$0xff]
  %v1733 = vld [vmem:[%s4 + $0x1d8] sm:$0xff]
  %v1734 = vld [vmem:[%s4 + $0x1e0] sm:$0xff]
  %v1735 = vld [vmem:[%s4 + $0x1e8] sm:$0xff]
  %v1736 = vld [vmem:[%s4 + $0x1f0] sm:$0xff]
  %v1737 = vld [vmem:[%s4 + $0x1f8] sm:$0xff]
  %1738 = vmatpush.msra.mxu0 %v1734
  %1739 = vmatpush.msra.mxu0 %v1730
  %1740 = vmatpush.msra.mxu0 %v1726
  %1741 = vmatpush.msra.mxu0 %v1722
  %1742 = vmatpush.msra.mxu0 %v1718
  %1743 = vmatpush.msra.mxu0 %v1714
  %1744 = vmatpush.msra.mxu0 %v1710
  %1745 = vmatpush.msra.mxu0 %v1706
  %1746 = vmatpush.msra.mxu0 %v1702
  %1747 = vmatpush.msra.mxu0 %v1698
  %1748 = vmatpush.msra.mxu0 %v1694
  %1749 = vmatpush.msra.mxu0 %v1690
  %1750 = vmatpush.msra.mxu0 %v1686
  %1751 = vmatpush.msra.mxu0 %v1682
  %1752 = vmatpush.msra.mxu0 %v1678
  %1753 = vmatpush.msra.mxu0 %v1674
  %1754 = vmatmul.f32.gmra.mxu0 %v1671
  %v1755 = vpop.f32.mrf.mxu0
  %v1756 = vadd.f32 0.0, %v1755
  %1757 = vdwg.mxu0
  %1758 = vmatpush.msra.mxu0 %v1735
  %1759 = vmatpush.msra.mxu0 %v1731
  %1760 = vmatpush.msra.mxu0 %v1727
  %1761 = vmatpush.msra.mxu0 %v1723
  %1762 = vmatpush.msra.mxu0 %v1719
  %1763 = vmatpush.msra.mxu0 %v1715
  %1764 = vmatpush.msra.mxu0 %v1711
  %1765 = vmatpush.msra.mxu0 %v1707
  %1766 = vmatpush.msra.mxu0 %v1703
  %1767 = vmatpush.msra.mxu0 %v1699
  %1768 = vmatpush.msra.mxu0 %v1695
  %1769 = vmatpush.msra.mxu0 %v1691
  %1770 = vmatpush.msra.mxu0 %v1687
  %1771 = vmatpush.msra.mxu0 %v1683
  %1772 = vmatpush.msra.mxu0 %v1679
  %1773 = vmatpush.msra.mxu0 %v1675
  %1774 = vmatmul.f32.gmra.mxu0 %v1671
  %v1775 = vpop.f32.mrf.mxu0
  %v1776 = vadd.f32 0.0, %v1775
  %1777 = vdwg.mxu0
  %1778 = vmatpush.msra.mxu0 %v1736
  %1779 = vmatpush.msra.mxu0 %v1732
  %1780 = vmatpush.msra.mxu0 %v1728
  %1781 = vmatpush.msra.mxu0 %v1724
  %1782 = vmatpush.msra.mxu0 %v1720
  %1783 = vmatpush.msra.mxu0 %v1716
  %1784 = vmatpush.msra.mxu0 %v1712
  %1785 = vmatpush.msra.mxu0 %v1708
  %1786 = vmatpush.msra.mxu0 %v1704
  %1787 = vmatpush.msra.mxu0 %v1700
  %1788 = vmatpush.msra.mxu0 %v1696
  %1789 = vmatpush.msra.mxu0 %v1692
  %1790 = vmatpush.msra.mxu0 %v1688
  %1791 = vmatpush.msra.mxu0 %v1684
  %1792 = vmatpush.msra.mxu0 %v1680
  %1793 = vmatpush.msra.mxu0 %v1676
  %1794 = vmatmul.f32.gmra.mxu0 %v1671
  %v1795 = vpop.f32.mrf.mxu0
  %v1796 = vadd.f32 0.0, %v1795
  %1797 = vdwg.mxu0
  %1798 = vmatpush.msra.mxu0 %v1737
  %1799 = vmatpush.msra.mxu0 %v1733
  %1800 = vmatpush.msra.mxu0 %v1729
  %1801 = vmatpush.msra.mxu0 %v1725
  %1802 = vmatpush.msra.mxu0 %v1721
  %1803 = vmatpush.msra.mxu0 %v1717
  %1804 = vmatpush.msra.mxu0 %v1713
  %1805 = vmatpush.msra.mxu0 %v1709
  %1806 = vmatpush.msra.mxu0 %v1705
  %1807 = vmatpush.msra.mxu0 %v1701
  %1808 = vmatpush.msra.mxu0 %v1697
  %1809 = vmatpush.msra.mxu0 %v1693
  %1810 = vmatpush.msra.mxu0 %v1689
  %1811 = vmatpush.msra.mxu0 %v1685
  %1812 = vmatpush.msra.mxu0 %v1681
  %1813 = vmatpush.msra.mxu0 %v1677
  %1814 = vmatmul.f32.gmra.mxu0 %v1671
  %v1815 = vpop.f32.mrf.mxu0
  %v1816 = vadd.f32 0.0, %v1815
  %1817 = vdwg.mxu0
  %v1818 = vadd.f32 %v178, %v1756
  %v1819 = vadd.f32 %v179, %v1776
  %v1820 = vadd.f32 %v180, %v1796
  %v1821 = vadd.f32 %v181, %v1816
  %v1822 = vxor.u32 %v1818, 2147483648
  %v1823 = vmul.f32 %v1822, 1.442695
  %v1824 = vpow.pop %v1823
  %v1825 = vadd.f32 %v1824, 1.0
  %v1826 = vrcp.pop %v1825
  %v1827 = vmul.f32 %v1825, %v1826
  %v1828 = vsub.f32 1.0, %v1827
  %v1829 = vmul.f32 %v1826, %v1828
  %v1830 = vadd.f32 %v1826, %v1829
  %vm1831 = vweird.f32 %v1825
  %vm1832 = vweird.f32 %v1826
  %vm1833 = vmor %vm1831, %vm1832
  %v1834 = vsel %vm1833, %v1826, %v1830
  %v1835 = vand.u32 2147483647, %v1825
  %vm1836 = vcmp.eq.f32.partialorder %v1835, 8.507059e+37
  %v1837 = vand.u32 %v1825, 2147483648
  %v1838 = vor.u32 1.1754944e-38, %v1837
  %v1839 = vsel %vm1836, %v1838, %v1834
  %v1840 = vmul.f32 1.0, %v1839
  %v1841 = vxor.u32 %v1819, 2147483648
  %v1842 = vmul.f32 %v1841, 1.442695
  %v1843 = vpow.pop %v1842
  %v1844 = vadd.f32 %v1843, 1.0
  %v1845 = vrcp.pop %v1844
  %v1846 = vmul.f32 %v1844, %v1845
  %v1847 = vsub.f32 1.0, %v1846
  %v1848 = vmul.f32 %v1845, %v1847
  %v1849 = vadd.f32 %v1845, %v1848
  %vm1850 = vweird.f32 %v1844
  %vm1851 = vweird.f32 %v1845
  %vm1852 = vmor %vm1850, %vm1851
  %v1853 = vsel %vm1852, %v1845, %v1849
  %v1854 = vand.u32 2147483647, %v1844
  %vm1855 = vcmp.eq.f32.partialorder %v1854, 8.507059e+37
  %v1856 = vand.u32 %v1844, 2147483648
  %v1857 = vor.u32 1.1754944e-38, %v1856
  %v1858 = vsel %vm1855, %v1857, %v1853
  %v1859 = vmul.f32 1.0, %v1858
  %v1860 = vtanh.pop %v1820
  %v1861 = vxor.u32 %v1821, 2147483648
  %v1862 = vmul.f32 %v1861, 1.442695
  %v1863 = vpow.pop %v1862
  %v1864 = vadd.f32 %v1863, 1.0
  %v1865 = vrcp.pop %v1864
  %v1866 = vmul.f32 %v1864, %v1865
  %v1867 = vsub.f32 1.0, %v1866
  %v1868 = vmul.f32 %v1865, %v1867
  %v1869 = vadd.f32 %v1865, %v1868
  %vm1870 = vweird.f32 %v1864
  %vm1871 = vweird.f32 %v1865
  %vm1872 = vmor %vm1870, %vm1871
  %v1873 = vsel %vm1872, %v1865, %v1869
  %v1874 = vand.u32 2147483647, %v1864
  %vm1875 = vcmp.eq.f32.partialorder %v1874, 8.507059e+37
  %v1876 = vand.u32 %v1864, 2147483648
  %v1877 = vor.u32 1.1754944e-38, %v1876
  %v1878 = vsel %vm1875, %v1877, %v1873
  %v1879 = vmul.f32 1.0, %v1878
  %v1880 = vmul.f32 %v1859, %v1669
  %v1881 = vmul.f32 %v1840, %v1860
  %v1882 = vadd.f32 %v1880, %v1881
  %v1883 = vtanh.pop %v1882
  %v1884 = vmul.f32 %v1879, %v1883
  %s1885 = scalar_lea.vmem %s6, 56
  %1886 = vst [vmem:[%s1885] sm:$0xff] %v1884
  %v1887 = vld [vmem:[%s6] sm:$0xff]
  %v1888 = vld [vmem:[%s6 + $0x8] sm:$0xff]
  %v1889 = vld [vmem:[%s6 + $0x10] sm:$0xff]
  %v1890 = vld [vmem:[%s6 + $0x18] sm:$0xff]
  %v1891 = vld [vmem:[%s6 + $0x20] sm:$0xff]
  %v1892 = vld [vmem:[%s6 + $0x28] sm:$0xff]
  %v1893 = vld [vmem:[%s6 + $0x30] sm:$0xff]
  %v1894 = vld [vmem:[%s6 + $0x38] sm:$0xff]
  %s1895 = scalar_lea.vmem %s3, 512
  %v1896 = vld [vmem:[%s1895] sm:$0xff]
  %v1897 = vld [vmem:[%s1895 + $0x8] sm:$0xff]
  %v1898 = vld [vmem:[%s1895 + $0x10] sm:$0xff]
  %v1899 = vld [vmem:[%s1895 + $0x18] sm:$0xff]
  %v1900 = vld [vmem:[%s1895 + $0x20] sm:$0xff]
  %v1901 = vld [vmem:[%s1895 + $0x28] sm:$0xff]
  %v1902 = vld [vmem:[%s1895 + $0x30] sm:$0xff]
  %v1903 = vld [vmem:[%s1895 + $0x38] sm:$0xff]
  %v1904 = vld [vmem:[%s1895 + $0x40] sm:$0xff]
  %v1905 = vld [vmem:[%s1895 + $0x48] sm:$0xff]
  %v1906 = vld [vmem:[%s1895 + $0x50] sm:$0xff]
  %v1907 = vld [vmem:[%s1895 + $0x58] sm:$0xff]
  %v1908 = vld [vmem:[%s1895 + $0x60] sm:$0xff]
  %v1909 = vld [vmem:[%s1895 + $0x68] sm:$0xff]
  %v1910 = vld [vmem:[%s1895 + $0x70] sm:$0xff]
  %v1911 = vld [vmem:[%s1895 + $0x78] sm:$0xff]
  %v1912 = vld [vmem:[%s1895 + $0x80] sm:$0xff]
  %v1913 = vld [vmem:[%s1895 + $0x88] sm:$0xff]
  %v1914 = vld [vmem:[%s1895 + $0x90] sm:$0xff]
  %v1915 = vld [vmem:[%s1895 + $0x98] sm:$0xff]
  %v1916 = vld [vmem:[%s1895 + $0xa0] sm:$0xff]
  %v1917 = vld [vmem:[%s1895 + $0xa8] sm:$0xff]
  %v1918 = vld [vmem:[%s1895 + $0xb0] sm:$0xff]
  %v1919 = vld [vmem:[%s1895 + $0xb8] sm:$0xff]
  %v1920 = vld [vmem:[%s1895 + $0xc0] sm:$0xff]
  %v1921 = vld [vmem:[%s1895 + $0xc8] sm:$0xff]
  %v1922 = vld [vmem:[%s1895 + $0xd0] sm:$0xff]
  %v1923 = vld [vmem:[%s1895 + $0xd8] sm:$0xff]
  %v1924 = vld [vmem:[%s1895 + $0xe0] sm:$0xff]
  %v1925 = vld [vmem:[%s1895 + $0xe8] sm:$0xff]
  %v1926 = vld [vmem:[%s1895 + $0xf0] sm:$0xff]
  %v1927 = vld [vmem:[%s1895 + $0xf8] sm:$0xff]
  %v1928 = vld [vmem:[%s1895 + $0x100] sm:$0xff]
  %v1929 = vld [vmem:[%s1895 + $0x108] sm:$0xff]
  %v1930 = vld [vmem:[%s1895 + $0x110] sm:$0xff]
  %v1931 = vld [vmem:[%s1895 + $0x118] sm:$0xff]
  %v1932 = vld [vmem:[%s1895 + $0x120] sm:$0xff]
  %v1933 = vld [vmem:[%s1895 + $0x128] sm:$0xff]
  %v1934 = vld [vmem:[%s1895 + $0x130] sm:$0xff]
  %v1935 = vld [vmem:[%s1895 + $0x138] sm:$0xff]
  %v1936 = vld [vmem:[%s1895 + $0x140] sm:$0xff]
  %v1937 = vld [vmem:[%s1895 + $0x148] sm:$0xff]
  %v1938 = vld [vmem:[%s1895 + $0x150] sm:$0xff]
  %v1939 = vld [vmem:[%s1895 + $0x158] sm:$0xff]
  %v1940 = vld [vmem:[%s1895 + $0x160] sm:$0xff]
  %v1941 = vld [vmem:[%s1895 + $0x168] sm:$0xff]
  %v1942 = vld [vmem:[%s1895 + $0x170] sm:$0xff]
  %v1943 = vld [vmem:[%s1895 + $0x178] sm:$0xff]
  %v1944 = vld [vmem:[%s1895 + $0x180] sm:$0xff]
  %v1945 = vld [vmem:[%s1895 + $0x188] sm:$0xff]
  %v1946 = vld [vmem:[%s1895 + $0x190] sm:$0xff]
  %v1947 = vld [vmem:[%s1895 + $0x198] sm:$0xff]
  %v1948 = vld [vmem:[%s1895 + $0x1a0] sm:$0xff]
  %v1949 = vld [vmem:[%s1895 + $0x1a8] sm:$0xff]
  %v1950 = vld [vmem:[%s1895 + $0x1b0] sm:$0xff]
  %v1951 = vld [vmem:[%s1895 + $0x1b8] sm:$0xff]
  %v1952 = vld [vmem:[%s1895 + $0x1c0] sm:$0xff]
  %v1953 = vld [vmem:[%s1895 + $0x1c8] sm:$0xff]
  %v1954 = vld [vmem:[%s1895 + $0x1d0] sm:$0xff]
  %v1955 = vld [vmem:[%s1895 + $0x1d8] sm:$0xff]
  %v1956 = vld [vmem:[%s1895 + $0x1e0] sm:$0xff]
  %v1957 = vld [vmem:[%s1895 + $0x1e8] sm:$0xff]
  %v1958 = vld [vmem:[%s1895 + $0x1f0] sm:$0xff]
  %v1959 = vld [vmem:[%s1895 + $0x1f8] sm:$0xff]
  %s1960 = scalar_lea.vmem %s5, 4
  %v1961 = vld [vmem:[%s1960] sm:$0xf]
  %v1963 = vperm.slane %v1961, 0
  %v1964 = vperm.slane %v1961, 1
  %v1965 = vperm.slane %v1961, 2
  %v1966 = vperm.slane %v1961, 3
  %1971 = vmatpush.msra.mxu0 %v1956
  %1972 = vmatpush.msra.mxu0 %v1952
  %1973 = vmatpush.msra.mxu0 %v1948
  %1974 = vmatpush.msra.mxu0 %v1944
  %1975 = vmatpush.msra.mxu0 %v1940
  %1976 = vmatpush.msra.mxu0 %v1936
  %1977 = vmatpush.msra.mxu0 %v1932
  %1978 = vmatpush.msra.mxu0 %v1928
  %1979 = vmatpush.msra.mxu0 %v1924
  %1980 = vmatpush.msra.mxu0 %v1920
  %1981 = vmatpush.msra.mxu0 %v1916
  %1982 = vmatpush.msra.mxu0 %v1912
  %1983 = vmatpush.msra.mxu0 %v1908
  %1984 = vmatpush.msra.mxu0 %v1904
  %1985 = vmatpush.msra.mxu0 %v1900
  %1986 = vmatpush.msra.mxu0 %v1896
  %1987 = vmatmul.f32.gmra.mxu0 %v1887
  %v1988 = vpop.f32.mrf.mxu0
  %v1989 = vadd.f32 %v1963, %v1988
  %1990 = vmatmul.f32.gmra.mxu0 %v1888
  %v1991 = vpop.f32.mrf.mxu0
  %v1992 = vadd.f32 %v1963, %v1991
  %1993 = vmatmul.f32.gmra.mxu0 %v1889
  %v1994 = vpop.f32.mrf.mxu0
  %v1995 = vadd.f32 %v1963, %v1994
  %1996 = vmatmul.f32.gmra.mxu0 %v1890
  %v1997 = vpop.f32.mrf.mxu0
  %v1998 = vadd.f32 %v1963, %v1997
  %1999 = vmatmul.f32.gmra.mxu0 %v1891
  %v2000 = vpop.f32.mrf.mxu0
  %v2001 = vadd.f32 %v1963, %v2000
  %2002 = vmatmul.f32.gmra.mxu0 %v1892
  %v2003 = vpop.f32.mrf.mxu0
  %v2004 = vadd.f32 %v1963, %v2003
  %2005 = vmatmul.f32.gmra.mxu0 %v1893
  %v2006 = vpop.f32.mrf.mxu0
  %v2007 = vadd.f32 %v1963, %v2006
  %2008 = vmatmul.f32.gmra.mxu0 %v1894
  %v2009 = vpop.f32.mrf.mxu0
  %v2010 = vadd.f32 %v1963, %v2009
  %2011 = vdwg.mxu0
  %2012 = vmatpush.msra.mxu0 %v1957
  %2013 = vmatpush.msra.mxu0 %v1953
  %2014 = vmatpush.msra.mxu0 %v1949
  %2015 = vmatpush.msra.mxu0 %v1945
  %2016 = vmatpush.msra.mxu0 %v1941
  %2017 = vmatpush.msra.mxu0 %v1937
  %2018 = vmatpush.msra.mxu0 %v1933
  %2019 = vmatpush.msra.mxu0 %v1929
  %2020 = vmatpush.msra.mxu0 %v1925
  %2021 = vmatpush.msra.mxu0 %v1921
  %2022 = vmatpush.msra.mxu0 %v1917
  %2023 = vmatpush.msra.mxu0 %v1913
  %2024 = vmatpush.msra.mxu0 %v1909
  %2025 = vmatpush.msra.mxu0 %v1905
  %2026 = vmatpush.msra.mxu0 %v1901
  %2027 = vmatpush.msra.mxu0 %v1897
  %2028 = vmatmul.f32.gmra.mxu0 %v1887
  %v2029 = vpop.f32.mrf.mxu0
  %v2030 = vadd.f32 %v1964, %v2029
  %2031 = vmatmul.f32.gmra.mxu0 %v1888
  %v2032 = vpop.f32.mrf.mxu0
  %v2033 = vadd.f32 %v1964, %v2032
  %2034 = vmatmul.f32.gmra.mxu0 %v1889
  %v2035 = vpop.f32.mrf.mxu0
  %v2036 = vadd.f32 %v1964, %v2035
  %2037 = vmatmul.f32.gmra.mxu0 %v1890
  %v2038 = vpop.f32.mrf.mxu0
  %v2039 = vadd.f32 %v1964, %v2038
  %2040 = vmatmul.f32.gmra.mxu0 %v1891
  %v2041 = vpop.f32.mrf.mxu0
  %v2042 = vadd.f32 %v1964, %v2041
  %2043 = vmatmul.f32.gmra.mxu0 %v1892
  %v2044 = vpop.f32.mrf.mxu0
  %v2045 = vadd.f32 %v1964, %v2044
  %2046 = vmatmul.f32.gmra.mxu0 %v1893
  %v2047 = vpop.f32.mrf.mxu0
  %v2048 = vadd.f32 %v1964, %v2047
  %2049 = vmatmul.f32.gmra.mxu0 %v1894
  %v2050 = vpop.f32.mrf.mxu0
  %v2051 = vadd.f32 %v1964, %v2050
  %2052 = vdwg.mxu0
  %2053 = vmatpush.msra.mxu0 %v1958
  %2054 = vmatpush.msra.mxu0 %v1954
  %2055 = vmatpush.msra.mxu0 %v1950
  %2056 = vmatpush.msra.mxu0 %v1946
  %2057 = vmatpush.msra.mxu0 %v1942
  %2058 = vmatpush.msra.mxu0 %v1938
  %2059 = vmatpush.msra.mxu0 %v1934
  %2060 = vmatpush.msra.mxu0 %v1930
  %2061 = vmatpush.msra.mxu0 %v1926
  %2062 = vmatpush.msra.mxu0 %v1922
  %2063 = vmatpush.msra.mxu0 %v1918
  %2064 = vmatpush.msra.mxu0 %v1914
  %2065 = vmatpush.msra.mxu0 %v1910
  %2066 = vmatpush.msra.mxu0 %v1906
  %2067 = vmatpush.msra.mxu0 %v1902
  %2068 = vmatpush.msra.mxu0 %v1898
  %2069 = vmatmul.f32.gmra.mxu0 %v1887
  %v2070 = vpop.f32.mrf.mxu0
  %v2071 = vadd.f32 %v1965, %v2070
  %2072 = vmatmul.f32.gmra.mxu0 %v1888
  %v2073 = vpop.f32.mrf.mxu0
  %v2074 = vadd.f32 %v1965, %v2073
  %2075 = vmatmul.f32.gmra.mxu0 %v1889
  %v2076 = vpop.f32.mrf.mxu0
  %v2077 = vadd.f32 %v1965, %v2076
  %2078 = vmatmul.f32.gmra.mxu0 %v1890
  %v2079 = vpop.f32.mrf.mxu0
  %v2080 = vadd.f32 %v1965, %v2079
  %2081 = vmatmul.f32.gmra.mxu0 %v1891
  %v2082 = vpop.f32.mrf.mxu0
  %v2083 = vadd.f32 %v1965, %v2082
  %2084 = vmatmul.f32.gmra.mxu0 %v1892
  %v2085 = vpop.f32.mrf.mxu0
  %v2086 = vadd.f32 %v1965, %v2085
  %2087 = vmatmul.f32.gmra.mxu0 %v1893
  %v2088 = vpop.f32.mrf.mxu0
  %v2089 = vadd.f32 %v1965, %v2088
  %2090 = vmatmul.f32.gmra.mxu0 %v1894
  %v2091 = vpop.f32.mrf.mxu0
  %v2092 = vadd.f32 %v1965, %v2091
  %2093 = vdwg.mxu0
  %2094 = vmatpush.msra.mxu0 %v1959
  %2095 = vmatpush.msra.mxu0 %v1955
  %2096 = vmatpush.msra.mxu0 %v1951
  %2097 = vmatpush.msra.mxu0 %v1947
  %2098 = vmatpush.msra.mxu0 %v1943
  %2099 = vmatpush.msra.mxu0 %v1939
  %2100 = vmatpush.msra.mxu0 %v1935
  %2101 = vmatpush.msra.mxu0 %v1931
  %2102 = vmatpush.msra.mxu0 %v1927
  %2103 = vmatpush.msra.mxu0 %v1923
  %2104 = vmatpush.msra.mxu0 %v1919
  %2105 = vmatpush.msra.mxu0 %v1915
  %2106 = vmatpush.msra.mxu0 %v1911
  %2107 = vmatpush.msra.mxu0 %v1907
  %2108 = vmatpush.msra.mxu0 %v1903
  %2109 = vmatpush.msra.mxu0 %v1899
  %2110 = vmatmul.f32.gmra.mxu0 %v1887
  %v2111 = vpop.f32.mrf.mxu0
  %v2112 = vadd.f32 %v1966, %v2111
  %2113 = vmatmul.f32.gmra.mxu0 %v1888
  %v2114 = vpop.f32.mrf.mxu0
  %v2115 = vadd.f32 %v1966, %v2114
  %2116 = vmatmul.f32.gmra.mxu0 %v1889
  %v2117 = vpop.f32.mrf.mxu0
  %v2118 = vadd.f32 %v1966, %v2117
  %2119 = vmatmul.f32.gmra.mxu0 %v1890
  %v2120 = vpop.f32.mrf.mxu0
  %v2121 = vadd.f32 %v1966, %v2120
  %2122 = vmatmul.f32.gmra.mxu0 %v1891
  %v2123 = vpop.f32.mrf.mxu0
  %v2124 = vadd.f32 %v1966, %v2123
  %2125 = vmatmul.f32.gmra.mxu0 %v1892
  %v2126 = vpop.f32.mrf.mxu0
  %v2127 = vadd.f32 %v1966, %v2126
  %2128 = vmatmul.f32.gmra.mxu0 %v1893
  %v2129 = vpop.f32.mrf.mxu0
  %v2130 = vadd.f32 %v1966, %v2129
  %2131 = vmatmul.f32.gmra.mxu0 %v1894
  %v2132 = vpop.f32.mrf.mxu0
  %v2133 = vadd.f32 %v1966, %v2132
  %2134 = vdwg.mxu0
  %2135 = vst [vmem:[#allocation2] sm:$0xff] %v1989
  %2136 = vst [vmem:[#allocation2 + $0x8] sm:$0xff] %v2030
  %2137 = vst [vmem:[#allocation2 + $0x10] sm:$0xff] %v2071
  %2138 = vst [vmem:[#allocation2 + $0x18] sm:$0xff] %v2112
  %2139 = vst [vmem:[#allocation2 + $0x20] sm:$0xff] %v1992
  %2140 = vst [vmem:[#allocation2 + $0x28] sm:$0xff] %v2033
  %2141 = vst [vmem:[#allocation2 + $0x30] sm:$0xff] %v2074
  %2142 = vst [vmem:[#allocation2 + $0x38] sm:$0xff] %v2115
  %2143 = vst [vmem:[#allocation2 + $0x40] sm:$0xff] %v1995
  %2144 = vst [vmem:[#allocation2 + $0x48] sm:$0xff] %v2036
  %2145 = vst [vmem:[#allocation2 + $0x50] sm:$0xff] %v2077
  %2146 = vst [vmem:[#allocation2 + $0x58] sm:$0xff] %v2118
  %2147 = vst [vmem:[#allocation2 + $0x60] sm:$0xff] %v1998
  %2148 = vst [vmem:[#allocation2 + $0x68] sm:$0xff] %v2039
  %2149 = vst [vmem:[#allocation2 + $0x70] sm:$0xff] %v2080
  %2150 = vst [vmem:[#allocation2 + $0x78] sm:$0xff] %v2121
  %2151 = vst [vmem:[#allocation2 + $0x80] sm:$0xff] %v2001
  %2152 = vst [vmem:[#allocation2 + $0x88] sm:$0xff] %v2042
  %2153 = vst [vmem:[#allocation2 + $0x90] sm:$0xff] %v2083
  %2154 = vst [vmem:[#allocation2 + $0x98] sm:$0xff] %v2124
  %2155 = vst [vmem:[#allocation2 + $0xa0] sm:$0xff] %v2004
  %2156 = vst [vmem:[#allocation2 + $0xa8] sm:$0xff] %v2045
  %2157 = vst [vmem:[#allocation2 + $0xb0] sm:$0xff] %v2086
  %2158 = vst [vmem:[#allocation2 + $0xb8] sm:$0xff] %v2127
  %2159 = vst [vmem:[#allocation2 + $0xc0] sm:$0xff] %v2007
  %2160 = vst [vmem:[#allocation2 + $0xc8] sm:$0xff] %v2048
  %2161 = vst [vmem:[#allocation2 + $0xd0] sm:$0xff] %v2089
  %2162 = vst [vmem:[#allocation2 + $0xd8] sm:$0xff] %v2130
  %2163 = vst [vmem:[#allocation2 + $0xe0] sm:$0xff] %v2010
  %2164 = vst [vmem:[#allocation2 + $0xe8] sm:$0xff] %v2051
  %2165 = vst [vmem:[#allocation2 + $0xf0] sm:$0xff] %v2092
  %2166 = vst [vmem:[#allocation2 + $0xf8] sm:$0xff] %v2133
  %s2167 = scalar_lea.vmem %s1, 8
  %v2168 = vld [vmem:[%s2167] sm:$0xff]
  %v2169 = vld [vmem:[%s2] sm:$0xff]
  %v2170 = vld [vmem:[#allocation2] sm:$0xff]
  %v2171 = vld [vmem:[#allocation2 + $0x8] sm:$0xff]
  %v2172 = vld [vmem:[#allocation2 + $0x10] sm:$0xff]
  %v2173 = vld [vmem:[#allocation2 + $0x18] sm:$0xff]
  %s2174 = scalar_lea.vmem %s4, 512
  %v2175 = vld [vmem:[%s2174] sm:$0xff]
  %v2176 = vld [vmem:[%s2174 + $0x8] sm:$0xff]
  %v2177 = vld [vmem:[%s2174 + $0x10] sm:$0xff]
  %v2178 = vld [vmem:[%s2174 + $0x18] sm:$0xff]
  %v2179 = vld [vmem:[%s2174 + $0x20] sm:$0xff]
  %v2180 = vld [vmem:[%s2174 + $0x28] sm:$0xff]
  %v2181 = vld [vmem:[%s2174 + $0x30] sm:$0xff]
  %v2182 = vld [vmem:[%s2174 + $0x38] sm:$0xff]
  %v2183 = vld [vmem:[%s2174 + $0x40] sm:$0xff]
  %v2184 = vld [vmem:[%s2174 + $0x48] sm:$0xff]
  %v2185 = vld [vmem:[%s2174 + $0x50] sm:$0xff]
  %v2186 = vld [vmem:[%s2174 + $0x58] sm:$0xff]
  %v2187 = vld [vmem:[%s2174 + $0x60] sm:$0xff]
  %v2188 = vld [vmem:[%s2174 + $0x68] sm:$0xff]
  %v2189 = vld [vmem:[%s2174 + $0x70] sm:$0xff]
  %v2190 = vld [vmem:[%s2174 + $0x78] sm:$0xff]
  %v2191 = vld [vmem:[%s2174 + $0x80] sm:$0xff]
  %v2192 = vld [vmem:[%s2174 + $0x88] sm:$0xff]
  %v2193 = vld [vmem:[%s2174 + $0x90] sm:$0xff]
  %v2194 = vld [vmem:[%s2174 + $0x98] sm:$0xff]
  %v2195 = vld [vmem:[%s2174 + $0xa0] sm:$0xff]
  %v2196 = vld [vmem:[%s2174 + $0xa8] sm:$0xff]
  %v2197 = vld [vmem:[%s2174 + $0xb0] sm:$0xff]
  %v2198 = vld [vmem:[%s2174 + $0xb8] sm:$0xff]
  %v2199 = vld [vmem:[%s2174 + $0xc0] sm:$0xff]
  %v2200 = vld [vmem:[%s2174 + $0xc8] sm:$0xff]
  %v2201 = vld [vmem:[%s2174 + $0xd0] sm:$0xff]
  %v2202 = vld [vmem:[%s2174 + $0xd8] sm:$0xff]
  %v2203 = vld [vmem:[%s2174 + $0xe0] sm:$0xff]
  %v2204 = vld [vmem:[%s2174 + $0xe8] sm:$0xff]
  %v2205 = vld [vmem:[%s2174 + $0xf0] sm:$0xff]
  %v2206 = vld [vmem:[%s2174 + $0xf8] sm:$0xff]
  %v2207 = vld [vmem:[%s2174 + $0x100] sm:$0xff]
  %v2208 = vld [vmem:[%s2174 + $0x108] sm:$0xff]
  %v2209 = vld [vmem:[%s2174 + $0x110] sm:$0xff]
  %v2210 = vld [vmem:[%s2174 + $0x118] sm:$0xff]
  %v2211 = vld [vmem:[%s2174 + $0x120] sm:$0xff]
  %v2212 = vld [vmem:[%s2174 + $0x128] sm:$0xff]
  %v2213 = vld [vmem:[%s2174 + $0x130] sm:$0xff]
  %v2214 = vld [vmem:[%s2174 + $0x138] sm:$0xff]
  %v2215 = vld [vmem:[%s2174 + $0x140] sm:$0xff]
  %v2216 = vld [vmem:[%s2174 + $0x148] sm:$0xff]
  %v2217 = vld [vmem:[%s2174 + $0x150] sm:$0xff]
  %v2218 = vld [vmem:[%s2174 + $0x158] sm:$0xff]
  %v2219 = vld [vmem:[%s2174 + $0x160] sm:$0xff]
  %v2220 = vld [vmem:[%s2174 + $0x168] sm:$0xff]
  %v2221 = vld [vmem:[%s2174 + $0x170] sm:$0xff]
  %v2222 = vld [vmem:[%s2174 + $0x178] sm:$0xff]
  %v2223 = vld [vmem:[%s2174 + $0x180] sm:$0xff]
  %v2224 = vld [vmem:[%s2174 + $0x188] sm:$0xff]
  %v2225 = vld [vmem:[%s2174 + $0x190] sm:$0xff]
  %v2226 = vld [vmem:[%s2174 + $0x198] sm:$0xff]
  %v2227 = vld [vmem:[%s2174 + $0x1a0] sm:$0xff]
  %v2228 = vld [vmem:[%s2174 + $0x1a8] sm:$0xff]
  %v2229 = vld [vmem:[%s2174 + $0x1b0] sm:$0xff]
  %v2230 = vld [vmem:[%s2174 + $0x1b8] sm:$0xff]
  %v2231 = vld [vmem:[%s2174 + $0x1c0] sm:$0xff]
  %v2232 = vld [vmem:[%s2174 + $0x1c8] sm:$0xff]
  %v2233 = vld [vmem:[%s2174 + $0x1d0] sm:$0xff]
  %v2234 = vld [vmem:[%s2174 + $0x1d8] sm:$0xff]
  %v2235 = vld [vmem:[%s2174 + $0x1e0] sm:$0xff]
  %v2236 = vld [vmem:[%s2174 + $0x1e8] sm:$0xff]
  %v2237 = vld [vmem:[%s2174 + $0x1f0] sm:$0xff]
  %v2238 = vld [vmem:[%s2174 + $0x1f8] sm:$0xff]
  %2239 = vmatpush.msra.mxu0 %v2235
  %2240 = vmatpush.msra.mxu0 %v2231
  %2241 = vmatpush.msra.mxu0 %v2227
  %2242 = vmatpush.msra.mxu0 %v2223
  %2243 = vmatpush.msra.mxu0 %v2219
  %2244 = vmatpush.msra.mxu0 %v2215
  %2245 = vmatpush.msra.mxu0 %v2211
  %2246 = vmatpush.msra.mxu0 %v2207
  %2247 = vmatpush.msra.mxu0 %v2203
  %2248 = vmatpush.msra.mxu0 %v2199
  %2249 = vmatpush.msra.mxu0 %v2195
  %2250 = vmatpush.msra.mxu0 %v2191
  %2251 = vmatpush.msra.mxu0 %v2187
  %2252 = vmatpush.msra.mxu0 %v2183
  %2253 = vmatpush.msra.mxu0 %v2179
  %2254 = vmatpush.msra.mxu0 %v2175
  %2255 = vmatmul.f32.gmra.mxu0 %v2168
  %v2256 = vpop.f32.mrf.mxu0
  %v2257 = vadd.f32 0.0, %v2256
  %2258 = vdwg.mxu0
  %2259 = vmatpush.msra.mxu0 %v2236
  %2260 = vmatpush.msra.mxu0 %v2232
  %2261 = vmatpush.msra.mxu0 %v2228
  %2262 = vmatpush.msra.mxu0 %v2224
  %2263 = vmatpush.msra.mxu0 %v2220
  %2264 = vmatpush.msra.mxu0 %v2216
  %2265 = vmatpush.msra.mxu0 %v2212
  %2266 = vmatpush.msra.mxu0 %v2208
  %2267 = vmatpush.msra.mxu0 %v2204
  %2268 = vmatpush.msra.mxu0 %v2200
  %2269 = vmatpush.msra.mxu0 %v2196
  %2270 = vmatpush.msra.mxu0 %v2192
  %2271 = vmatpush.msra.mxu0 %v2188
  %2272 = vmatpush.msra.mxu0 %v2184
  %2273 = vmatpush.msra.mxu0 %v2180
  %2274 = vmatpush.msra.mxu0 %v2176
  %2275 = vmatmul.f32.gmra.mxu0 %v2168
  %v2276 = vpop.f32.mrf.mxu0
  %v2277 = vadd.f32 0.0, %v2276
  %2278 = vdwg.mxu0
  %2279 = vmatpush.msra.mxu0 %v2237
  %2280 = vmatpush.msra.mxu0 %v2233
  %2281 = vmatpush.msra.mxu0 %v2229
  %2282 = vmatpush.msra.mxu0 %v2225
  %2283 = vmatpush.msra.mxu0 %v2221
  %2284 = vmatpush.msra.mxu0 %v2217
  %2285 = vmatpush.msra.mxu0 %v2213
  %2286 = vmatpush.msra.mxu0 %v2209
  %2287 = vmatpush.msra.mxu0 %v2205
  %2288 = vmatpush.msra.mxu0 %v2201
  %2289 = vmatpush.msra.mxu0 %v2197
  %2290 = vmatpush.msra.mxu0 %v2193
  %2291 = vmatpush.msra.mxu0 %v2189
  %2292 = vmatpush.msra.mxu0 %v2185
  %2293 = vmatpush.msra.mxu0 %v2181
  %2294 = vmatpush.msra.mxu0 %v2177
  %2295 = vmatmul.f32.gmra.mxu0 %v2168
  %v2296 = vpop.f32.mrf.mxu0
  %v2297 = vadd.f32 0.0, %v2296
  %2298 = vdwg.mxu0
  %2299 = vmatpush.msra.mxu0 %v2238
  %2300 = vmatpush.msra.mxu0 %v2234
  %2301 = vmatpush.msra.mxu0 %v2230
  %2302 = vmatpush.msra.mxu0 %v2226
  %2303 = vmatpush.msra.mxu0 %v2222
  %2304 = vmatpush.msra.mxu0 %v2218
  %2305 = vmatpush.msra.mxu0 %v2214
  %2306 = vmatpush.msra.mxu0 %v2210
  %2307 = vmatpush.msra.mxu0 %v2206
  %2308 = vmatpush.msra.mxu0 %v2202
  %2309 = vmatpush.msra.mxu0 %v2198
  %2310 = vmatpush.msra.mxu0 %v2194
  %2311 = vmatpush.msra.mxu0 %v2190
  %2312 = vmatpush.msra.mxu0 %v2186
  %2313 = vmatpush.msra.mxu0 %v2182
  %2314 = vmatpush.msra.mxu0 %v2178
  %2315 = vmatmul.f32.gmra.mxu0 %v2168
  %v2316 = vpop.f32.mrf.mxu0
  %v2317 = vadd.f32 0.0, %v2316
  %2318 = vdwg.mxu0
  %v2319 = vadd.f32 %v2170, %v2257
  %v2320 = vadd.f32 %v2171, %v2277
  %v2321 = vadd.f32 %v2172, %v2297
  %v2322 = vadd.f32 %v2173, %v2317
  %v2323 = vxor.u32 %v2319, 2147483648
  %v2324 = vmul.f32 %v2323, 1.442695
  %v2325 = vpow.pop %v2324
  %v2326 = vadd.f32 %v2325, 1.0
  %v2327 = vrcp.pop %v2326
  %v2328 = vmul.f32 %v2326, %v2327
  %v2329 = vsub.f32 1.0, %v2328
  %v2330 = vmul.f32 %v2327, %v2329
  %v2331 = vadd.f32 %v2327, %v2330
  %vm2332 = vweird.f32 %v2326
  %vm2333 = vweird.f32 %v2327
  %vm2334 = vmor %vm2332, %vm2333
  %v2335 = vsel %vm2334, %v2327, %v2331
  %v2336 = vand.u32 2147483647, %v2326
  %vm2337 = vcmp.eq.f32.partialorder %v2336, 8.507059e+37
  %v2338 = vand.u32 %v2326, 2147483648
  %v2339 = vor.u32 1.1754944e-38, %v2338
  %v2340 = vsel %vm2337, %v2339, %v2335
  %v2341 = vmul.f32 1.0, %v2340
  %v2342 = vxor.u32 %v2320, 2147483648
  %v2343 = vmul.f32 %v2342, 1.442695
  %v2344 = vpow.pop %v2343
  %v2345 = vadd.f32 %v2344, 1.0
  %v2346 = vrcp.pop %v2345
  %v2347 = vmul.f32 %v2345, %v2346
  %v2348 = vsub.f32 1.0, %v2347
  %v2349 = vmul.f32 %v2346, %v2348
  %v2350 = vadd.f32 %v2346, %v2349
  %vm2351 = vweird.f32 %v2345
  %vm2352 = vweird.f32 %v2346
  %vm2353 = vmor %vm2351, %vm2352
  %v2354 = vsel %vm2353, %v2346, %v2350
  %v2355 = vand.u32 2147483647, %v2345
  %vm2356 = vcmp.eq.f32.partialorder %v2355, 8.507059e+37
  %v2357 = vand.u32 %v2345, 2147483648
  %v2358 = vor.u32 1.1754944e-38, %v2357
  %v2359 = vsel %vm2356, %v2358, %v2354
  %v2360 = vmul.f32 1.0, %v2359
  %v2361 = vtanh.pop %v2321
  %v2362 = vxor.u32 %v2322, 2147483648
  %v2363 = vmul.f32 %v2362, 1.442695
  %v2364 = vpow.pop %v2363
  %v2365 = vadd.f32 %v2364, 1.0
  %v2366 = vrcp.pop %v2365
  %v2367 = vmul.f32 %v2365, %v2366
  %v2368 = vsub.f32 1.0, %v2367
  %v2369 = vmul.f32 %v2366, %v2368
  %v2370 = vadd.f32 %v2366, %v2369
  %vm2371 = vweird.f32 %v2365
  %vm2372 = vweird.f32 %v2366
  %vm2373 = vmor %vm2371, %vm2372
  %v2374 = vsel %vm2373, %v2366, %v2370
  %v2375 = vand.u32 2147483647, %v2365
  %vm2376 = vcmp.eq.f32.partialorder %v2375, 8.507059e+37
  %v2377 = vand.u32 %v2365, 2147483648
  %v2378 = vor.u32 1.1754944e-38, %v2377
  %v2379 = vsel %vm2376, %v2378, %v2374
  %v2380 = vmul.f32 1.0, %v2379
  %v2381 = vmul.f32 %v2360, %v2169
  %v2382 = vmul.f32 %v2341, %v2361
  %v2383 = vadd.f32 %v2381, %v2382
  %v2384 = vtanh.pop %v2383
  %v2385 = vmul.f32 %v2380, %v2384
  %2386 = vst [vmem:[%s6] sm:$0xff] %v2385
  %s2387 = scalar_lea.vmem [#allocation2], 32
  %v2388 = vld [vmem:[%s2387] sm:$0xff]
  %v2389 = vld [vmem:[%s2387 + $0x8] sm:$0xff]
  %v2390 = vld [vmem:[%s2387 + $0x10] sm:$0xff]
  %v2391 = vld [vmem:[%s2387 + $0x18] sm:$0xff]
  %v2392 = vld [vmem:[%s2174] sm:$0xff]
  %v2393 = vld [vmem:[%s2174 + $0x8] sm:$0xff]
  %v2394 = vld [vmem:[%s2174 + $0x10] sm:$0xff]
  %v2395 = vld [vmem:[%s2174 + $0x18] sm:$0xff]
  %v2396 = vld [vmem:[%s2174 + $0x20] sm:$0xff]
  %v2397 = vld [vmem:[%s2174 + $0x28] sm:$0xff]
  %v2398 = vld [vmem:[%s2174 + $0x30] sm:$0xff]
  %v2399 = vld [vmem:[%s2174 + $0x38] sm:$0xff]
  %v2400 = vld [vmem:[%s2174 + $0x40] sm:$0xff]
  %v2401 = vld [vmem:[%s2174 + $0x48] sm:$0xff]
  %v2402 = vld [vmem:[%s2174 + $0x50] sm:$0xff]
  %v2403 = vld [vmem:[%s2174 + $0x58] sm:$0xff]
  %v2404 = vld [vmem:[%s2174 + $0x60] sm:$0xff]
  %v2405 = vld [vmem:[%s2174 + $0x68] sm:$0xff]
  %v2406 = vld [vmem:[%s2174 + $0x70] sm:$0xff]
  %v2407 = vld [vmem:[%s2174 + $0x78] sm:$0xff]
  %v2408 = vld [vmem:[%s2174 + $0x80] sm:$0xff]
  %v2409 = vld [vmem:[%s2174 + $0x88] sm:$0xff]
  %v2410 = vld [vmem:[%s2174 + $0x90] sm:$0xff]
  %v2411 = vld [vmem:[%s2174 + $0x98] sm:$0xff]
  %v2412 = vld [vmem:[%s2174 + $0xa0] sm:$0xff]
  %v2413 = vld [vmem:[%s2174 + $0xa8] sm:$0xff]
  %v2414 = vld [vmem:[%s2174 + $0xb0] sm:$0xff]
  %v2415 = vld [vmem:[%s2174 + $0xb8] sm:$0xff]
  %v2416 = vld [vmem:[%s2174 + $0xc0] sm:$0xff]
  %v2417 = vld [vmem:[%s2174 + $0xc8] sm:$0xff]
  %v2418 = vld [vmem:[%s2174 + $0xd0] sm:$0xff]
  %v2419 = vld [vmem:[%s2174 + $0xd8] sm:$0xff]
  %v2420 = vld [vmem:[%s2174 + $0xe0] sm:$0xff]
  %v2421 = vld [vmem:[%s2174 + $0xe8] sm:$0xff]
  %v2422 = vld [vmem:[%s2174 + $0xf0] sm:$0xff]
  %v2423 = vld [vmem:[%s2174 + $0xf8] sm:$0xff]
  %v2424 = vld [vmem:[%s2174 + $0x100] sm:$0xff]
  %v2425 = vld [vmem:[%s2174 + $0x108] sm:$0xff]
  %v2426 = vld [vmem:[%s2174 + $0x110] sm:$0xff]
  %v2427 = vld [vmem:[%s2174 + $0x118] sm:$0xff]
  %v2428 = vld [vmem:[%s2174 + $0x120] sm:$0xff]
  %v2429 = vld [vmem:[%s2174 + $0x128] sm:$0xff]
  %v2430 = vld [vmem:[%s2174 + $0x130] sm:$0xff]
  %v2431 = vld [vmem:[%s2174 + $0x138] sm:$0xff]
  %v2432 = vld [vmem:[%s2174 + $0x140] sm:$0xff]
  %v2433 = vld [vmem:[%s2174 + $0x148] sm:$0xff]
  %v2434 = vld [vmem:[%s2174 + $0x150] sm:$0xff]
  %v2435 = vld [vmem:[%s2174 + $0x158] sm:$0xff]
  %v2436 = vld [vmem:[%s2174 + $0x160] sm:$0xff]
  %v2437 = vld [vmem:[%s2174 + $0x168] sm:$0xff]
  %v2438 = vld [vmem:[%s2174 + $0x170] sm:$0xff]
  %v2439 = vld [vmem:[%s2174 + $0x178] sm:$0xff]
  %v2440 = vld [vmem:[%s2174 + $0x180] sm:$0xff]
  %v2441 = vld [vmem:[%s2174 + $0x188] sm:$0xff]
  %v2442 = vld [vmem:[%s2174 + $0x190] sm:$0xff]
  %v2443 = vld [vmem:[%s2174 + $0x198] sm:$0xff]
  %v2444 = vld [vmem:[%s2174 + $0x1a0] sm:$0xff]
  %v2445 = vld [vmem:[%s2174 + $0x1a8] sm:$0xff]
  %v2446 = vld [vmem:[%s2174 + $0x1b0] sm:$0xff]
  %v2447 = vld [vmem:[%s2174 + $0x1b8] sm:$0xff]
  %v2448 = vld [vmem:[%s2174 + $0x1c0] sm:$0xff]
  %v2449 = vld [vmem:[%s2174 + $0x1c8] sm:$0xff]
  %v2450 = vld [vmem:[%s2174 + $0x1d0] sm:$0xff]
  %v2451 = vld [vmem:[%s2174 + $0x1d8] sm:$0xff]
  %v2452 = vld [vmem:[%s2174 + $0x1e0] sm:$0xff]
  %v2453 = vld [vmem:[%s2174 + $0x1e8] sm:$0xff]
  %v2454 = vld [vmem:[%s2174 + $0x1f0] sm:$0xff]
  %v2455 = vld [vmem:[%s2174 + $0x1f8] sm:$0xff]
  %2456 = vmatpush.msra.mxu0 %v2452
  %2457 = vmatpush.msra.mxu0 %v2448
  %2458 = vmatpush.msra.mxu0 %v2444
  %2459 = vmatpush.msra.mxu0 %v2440
  %2460 = vmatpush.msra.mxu0 %v2436
  %2461 = vmatpush.msra.mxu0 %v2432
  %2462 = vmatpush.msra.mxu0 %v2428
  %2463 = vmatpush.msra.mxu0 %v2424
  %2464 = vmatpush.msra.mxu0 %v2420
  %2465 = vmatpush.msra.mxu0 %v2416
  %2466 = vmatpush.msra.mxu0 %v2412
  %2467 = vmatpush.msra.mxu0 %v2408
  %2468 = vmatpush.msra.mxu0 %v2404
  %2469 = vmatpush.msra.mxu0 %v2400
  %2470 = vmatpush.msra.mxu0 %v2396
  %2471 = vmatpush.msra.mxu0 %v2392
  %2472 = vmatmul.f32.gmra.mxu0 %v2385
  %v2473 = vpop.f32.mrf.mxu0
  %v2474 = vadd.f32 0.0, %v2473
  %2475 = vdwg.mxu0
  %2476 = vmatpush.msra.mxu0 %v2453
  %2477 = vmatpush.msra.mxu0 %v2449
  %2478 = vmatpush.msra.mxu0 %v2445
  %2479 = vmatpush.msra.mxu0 %v2441
  %2480 = vmatpush.msra.mxu0 %v2437
  %2481 = vmatpush.msra.mxu0 %v2433
  %2482 = vmatpush.msra.mxu0 %v2429
  %2483 = vmatpush.msra.mxu0 %v2425
  %2484 = vmatpush.msra.mxu0 %v2421
  %2485 = vmatpush.msra.mxu0 %v2417
  %2486 = vmatpush.msra.mxu0 %v2413
  %2487 = vmatpush.msra.mxu0 %v2409
  %2488 = vmatpush.msra.mxu0 %v2405
  %2489 = vmatpush.msra.mxu0 %v2401
  %2490 = vmatpush.msra.mxu0 %v2397
  %2491 = vmatpush.msra.mxu0 %v2393
  %2492 = vmatmul.f32.gmra.mxu0 %v2385
  %v2493 = vpop.f32.mrf.mxu0
  %v2494 = vadd.f32 0.0, %v2493
  %2495 = vdwg.mxu0
  %2496 = vmatpush.msra.mxu0 %v2454
  %2497 = vmatpush.msra.mxu0 %v2450
  %2498 = vmatpush.msra.mxu0 %v2446
  %2499 = vmatpush.msra.mxu0 %v2442
  %2500 = vmatpush.msra.mxu0 %v2438
  %2501 = vmatpush.msra.mxu0 %v2434
  %2502 = vmatpush.msra.mxu0 %v2430
  %2503 = vmatpush.msra.mxu0 %v2426
  %2504 = vmatpush.msra.mxu0 %v2422
  %2505 = vmatpush.msra.mxu0 %v2418
  %2506 = vmatpush.msra.mxu0 %v2414
  %2507 = vmatpush.msra.mxu0 %v2410
  %2508 = vmatpush.msra.mxu0 %v2406
  %2509 = vmatpush.msra.mxu0 %v2402
  %2510 = vmatpush.msra.mxu0 %v2398
  %2511 = vmatpush.msra.mxu0 %v2394
  %2512 = vmatmul.f32.gmra.mxu0 %v2385
  %v2513 = vpop.f32.mrf.mxu0
  %v2514 = vadd.f32 0.0, %v2513
  %2515 = vdwg.mxu0
  %2516 = vmatpush.msra.mxu0 %v2455
  %2517 = vmatpush.msra.mxu0 %v2451
  %2518 = vmatpush.msra.mxu0 %v2447
  %2519 = vmatpush.msra.mxu0 %v2443
  %2520 = vmatpush.msra.mxu0 %v2439
  %2521 = vmatpush.msra.mxu0 %v2435
  %2522 = vmatpush.msra.mxu0 %v2431
  %2523 = vmatpush.msra.mxu0 %v2427
  %2524 = vmatpush.msra.mxu0 %v2423
  %2525 = vmatpush.msra.mxu0 %v2419
  %2526 = vmatpush.msra.mxu0 %v2415
  %2527 = vmatpush.msra.mxu0 %v2411
  %2528 = vmatpush.msra.mxu0 %v2407
  %2529 = vmatpush.msra.mxu0 %v2403
  %2530 = vmatpush.msra.mxu0 %v2399
  %2531 = vmatpush.msra.mxu0 %v2395
  %2532 = vmatmul.f32.gmra.mxu0 %v2385
  %v2533 = vpop.f32.mrf.mxu0
  %v2534 = vadd.f32 0.0, %v2533
  %2535 = vdwg.mxu0
  %v2536 = vadd.f32 %v2388, %v2474
  %v2537 = vadd.f32 %v2389, %v2494
  %v2538 = vadd.f32 %v2390, %v2514
  %v2539 = vadd.f32 %v2391, %v2534
  %v2540 = vxor.u32 %v2536, 2147483648
  %v2541 = vmul.f32 %v2540, 1.442695
  %v2542 = vpow.pop %v2541
  %v2543 = vadd.f32 %v2542, 1.0
  %v2544 = vrcp.pop %v2543
  %v2545 = vmul.f32 %v2543, %v2544
  %v2546 = vsub.f32 1.0, %v2545
  %v2547 = vmul.f32 %v2544, %v2546
  %v2548 = vadd.f32 %v2544, %v2547
  %vm2549 = vweird.f32 %v2543
  %vm2550 = vweird.f32 %v2544
  %vm2551 = vmor %vm2549, %vm2550
  %v2552 = vsel %vm2551, %v2544, %v2548
  %v2553 = vand.u32 2147483647, %v2543
  %vm2554 = vcmp.eq.f32.partialorder %v2553, 8.507059e+37
  %v2555 = vand.u32 %v2543, 2147483648
  %v2556 = vor.u32 1.1754944e-38, %v2555
  %v2557 = vsel %vm2554, %v2556, %v2552
  %v2558 = vmul.f32 1.0, %v2557
  %v2559 = vxor.u32 %v2537, 2147483648
  %v2560 = vmul.f32 %v2559, 1.442695
  %v2561 = vpow.pop %v2560
  %v2562 = vadd.f32 %v2561, 1.0
  %v2563 = vrcp.pop %v2562
  %v2564 = vmul.f32 %v2562, %v2563
  %v2565 = vsub.f32 1.0, %v2564
  %v2566 = vmul.f32 %v2563, %v2565
  %v2567 = vadd.f32 %v2563, %v2566
  %vm2568 = vweird.f32 %v2562
  %vm2569 = vweird.f32 %v2563
  %vm2570 = vmor %vm2568, %vm2569
  %v2571 = vsel %vm2570, %v2563, %v2567
  %v2572 = vand.u32 2147483647, %v2562
  %vm2573 = vcmp.eq.f32.partialorder %v2572, 8.507059e+37
  %v2574 = vand.u32 %v2562, 2147483648
  %v2575 = vor.u32 1.1754944e-38, %v2574
  %v2576 = vsel %vm2573, %v2575, %v2571
  %v2577 = vmul.f32 1.0, %v2576
  %v2578 = vtanh.pop %v2538
  %v2579 = vxor.u32 %v2539, 2147483648
  %v2580 = vmul.f32 %v2579, 1.442695
  %v2581 = vpow.pop %v2580
  %v2582 = vadd.f32 %v2581, 1.0
  %v2583 = vrcp.pop %v2582
  %v2584 = vmul.f32 %v2582, %v2583
  %v2585 = vsub.f32 1.0, %v2584
  %v2586 = vmul.f32 %v2583, %v2585
  %v2587 = vadd.f32 %v2583, %v2586
  %vm2588 = vweird.f32 %v2582
  %vm2589 = vweird.f32 %v2583
  %vm2590 = vmor %vm2588, %vm2589
  %v2591 = vsel %vm2590, %v2583, %v2587
  %v2592 = vand.u32 2147483647, %v2582
  %vm2593 = vcmp.eq.f32.partialorder %v2592, 8.507059e+37
  %v2594 = vand.u32 %v2582, 2147483648
  %v2595 = vor.u32 1.1754944e-38, %v2594
  %v2596 = vsel %vm2593, %v2595, %v2591
  %v2597 = vmul.f32 1.0, %v2596
  %v2598 = vmul.f32 %v2577, %v2383
  %v2599 = vmul.f32 %v2558, %v2578
  %v2600 = vadd.f32 %v2598, %v2599
  %v2601 = vtanh.pop %v2600
  %v2602 = vmul.f32 %v2597, %v2601
  %2603 = vst [vmem:[%s607] sm:$0xff] %v2602
  %s2604 = scalar_lea.vmem [#allocation2], 64
  %v2605 = vld [vmem:[%s2604] sm:$0xff]
  %v2606 = vld [vmem:[%s2604 + $0x8] sm:$0xff]
  %v2607 = vld [vmem:[%s2604 + $0x10] sm:$0xff]
  %v2608 = vld [vmem:[%s2604 + $0x18] sm:$0xff]
  %v2609 = vld [vmem:[%s2174] sm:$0xff]
  %v2610 = vld [vmem:[%s2174 + $0x8] sm:$0xff]
  %v2611 = vld [vmem:[%s2174 + $0x10] sm:$0xff]
  %v2612 = vld [vmem:[%s2174 + $0x18] sm:$0xff]
  %v2613 = vld [vmem:[%s2174 + $0x20] sm:$0xff]
  %v2614 = vld [vmem:[%s2174 + $0x28] sm:$0xff]
  %v2615 = vld [vmem:[%s2174 + $0x30] sm:$0xff]
  %v2616 = vld [vmem:[%s2174 + $0x38] sm:$0xff]
  %v2617 = vld [vmem:[%s2174 + $0x40] sm:$0xff]
  %v2618 = vld [vmem:[%s2174 + $0x48] sm:$0xff]
  %v2619 = vld [vmem:[%s2174 + $0x50] sm:$0xff]
  %v2620 = vld [vmem:[%s2174 + $0x58] sm:$0xff]
  %v2621 = vld [vmem:[%s2174 + $0x60] sm:$0xff]
  %v2622 = vld [vmem:[%s2174 + $0x68] sm:$0xff]
  %v2623 = vld [vmem:[%s2174 + $0x70] sm:$0xff]
  %v2624 = vld [vmem:[%s2174 + $0x78] sm:$0xff]
  %v2625 = vld [vmem:[%s2174 + $0x80] sm:$0xff]
  %v2626 = vld [vmem:[%s2174 + $0x88] sm:$0xff]
  %v2627 = vld [vmem:[%s2174 + $0x90] sm:$0xff]
  %v2628 = vld [vmem:[%s2174 + $0x98] sm:$0xff]
  %v2629 = vld [vmem:[%s2174 + $0xa0] sm:$0xff]
  %v2630 = vld [vmem:[%s2174 + $0xa8] sm:$0xff]
  %v2631 = vld [vmem:[%s2174 + $0xb0] sm:$0xff]
  %v2632 = vld [vmem:[%s2174 + $0xb8] sm:$0xff]
  %v2633 = vld [vmem:[%s2174 + $0xc0] sm:$0xff]
  %v2634 = vld [vmem:[%s2174 + $0xc8] sm:$0xff]
  %v2635 = vld [vmem:[%s2174 + $0xd0] sm:$0xff]
  %v2636 = vld [vmem:[%s2174 + $0xd8] sm:$0xff]
  %v2637 = vld [vmem:[%s2174 + $0xe0] sm:$0xff]
  %v2638 = vld [vmem:[%s2174 + $0xe8] sm:$0xff]
  %v2639 = vld [vmem:[%s2174 + $0xf0] sm:$0xff]
  %v2640 = vld [vmem:[%s2174 + $0xf8] sm:$0xff]
  %v2641 = vld [vmem:[%s2174 + $0x100] sm:$0xff]
  %v2642 = vld [vmem:[%s2174 + $0x108] sm:$0xff]
  %v2643 = vld [vmem:[%s2174 + $0x110] sm:$0xff]
  %v2644 = vld [vmem:[%s2174 + $0x118] sm:$0xff]
  %v2645 = vld [vmem:[%s2174 + $0x120] sm:$0xff]
  %v2646 = vld [vmem:[%s2174 + $0x128] sm:$0xff]
  %v2647 = vld [vmem:[%s2174 + $0x130] sm:$0xff]
  %v2648 = vld [vmem:[%s2174 + $0x138] sm:$0xff]
  %v2649 = vld [vmem:[%s2174 + $0x140] sm:$0xff]
  %v2650 = vld [vmem:[%s2174 + $0x148] sm:$0xff]
  %v2651 = vld [vmem:[%s2174 + $0x150] sm:$0xff]
  %v2652 = vld [vmem:[%s2174 + $0x158] sm:$0xff]
  %v2653 = vld [vmem:[%s2174 + $0x160] sm:$0xff]
  %v2654 = vld [vmem:[%s2174 + $0x168] sm:$0xff]
  %v2655 = vld [vmem:[%s2174 + $0x170] sm:$0xff]
  %v2656 = vld [vmem:[%s2174 + $0x178] sm:$0xff]
  %v2657 = vld [vmem:[%s2174 + $0x180] sm:$0xff]
  %v2658 = vld [vmem:[%s2174 + $0x188] sm:$0xff]
  %v2659 = vld [vmem:[%s2174 + $0x190] sm:$0xff]
  %v2660 = vld [vmem:[%s2174 + $0x198] sm:$0xff]
  %v2661 = vld [vmem:[%s2174 + $0x1a0] sm:$0xff]
  %v2662 = vld [vmem:[%s2174 + $0x1a8] sm:$0xff]
  %v2663 = vld [vmem:[%s2174 + $0x1b0] sm:$0xff]
  %v2664 = vld [vmem:[%s2174 + $0x1b8] sm:$0xff]
  %v2665 = vld [vmem:[%s2174 + $0x1c0] sm:$0xff]
  %v2666 = vld [vmem:[%s2174 + $0x1c8] sm:$0xff]
  %v2667 = vld [vmem:[%s2174 + $0x1d0] sm:$0xff]
  %v2668 = vld [vmem:[%s2174 + $0x1d8] sm:$0xff]
  %v2669 = vld [vmem:[%s2174 + $0x1e0] sm:$0xff]
  %v2670 = vld [vmem:[%s2174 + $0x1e8] sm:$0xff]
  %v2671 = vld [vmem:[%s2174 + $0x1f0] sm:$0xff]
  %v2672 = vld [vmem:[%s2174 + $0x1f8] sm:$0xff]
  %2673 = vmatpush.msra.mxu0 %v2669
  %2674 = vmatpush.msra.mxu0 %v2665
  %2675 = vmatpush.msra.mxu0 %v2661
  %2676 = vmatpush.msra.mxu0 %v2657
  %2677 = vmatpush.msra.mxu0 %v2653
  %2678 = vmatpush.msra.mxu0 %v2649
  %2679 = vmatpush.msra.mxu0 %v2645
  %2680 = vmatpush.msra.mxu0 %v2641
  %2681 = vmatpush.msra.mxu0 %v2637
  %2682 = vmatpush.msra.mxu0 %v2633
  %2683 = vmatpush.msra.mxu0 %v2629
  %2684 = vmatpush.msra.mxu0 %v2625
  %2685 = vmatpush.msra.mxu0 %v2621
  %2686 = vmatpush.msra.mxu0 %v2617
  %2687 = vmatpush.msra.mxu0 %v2613
  %2688 = vmatpush.msra.mxu0 %v2609
  %2689 = vmatmul.f32.gmra.mxu0 %v2602
  %v2690 = vpop.f32.mrf.mxu0
  %v2691 = vadd.f32 0.0, %v2690
  %2692 = vdwg.mxu0
  %2693 = vmatpush.msra.mxu0 %v2670
  %2694 = vmatpush.msra.mxu0 %v2666
  %2695 = vmatpush.msra.mxu0 %v2662
  %2696 = vmatpush.msra.mxu0 %v2658
  %2697 = vmatpush.msra.mxu0 %v2654
  %2698 = vmatpush.msra.mxu0 %v2650
  %2699 = vmatpush.msra.mxu0 %v2646
  %2700 = vmatpush.msra.mxu0 %v2642
  %2701 = vmatpush.msra.mxu0 %v2638
  %2702 = vmatpush.msra.mxu0 %v2634
  %2703 = vmatpush.msra.mxu0 %v2630
  %2704 = vmatpush.msra.mxu0 %v2626
  %2705 = vmatpush.msra.mxu0 %v2622
  %2706 = vmatpush.msra.mxu0 %v2618
  %2707 = vmatpush.msra.mxu0 %v2614
  %2708 = vmatpush.msra.mxu0 %v2610
  %2709 = vmatmul.f32.gmra.mxu0 %v2602
  %v2710 = vpop.f32.mrf.mxu0
  %v2711 = vadd.f32 0.0, %v2710
  %2712 = vdwg.mxu0
  %2713 = vmatpush.msra.mxu0 %v2671
  %2714 = vmatpush.msra.mxu0 %v2667
  %2715 = vmatpush.msra.mxu0 %v2663
  %2716 = vmatpush.msra.mxu0 %v2659
  %2717 = vmatpush.msra.mxu0 %v2655
  %2718 = vmatpush.msra.mxu0 %v2651
  %2719 = vmatpush.msra.mxu0 %v2647
  %2720 = vmatpush.msra.mxu0 %v2643
  %2721 = vmatpush.msra.mxu0 %v2639
  %2722 = vmatpush.msra.mxu0 %v2635
  %2723 = vmatpush.msra.mxu0 %v2631
  %2724 = vmatpush.msra.mxu0 %v2627
  %2725 = vmatpush.msra.mxu0 %v2623
  %2726 = vmatpush.msra.mxu0 %v2619
  %2727 = vmatpush.msra.mxu0 %v2615
  %2728 = vmatpush.msra.mxu0 %v2611
  %2729 = vmatmul.f32.gmra.mxu0 %v2602
  %v2730 = vpop.f32.mrf.mxu0
  %v2731 = vadd.f32 0.0, %v2730
  %2732 = vdwg.mxu0
  %2733 = vmatpush.msra.mxu0 %v2672
  %2734 = vmatpush.msra.mxu0 %v2668
  %2735 = vmatpush.msra.mxu0 %v2664
  %2736 = vmatpush.msra.mxu0 %v2660
  %2737 = vmatpush.msra.mxu0 %v2656
  %2738 = vmatpush.msra.mxu0 %v2652
  %2739 = vmatpush.msra.mxu0 %v2648
  %2740 = vmatpush.msra.mxu0 %v2644
  %2741 = vmatpush.msra.mxu0 %v2640
  %2742 = vmatpush.msra.mxu0 %v2636
  %2743 = vmatpush.msra.mxu0 %v2632
  %2744 = vmatpush.msra.mxu0 %v2628
  %2745 = vmatpush.msra.mxu0 %v2624
  %2746 = vmatpush.msra.mxu0 %v2620
  %2747 = vmatpush.msra.mxu0 %v2616
  %2748 = vmatpush.msra.mxu0 %v2612
  %2749 = vmatmul.f32.gmra.mxu0 %v2602
  %v2750 = vpop.f32.mrf.mxu0
  %v2751 = vadd.f32 0.0, %v2750
  %2752 = vdwg.mxu0
  %v2753 = vadd.f32 %v2605, %v2691
  %v2754 = vadd.f32 %v2606, %v2711
  %v2755 = vadd.f32 %v2607, %v2731
  %v2756 = vadd.f32 %v2608, %v2751
  %v2757 = vxor.u32 %v2753, 2147483648
  %v2758 = vmul.f32 %v2757, 1.442695
  %v2759 = vpow.pop %v2758
  %v2760 = vadd.f32 %v2759, 1.0
  %v2761 = vrcp.pop %v2760
  %v2762 = vmul.f32 %v2760, %v2761
  %v2763 = vsub.f32 1.0, %v2762
  %v2764 = vmul.f32 %v2761, %v2763
  %v2765 = vadd.f32 %v2761, %v2764
  %vm2766 = vweird.f32 %v2760
  %vm2767 = vweird.f32 %v2761
  %vm2768 = vmor %vm2766, %vm2767
  %v2769 = vsel %vm2768, %v2761, %v2765
  %v2770 = vand.u32 2147483647, %v2760
  %vm2771 = vcmp.eq.f32.partialorder %v2770, 8.507059e+37
  %v2772 = vand.u32 %v2760, 2147483648
  %v2773 = vor.u32 1.1754944e-38, %v2772
  %v2774 = vsel %vm2771, %v2773, %v2769
  %v2775 = vmul.f32 1.0, %v2774
  %v2776 = vxor.u32 %v2754, 2147483648
  %v2777 = vmul.f32 %v2776, 1.442695
  %v2778 = vpow.pop %v2777
  %v2779 = vadd.f32 %v2778, 1.0
  %v2780 = vrcp.pop %v2779
  %v2781 = vmul.f32 %v2779, %v2780
  %v2782 = vsub.f32 1.0, %v2781
  %v2783 = vmul.f32 %v2780, %v2782
  %v2784 = vadd.f32 %v2780, %v2783
  %vm2785 = vweird.f32 %v2779
  %vm2786 = vweird.f32 %v2780
  %vm2787 = vmor %vm2785, %vm2786
  %v2788 = vsel %vm2787, %v2780, %v2784
  %v2789 = vand.u32 2147483647, %v2779
  %vm2790 = vcmp.eq.f32.partialorder %v2789, 8.507059e+37
  %v2791 = vand.u32 %v2779, 2147483648
  %v2792 = vor.u32 1.1754944e-38, %v2791
  %v2793 = vsel %vm2790, %v2792, %v2788
  %v2794 = vmul.f32 1.0, %v2793
  %v2795 = vtanh.pop %v2755
  %v2796 = vxor.u32 %v2756, 2147483648
  %v2797 = vmul.f32 %v2796, 1.442695
  %v2798 = vpow.pop %v2797
  %v2799 = vadd.f32 %v2798, 1.0
  %v2800 = vrcp.pop %v2799
  %v2801 = vmul.f32 %v2799, %v2800
  %v2802 = vsub.f32 1.0, %v2801
  %v2803 = vmul.f32 %v2800, %v2802
  %v2804 = vadd.f32 %v2800, %v2803
  %vm2805 = vweird.f32 %v2799
  %vm2806 = vweird.f32 %v2800
  %vm2807 = vmor %vm2805, %vm2806
  %v2808 = vsel %vm2807, %v2800, %v2804
  %v2809 = vand.u32 2147483647, %v2799
  %vm2810 = vcmp.eq.f32.partialorder %v2809, 8.507059e+37
  %v2811 = vand.u32 %v2799, 2147483648
  %v2812 = vor.u32 1.1754944e-38, %v2811
  %v2813 = vsel %vm2810, %v2812, %v2808
  %v2814 = vmul.f32 1.0, %v2813
  %v2815 = vmul.f32 %v2794, %v2600
  %v2816 = vmul.f32 %v2775, %v2795
  %v2817 = vadd.f32 %v2815, %v2816
  %v2818 = vtanh.pop %v2817
  %v2819 = vmul.f32 %v2814, %v2818
  %2820 = vst [vmem:[%s820] sm:$0xff] %v2819
  %s2821 = scalar_lea.vmem [#allocation2], 96
  %v2822 = vld [vmem:[%s2821] sm:$0xff]
  %v2823 = vld [vmem:[%s2821 + $0x8] sm:$0xff]
  %v2824 = vld [vmem:[%s2821 + $0x10] sm:$0xff]
  %v2825 = vld [vmem:[%s2821 + $0x18] sm:$0xff]
  %v2826 = vld [vmem:[%s2174] sm:$0xff]
  %v2827 = vld [vmem:[%s2174 + $0x8] sm:$0xff]
  %v2828 = vld [vmem:[%s2174 + $0x10] sm:$0xff]
  %v2829 = vld [vmem:[%s2174 + $0x18] sm:$0xff]
  %v2830 = vld [vmem:[%s2174 + $0x20] sm:$0xff]
  %v2831 = vld [vmem:[%s2174 + $0x28] sm:$0xff]
  %v2832 = vld [vmem:[%s2174 + $0x30] sm:$0xff]
  %v2833 = vld [vmem:[%s2174 + $0x38] sm:$0xff]
  %v2834 = vld [vmem:[%s2174 + $0x40] sm:$0xff]
  %v2835 = vld [vmem:[%s2174 + $0x48] sm:$0xff]
  %v2836 = vld [vmem:[%s2174 + $0x50] sm:$0xff]
  %v2837 = vld [vmem:[%s2174 + $0x58] sm:$0xff]
  %v2838 = vld [vmem:[%s2174 + $0x60] sm:$0xff]
  %v2839 = vld [vmem:[%s2174 + $0x68] sm:$0xff]
  %v2840 = vld [vmem:[%s2174 + $0x70] sm:$0xff]
  %v2841 = vld [vmem:[%s2174 + $0x78] sm:$0xff]
  %v2842 = vld [vmem:[%s2174 + $0x80] sm:$0xff]
  %v2843 = vld [vmem:[%s2174 + $0x88] sm:$0xff]
  %v2844 = vld [vmem:[%s2174 + $0x90] sm:$0xff]
  %v2845 = vld [vmem:[%s2174 + $0x98] sm:$0xff]
  %v2846 = vld [vmem:[%s2174 + $0xa0] sm:$0xff]
  %v2847 = vld [vmem:[%s2174 + $0xa8] sm:$0xff]
  %v2848 = vld [vmem:[%s2174 + $0xb0] sm:$0xff]
  %v2849 = vld [vmem:[%s2174 + $0xb8] sm:$0xff]
  %v2850 = vld [vmem:[%s2174 + $0xc0] sm:$0xff]
  %v2851 = vld [vmem:[%s2174 + $0xc8] sm:$0xff]
  %v2852 = vld [vmem:[%s2174 + $0xd0] sm:$0xff]
  %v2853 = vld [vmem:[%s2174 + $0xd8] sm:$0xff]
  %v2854 = vld [vmem:[%s2174 + $0xe0] sm:$0xff]
  %v2855 = vld [vmem:[%s2174 + $0xe8] sm:$0xff]
  %v2856 = vld [vmem:[%s2174 + $0xf0] sm:$0xff]
  %v2857 = vld [vmem:[%s2174 + $0xf8] sm:$0xff]
  %v2858 = vld [vmem:[%s2174 + $0x100] sm:$0xff]
  %v2859 = vld [vmem:[%s2174 + $0x108] sm:$0xff]
  %v2860 = vld [vmem:[%s2174 + $0x110] sm:$0xff]
  %v2861 = vld [vmem:[%s2174 + $0x118] sm:$0xff]
  %v2862 = vld [vmem:[%s2174 + $0x120] sm:$0xff]
  %v2863 = vld [vmem:[%s2174 + $0x128] sm:$0xff]
  %v2864 = vld [vmem:[%s2174 + $0x130] sm:$0xff]
  %v2865 = vld [vmem:[%s2174 + $0x138] sm:$0xff]
  %v2866 = vld [vmem:[%s2174 + $0x140] sm:$0xff]
  %v2867 = vld [vmem:[%s2174 + $0x148] sm:$0xff]
  %v2868 = vld [vmem:[%s2174 + $0x150] sm:$0xff]
  %v2869 = vld [vmem:[%s2174 + $0x158] sm:$0xff]
  %v2870 = vld [vmem:[%s2174 + $0x160] sm:$0xff]
  %v2871 = vld [vmem:[%s2174 + $0x168] sm:$0xff]
  %v2872 = vld [vmem:[%s2174 + $0x170] sm:$0xff]
  %v2873 = vld [vmem:[%s2174 + $0x178] sm:$0xff]
  %v2874 = vld [vmem:[%s2174 + $0x180] sm:$0xff]
  %v2875 = vld [vmem:[%s2174 + $0x188] sm:$0xff]
  %v2876 = vld [vmem:[%s2174 + $0x190] sm:$0xff]
  %v2877 = vld [vmem:[%s2174 + $0x198] sm:$0xff]
  %v2878 = vld [vmem:[%s2174 + $0x1a0] sm:$0xff]
  %v2879 = vld [vmem:[%s2174 + $0x1a8] sm:$0xff]
  %v2880 = vld [vmem:[%s2174 + $0x1b0] sm:$0xff]
  %v2881 = vld [vmem:[%s2174 + $0x1b8] sm:$0xff]
  %v2882 = vld [vmem:[%s2174 + $0x1c0] sm:$0xff]
  %v2883 = vld [vmem:[%s2174 + $0x1c8] sm:$0xff]
  %v2884 = vld [vmem:[%s2174 + $0x1d0] sm:$0xff]
  %v2885 = vld [vmem:[%s2174 + $0x1d8] sm:$0xff]
  %v2886 = vld [vmem:[%s2174 + $0x1e0] sm:$0xff]
  %v2887 = vld [vmem:[%s2174 + $0x1e8] sm:$0xff]
  %v2888 = vld [vmem:[%s2174 + $0x1f0] sm:$0xff]
  %v2889 = vld [vmem:[%s2174 + $0x1f8] sm:$0xff]
  %2890 = vmatpush.msra.mxu0 %v2886
  %2891 = vmatpush.msra.mxu0 %v2882
  %2892 = vmatpush.msra.mxu0 %v2878
  %2893 = vmatpush.msra.mxu0 %v2874
  %2894 = vmatpush.msra.mxu0 %v2870
  %2895 = vmatpush.msra.mxu0 %v2866
  %2896 = vmatpush.msra.mxu0 %v2862
  %2897 = vmatpush.msra.mxu0 %v2858
  %2898 = vmatpush.msra.mxu0 %v2854
  %2899 = vmatpush.msra.mxu0 %v2850
  %2900 = vmatpush.msra.mxu0 %v2846
  %2901 = vmatpush.msra.mxu0 %v2842
  %2902 = vmatpush.msra.mxu0 %v2838
  %2903 = vmatpush.msra.mxu0 %v2834
  %2904 = vmatpush.msra.mxu0 %v2830
  %2905 = vmatpush.msra.mxu0 %v2826
  %2906 = vmatmul.f32.gmra.mxu0 %v2819
  %v2907 = vpop.f32.mrf.mxu0
  %v2908 = vadd.f32 0.0, %v2907
  %2909 = vdwg.mxu0
  %2910 = vmatpush.msra.mxu0 %v2887
  %2911 = vmatpush.msra.mxu0 %v2883
  %2912 = vmatpush.msra.mxu0 %v2879
  %2913 = vmatpush.msra.mxu0 %v2875
  %2914 = vmatpush.msra.mxu0 %v2871
  %2915 = vmatpush.msra.mxu0 %v2867
  %2916 = vmatpush.msra.mxu0 %v2863
  %2917 = vmatpush.msra.mxu0 %v2859
  %2918 = vmatpush.msra.mxu0 %v2855
  %2919 = vmatpush.msra.mxu0 %v2851
  %2920 = vmatpush.msra.mxu0 %v2847
  %2921 = vmatpush.msra.mxu0 %v2843
  %2922 = vmatpush.msra.mxu0 %v2839
  %2923 = vmatpush.msra.mxu0 %v2835
  %2924 = vmatpush.msra.mxu0 %v2831
  %2925 = vmatpush.msra.mxu0 %v2827
  %2926 = vmatmul.f32.gmra.mxu0 %v2819
  %v2927 = vpop.f32.mrf.mxu0
  %v2928 = vadd.f32 0.0, %v2927
  %2929 = vdwg.mxu0
  %2930 = vmatpush.msra.mxu0 %v2888
  %2931 = vmatpush.msra.mxu0 %v2884
  %2932 = vmatpush.msra.mxu0 %v2880
  %2933 = vmatpush.msra.mxu0 %v2876
  %2934 = vmatpush.msra.mxu0 %v2872
  %2935 = vmatpush.msra.mxu0 %v2868
  %2936 = vmatpush.msra.mxu0 %v2864
  %2937 = vmatpush.msra.mxu0 %v2860
  %2938 = vmatpush.msra.mxu0 %v2856
  %2939 = vmatpush.msra.mxu0 %v2852
  %2940 = vmatpush.msra.mxu0 %v2848
  %2941 = vmatpush.msra.mxu0 %v2844
  %2942 = vmatpush.msra.mxu0 %v2840
  %2943 = vmatpush.msra.mxu0 %v2836
  %2944 = vmatpush.msra.mxu0 %v2832
  %2945 = vmatpush.msra.mxu0 %v2828
  %2946 = vmatmul.f32.gmra.mxu0 %v2819
  %v2947 = vpop.f32.mrf.mxu0
  %v2948 = vadd.f32 0.0, %v2947
  %2949 = vdwg.mxu0
  %2950 = vmatpush.msra.mxu0 %v2889
  %2951 = vmatpush.msra.mxu0 %v2885
  %2952 = vmatpush.msra.mxu0 %v2881
  %2953 = vmatpush.msra.mxu0 %v2877
  %2954 = vmatpush.msra.mxu0 %v2873
  %2955 = vmatpush.msra.mxu0 %v2869
  %2956 = vmatpush.msra.mxu0 %v2865
  %2957 = vmatpush.msra.mxu0 %v2861
  %2958 = vmatpush.msra.mxu0 %v2857
  %2959 = vmatpush.msra.mxu0 %v2853
  %2960 = vmatpush.msra.mxu0 %v2849
  %2961 = vmatpush.msra.mxu0 %v2845
  %2962 = vmatpush.msra.mxu0 %v2841
  %2963 = vmatpush.msra.mxu0 %v2837
  %2964 = vmatpush.msra.mxu0 %v2833
  %2965 = vmatpush.msra.mxu0 %v2829
  %2966 = vmatmul.f32.gmra.mxu0 %v2819
  %v2967 = vpop.f32.mrf.mxu0
  %v2968 = vadd.f32 0.0, %v2967
  %2969 = vdwg.mxu0
  %v2970 = vadd.f32 %v2822, %v2908
  %v2971 = vadd.f32 %v2823, %v2928
  %v2972 = vadd.f32 %v2824, %v2948
  %v2973 = vadd.f32 %v2825, %v2968
  %v2974 = vxor.u32 %v2970, 2147483648
  %v2975 = vmul.f32 %v2974, 1.442695
  %v2976 = vpow.pop %v2975
  %v2977 = vadd.f32 %v2976, 1.0
  %v2978 = vrcp.pop %v2977
  %v2979 = vmul.f32 %v2977, %v2978
  %v2980 = vsub.f32 1.0, %v2979
  %v2981 = vmul.f32 %v2978, %v2980
  %v2982 = vadd.f32 %v2978, %v2981
  %vm2983 = vweird.f32 %v2977
  %vm2984 = vweird.f32 %v2978
  %vm2985 = vmor %vm2983, %vm2984
  %v2986 = vsel %vm2985, %v2978, %v2982
  %v2987 = vand.u32 2147483647, %v2977
  %vm2988 = vcmp.eq.f32.partialorder %v2987, 8.507059e+37
  %v2989 = vand.u32 %v2977, 2147483648
  %v2990 = vor.u32 1.1754944e-38, %v2989
  %v2991 = vsel %vm2988, %v2990, %v2986
  %v2992 = vmul.f32 1.0, %v2991
  %v2993 = vxor.u32 %v2971, 2147483648
  %v2994 = vmul.f32 %v2993, 1.442695
  %v2995 = vpow.pop %v2994
  %v2996 = vadd.f32 %v2995, 1.0
  %v2997 = vrcp.pop %v2996
  %v2998 = vmul.f32 %v2996, %v2997
  %v2999 = vsub.f32 1.0, %v2998
  %v3000 = vmul.f32 %v2997, %v2999
  %v3001 = vadd.f32 %v2997, %v3000
  %vm3002 = vweird.f32 %v2996
  %vm3003 = vweird.f32 %v2997
  %vm3004 = vmor %vm3002, %vm3003
  %v3005 = vsel %vm3004, %v2997, %v3001
  %v3006 = vand.u32 2147483647, %v2996
  %vm3007 = vcmp.eq.f32.partialorder %v3006, 8.507059e+37
  %v3008 = vand.u32 %v2996, 2147483648
  %v3009 = vor.u32 1.1754944e-38, %v3008
  %v3010 = vsel %vm3007, %v3009, %v3005
  %v3011 = vmul.f32 1.0, %v3010
  %v3012 = vtanh.pop %v2972
  %v3013 = vxor.u32 %v2973, 2147483648
  %v3014 = vmul.f32 %v3013, 1.442695
  %v3015 = vpow.pop %v3014
  %v3016 = vadd.f32 %v3015, 1.0
  %v3017 = vrcp.pop %v3016
  %v3018 = vmul.f32 %v3016, %v3017
  %v3019 = vsub.f32 1.0, %v3018
  %v3020 = vmul.f32 %v3017, %v3019
  %v3021 = vadd.f32 %v3017, %v3020
  %vm3022 = vweird.f32 %v3016
  %vm3023 = vweird.f32 %v3017
  %vm3024 = vmor %vm3022, %vm3023
  %v3025 = vsel %vm3024, %v3017, %v3021
  %v3026 = vand.u32 2147483647, %v3016
  %vm3027 = vcmp.eq.f32.partialorder %v3026, 8.507059e+37
  %v3028 = vand.u32 %v3016, 2147483648
  %v3029 = vor.u32 1.1754944e-38, %v3028
  %v3030 = vsel %vm3027, %v3029, %v3025
  %v3031 = vmul.f32 1.0, %v3030
  %v3032 = vmul.f32 %v3011, %v2817
  %v3033 = vmul.f32 %v2992, %v3012
  %v3034 = vadd.f32 %v3032, %v3033
  %v3035 = vtanh.pop %v3034
  %v3036 = vmul.f32 %v3031, %v3035
  %3037 = vst [vmem:[%s1033] sm:$0xff] %v3036
  %s3038 = scalar_lea.vmem [#allocation2], 128
  %v3039 = vld [vmem:[%s3038] sm:$0xff]
  %v3040 = vld [vmem:[%s3038 + $0x8] sm:$0xff]
  %v3041 = vld [vmem:[%s3038 + $0x10] sm:$0xff]
  %v3042 = vld [vmem:[%s3038 + $0x18] sm:$0xff]
  %v3043 = vld [vmem:[%s2174] sm:$0xff]
  %v3044 = vld [vmem:[%s2174 + $0x8] sm:$0xff]
  %v3045 = vld [vmem:[%s2174 + $0x10] sm:$0xff]
  %v3046 = vld [vmem:[%s2174 + $0x18] sm:$0xff]
  %v3047 = vld [vmem:[%s2174 + $0x20] sm:$0xff]
  %v3048 = vld [vmem:[%s2174 + $0x28] sm:$0xff]
  %v3049 = vld [vmem:[%s2174 + $0x30] sm:$0xff]
  %v3050 = vld [vmem:[%s2174 + $0x38] sm:$0xff]
  %v3051 = vld [vmem:[%s2174 + $0x40] sm:$0xff]
  %v3052 = vld [vmem:[%s2174 + $0x48] sm:$0xff]
  %v3053 = vld [vmem:[%s2174 + $0x50] sm:$0xff]
  %v3054 = vld [vmem:[%s2174 + $0x58] sm:$0xff]
  %v3055 = vld [vmem:[%s2174 + $0x60] sm:$0xff]
  %v3056 = vld [vmem:[%s2174 + $0x68] sm:$0xff]
  %v3057 = vld [vmem:[%s2174 + $0x70] sm:$0xff]
  %v3058 = vld [vmem:[%s2174 + $0x78] sm:$0xff]
  %v3059 = vld [vmem:[%s2174 + $0x80] sm:$0xff]
  %v3060 = vld [vmem:[%s2174 + $0x88] sm:$0xff]
  %v3061 = vld [vmem:[%s2174 + $0x90] sm:$0xff]
  %v3062 = vld [vmem:[%s2174 + $0x98] sm:$0xff]
  %v3063 = vld [vmem:[%s2174 + $0xa0] sm:$0xff]
  %v3064 = vld [vmem:[%s2174 + $0xa8] sm:$0xff]
  %v3065 = vld [vmem:[%s2174 + $0xb0] sm:$0xff]
  %v3066 = vld [vmem:[%s2174 + $0xb8] sm:$0xff]
  %v3067 = vld [vmem:[%s2174 + $0xc0] sm:$0xff]
  %v3068 = vld [vmem:[%s2174 + $0xc8] sm:$0xff]
  %v3069 = vld [vmem:[%s2174 + $0xd0] sm:$0xff]
  %v3070 = vld [vmem:[%s2174 + $0xd8] sm:$0xff]
  %v3071 = vld [vmem:[%s2174 + $0xe0] sm:$0xff]
  %v3072 = vld [vmem:[%s2174 + $0xe8] sm:$0xff]
  %v3073 = vld [vmem:[%s2174 + $0xf0] sm:$0xff]
  %v3074 = vld [vmem:[%s2174 + $0xf8] sm:$0xff]
  %v3075 = vld [vmem:[%s2174 + $0x100] sm:$0xff]
  %v3076 = vld [vmem:[%s2174 + $0x108] sm:$0xff]
  %v3077 = vld [vmem:[%s2174 + $0x110] sm:$0xff]
  %v3078 = vld [vmem:[%s2174 + $0x118] sm:$0xff]
  %v3079 = vld [vmem:[%s2174 + $0x120] sm:$0xff]
  %v3080 = vld [vmem:[%s2174 + $0x128] sm:$0xff]
  %v3081 = vld [vmem:[%s2174 + $0x130] sm:$0xff]
  %v3082 = vld [vmem:[%s2174 + $0x138] sm:$0xff]
  %v3083 = vld [vmem:[%s2174 + $0x140] sm:$0xff]
  %v3084 = vld [vmem:[%s2174 + $0x148] sm:$0xff]
  %v3085 = vld [vmem:[%s2174 + $0x150] sm:$0xff]
  %v3086 = vld [vmem:[%s2174 + $0x158] sm:$0xff]
  %v3087 = vld [vmem:[%s2174 + $0x160] sm:$0xff]
  %v3088 = vld [vmem:[%s2174 + $0x168] sm:$0xff]
  %v3089 = vld [vmem:[%s2174 + $0x170] sm:$0xff]
  %v3090 = vld [vmem:[%s2174 + $0x178] sm:$0xff]
  %v3091 = vld [vmem:[%s2174 + $0x180] sm:$0xff]
  %v3092 = vld [vmem:[%s2174 + $0x188] sm:$0xff]
  %v3093 = vld [vmem:[%s2174 + $0x190] sm:$0xff]
  %v3094 = vld [vmem:[%s2174 + $0x198] sm:$0xff]
  %v3095 = vld [vmem:[%s2174 + $0x1a0] sm:$0xff]
  %v3096 = vld [vmem:[%s2174 + $0x1a8] sm:$0xff]
  %v3097 = vld [vmem:[%s2174 + $0x1b0] sm:$0xff]
  %v3098 = vld [vmem:[%s2174 + $0x1b8] sm:$0xff]
  %v3099 = vld [vmem:[%s2174 + $0x1c0] sm:$0xff]
  %v3100 = vld [vmem:[%s2174 + $0x1c8] sm:$0xff]
  %v3101 = vld [vmem:[%s2174 + $0x1d0] sm:$0xff]
  %v3102 = vld [vmem:[%s2174 + $0x1d8] sm:$0xff]
  %v3103 = vld [vmem:[%s2174 + $0x1e0] sm:$0xff]
  %v3104 = vld [vmem:[%s2174 + $0x1e8] sm:$0xff]
  %v3105 = vld [vmem:[%s2174 + $0x1f0] sm:$0xff]
  %v3106 = vld [vmem:[%s2174 + $0x1f8] sm:$0xff]
  %3107 = vmatpush.msra.mxu0 %v3103
  %3108 = vmatpush.msra.mxu0 %v3099
  %3109 = vmatpush.msra.mxu0 %v3095
  %3110 = vmatpush.msra.mxu0 %v3091
  %3111 = vmatpush.msra.mxu0 %v3087
  %3112 = vmatpush.msra.mxu0 %v3083
  %3113 = vmatpush.msra.mxu0 %v3079
  %3114 = vmatpush.msra.mxu0 %v3075
  %3115 = vmatpush.msra.mxu0 %v3071
  %3116 = vmatpush.msra.mxu0 %v3067
  %3117 = vmatpush.msra.mxu0 %v3063
  %3118 = vmatpush.msra.mxu0 %v3059
  %3119 = vmatpush.msra.mxu0 %v3055
  %3120 = vmatpush.msra.mxu0 %v3051
  %3121 = vmatpush.msra.mxu0 %v3047
  %3122 = vmatpush.msra.mxu0 %v3043
  %3123 = vmatmul.f32.gmra.mxu0 %v3036
  %v3124 = vpop.f32.mrf.mxu0
  %v3125 = vadd.f32 0.0, %v3124
  %3126 = vdwg.mxu0
  %3127 = vmatpush.msra.mxu0 %v3104
  %3128 = vmatpush.msra.mxu0 %v3100
  %3129 = vmatpush.msra.mxu0 %v3096
  %3130 = vmatpush.msra.mxu0 %v3092
  %3131 = vmatpush.msra.mxu0 %v3088
  %3132 = vmatpush.msra.mxu0 %v3084
  %3133 = vmatpush.msra.mxu0 %v3080
  %3134 = vmatpush.msra.mxu0 %v3076
  %3135 = vmatpush.msra.mxu0 %v3072
  %3136 = vmatpush.msra.mxu0 %v3068
  %3137 = vmatpush.msra.mxu0 %v3064
  %3138 = vmatpush.msra.mxu0 %v3060
  %3139 = vmatpush.msra.mxu0 %v3056
  %3140 = vmatpush.msra.mxu0 %v3052
  %3141 = vmatpush.msra.mxu0 %v3048
  %3142 = vmatpush.msra.mxu0 %v3044
  %3143 = vmatmul.f32.gmra.mxu0 %v3036
  %v3144 = vpop.f32.mrf.mxu0
  %v3145 = vadd.f32 0.0, %v3144
  %3146 = vdwg.mxu0
  %3147 = vmatpush.msra.mxu0 %v3105
  %3148 = vmatpush.msra.mxu0 %v3101
  %3149 = vmatpush.msra.mxu0 %v3097
  %3150 = vmatpush.msra.mxu0 %v3093
  %3151 = vmatpush.msra.mxu0 %v3089
  %3152 = vmatpush.msra.mxu0 %v3085
  %3153 = vmatpush.msra.mxu0 %v3081
  %3154 = vmatpush.msra.mxu0 %v3077
  %3155 = vmatpush.msra.mxu0 %v3073
  %3156 = vmatpush.msra.mxu0 %v3069
  %3157 = vmatpush.msra.mxu0 %v3065
  %3158 = vmatpush.msra.mxu0 %v3061
  %3159 = vmatpush.msra.mxu0 %v3057
  %3160 = vmatpush.msra.mxu0 %v3053
  %3161 = vmatpush.msra.mxu0 %v3049
  %3162 = vmatpush.msra.mxu0 %v3045
  %3163 = vmatmul.f32.gmra.mxu0 %v3036
  %v3164 = vpop.f32.mrf.mxu0
  %v3165 = vadd.f32 0.0, %v3164
  %3166 = vdwg.mxu0
  %3167 = vmatpush.msra.mxu0 %v3106
  %3168 = vmatpush.msra.mxu0 %v3102
  %3169 = vmatpush.msra.mxu0 %v3098
  %3170 = vmatpush.msra.mxu0 %v3094
  %3171 = vmatpush.msra.mxu0 %v3090
  %3172 = vmatpush.msra.mxu0 %v3086
  %3173 = vmatpush.msra.mxu0 %v3082
  %3174 = vmatpush.msra.mxu0 %v3078
  %3175 = vmatpush.msra.mxu0 %v3074
  %3176 = vmatpush.msra.mxu0 %v3070
  %3177 = vmatpush.msra.mxu0 %v3066
  %3178 = vmatpush.msra.mxu0 %v3062
  %3179 = vmatpush.msra.mxu0 %v3058
  %3180 = vmatpush.msra.mxu0 %v3054
  %3181 = vmatpush.msra.mxu0 %v3050
  %3182 = vmatpush.msra.mxu0 %v3046
  %3183 = vmatmul.f32.gmra.mxu0 %v3036
  %v3184 = vpop.f32.mrf.mxu0
  %v3185 = vadd.f32 0.0, %v3184
  %3186 = vdwg.mxu0
  %v3187 = vadd.f32 %v3039, %v3125
  %v3188 = vadd.f32 %v3040, %v3145
  %v3189 = vadd.f32 %v3041, %v3165
  %v3190 = vadd.f32 %v3042, %v3185
  %v3191 = vxor.u32 %v3187, 2147483648
  %v3192 = vmul.f32 %v3191, 1.442695
  %v3193 = vpow.pop %v3192
  %v3194 = vadd.f32 %v3193, 1.0
  %v3195 = vrcp.pop %v3194
  %v3196 = vmul.f32 %v3194, %v3195
  %v3197 = vsub.f32 1.0, %v3196
  %v3198 = vmul.f32 %v3195, %v3197
  %v3199 = vadd.f32 %v3195, %v3198
  %vm3200 = vweird.f32 %v3194
  %vm3201 = vweird.f32 %v3195
  %vm3202 = vmor %vm3200, %vm3201
  %v3203 = vsel %vm3202, %v3195, %v3199
  %v3204 = vand.u32 2147483647, %v3194
  %vm3205 = vcmp.eq.f32.partialorder %v3204, 8.507059e+37
  %v3206 = vand.u32 %v3194, 2147483648
  %v3207 = vor.u32 1.1754944e-38, %v3206
  %v3208 = vsel %vm3205, %v3207, %v3203
  %v3209 = vmul.f32 1.0, %v3208
  %v3210 = vxor.u32 %v3188, 2147483648
  %v3211 = vmul.f32 %v3210, 1.442695
  %v3212 = vpow.pop %v3211
  %v3213 = vadd.f32 %v3212, 1.0
  %v3214 = vrcp.pop %v3213
  %v3215 = vmul.f32 %v3213, %v3214
  %v3216 = vsub.f32 1.0, %v3215
  %v3217 = vmul.f32 %v3214, %v3216
  %v3218 = vadd.f32 %v3214, %v3217
  %vm3219 = vweird.f32 %v3213
  %vm3220 = vweird.f32 %v3214
  %vm3221 = vmor %vm3219, %vm3220
  %v3222 = vsel %vm3221, %v3214, %v3218
  %v3223 = vand.u32 2147483647, %v3213
  %vm3224 = vcmp.eq.f32.partialorder %v3223, 8.507059e+37
  %v3225 = vand.u32 %v3213, 2147483648
  %v3226 = vor.u32 1.1754944e-38, %v3225
  %v3227 = vsel %vm3224, %v3226, %v3222
  %v3228 = vmul.f32 1.0, %v3227
  %v3229 = vtanh.pop %v3189
  %v3230 = vxor.u32 %v3190, 2147483648
  %v3231 = vmul.f32 %v3230, 1.442695
  %v3232 = vpow.pop %v3231
  %v3233 = vadd.f32 %v3232, 1.0
  %v3234 = vrcp.pop %v3233
  %v3235 = vmul.f32 %v3233, %v3234
  %v3236 = vsub.f32 1.0, %v3235
  %v3237 = vmul.f32 %v3234, %v3236
  %v3238 = vadd.f32 %v3234, %v3237
  %vm3239 = vweird.f32 %v3233
  %vm3240 = vweird.f32 %v3234
  %vm3241 = vmor %vm3239, %vm3240
  %v3242 = vsel %vm3241, %v3234, %v3238
  %v3243 = vand.u32 2147483647, %v3233
  %vm3244 = vcmp.eq.f32.partialorder %v3243, 8.507059e+37
  %v3245 = vand.u32 %v3233, 2147483648
  %v3246 = vor.u32 1.1754944e-38, %v3245
  %v3247 = vsel %vm3244, %v3246, %v3242
  %v3248 = vmul.f32 1.0, %v3247
  %v3249 = vmul.f32 %v3228, %v3034
  %v3250 = vmul.f32 %v3209, %v3229
  %v3251 = vadd.f32 %v3249, %v3250
  %v3252 = vtanh.pop %v3251
  %v3253 = vmul.f32 %v3248, %v3252
  %3254 = vst [vmem:[%s1246] sm:$0xff] %v3253
  %s3255 = scalar_lea.vmem [#allocation2], 160
  %v3256 = vld [vmem:[%s3255] sm:$0xff]
  %v3257 = vld [vmem:[%s3255 + $0x8] sm:$0xff]
  %v3258 = vld [vmem:[%s3255 + $0x10] sm:$0xff]
  %v3259 = vld [vmem:[%s3255 + $0x18] sm:$0xff]
  %v3260 = vld [vmem:[%s2174] sm:$0xff]
  %v3261 = vld [vmem:[%s2174 + $0x8] sm:$0xff]
  %v3262 = vld [vmem:[%s2174 + $0x10] sm:$0xff]
  %v3263 = vld [vmem:[%s2174 + $0x18] sm:$0xff]
  %v3264 = vld [vmem:[%s2174 + $0x20] sm:$0xff]
  %v3265 = vld [vmem:[%s2174 + $0x28] sm:$0xff]
  %v3266 = vld [vmem:[%s2174 + $0x30] sm:$0xff]
  %v3267 = vld [vmem:[%s2174 + $0x38] sm:$0xff]
  %v3268 = vld [vmem:[%s2174 + $0x40] sm:$0xff]
  %v3269 = vld [vmem:[%s2174 + $0x48] sm:$0xff]
  %v3270 = vld [vmem:[%s2174 + $0x50] sm:$0xff]
  %v3271 = vld [vmem:[%s2174 + $0x58] sm:$0xff]
  %v3272 = vld [vmem:[%s2174 + $0x60] sm:$0xff]
  %v3273 = vld [vmem:[%s2174 + $0x68] sm:$0xff]
  %v3274 = vld [vmem:[%s2174 + $0x70] sm:$0xff]
  %v3275 = vld [vmem:[%s2174 + $0x78] sm:$0xff]
  %v3276 = vld [vmem:[%s2174 + $0x80] sm:$0xff]
  %v3277 = vld [vmem:[%s2174 + $0x88] sm:$0xff]
  %v3278 = vld [vmem:[%s2174 + $0x90] sm:$0xff]
  %v3279 = vld [vmem:[%s2174 + $0x98] sm:$0xff]
  %v3280 = vld [vmem:[%s2174 + $0xa0] sm:$0xff]
  %v3281 = vld [vmem:[%s2174 + $0xa8] sm:$0xff]
  %v3282 = vld [vmem:[%s2174 + $0xb0] sm:$0xff]
  %v3283 = vld [vmem:[%s2174 + $0xb8] sm:$0xff]
  %v3284 = vld [vmem:[%s2174 + $0xc0] sm:$0xff]
  %v3285 = vld [vmem:[%s2174 + $0xc8] sm:$0xff]
  %v3286 = vld [vmem:[%s2174 + $0xd0] sm:$0xff]
  %v3287 = vld [vmem:[%s2174 + $0xd8] sm:$0xff]
  %v3288 = vld [vmem:[%s2174 + $0xe0] sm:$0xff]
  %v3289 = vld [vmem:[%s2174 + $0xe8] sm:$0xff]
  %v3290 = vld [vmem:[%s2174 + $0xf0] sm:$0xff]
  %v3291 = vld [vmem:[%s2174 + $0xf8] sm:$0xff]
  %v3292 = vld [vmem:[%s2174 + $0x100] sm:$0xff]
  %v3293 = vld [vmem:[%s2174 + $0x108] sm:$0xff]
  %v3294 = vld [vmem:[%s2174 + $0x110] sm:$0xff]
  %v3295 = vld [vmem:[%s2174 + $0x118] sm:$0xff]
  %v3296 = vld [vmem:[%s2174 + $0x120] sm:$0xff]
  %v3297 = vld [vmem:[%s2174 + $0x128] sm:$0xff]
  %v3298 = vld [vmem:[%s2174 + $0x130] sm:$0xff]
  %v3299 = vld [vmem:[%s2174 + $0x138] sm:$0xff]
  %v3300 = vld [vmem:[%s2174 + $0x140] sm:$0xff]
  %v3301 = vld [vmem:[%s2174 + $0x148] sm:$0xff]
  %v3302 = vld [vmem:[%s2174 + $0x150] sm:$0xff]
  %v3303 = vld [vmem:[%s2174 + $0x158] sm:$0xff]
  %v3304 = vld [vmem:[%s2174 + $0x160] sm:$0xff]
  %v3305 = vld [vmem:[%s2174 + $0x168] sm:$0xff]
  %v3306 = vld [vmem:[%s2174 + $0x170] sm:$0xff]
  %v3307 = vld [vmem:[%s2174 + $0x178] sm:$0xff]
  %v3308 = vld [vmem:[%s2174 + $0x180] sm:$0xff]
  %v3309 = vld [vmem:[%s2174 + $0x188] sm:$0xff]
  %v3310 = vld [vmem:[%s2174 + $0x190] sm:$0xff]
  %v3311 = vld [vmem:[%s2174 + $0x198] sm:$0xff]
  %v3312 = vld [vmem:[%s2174 + $0x1a0] sm:$0xff]
  %v3313 = vld [vmem:[%s2174 + $0x1a8] sm:$0xff]
  %v3314 = vld [vmem:[%s2174 + $0x1b0] sm:$0xff]
  %v3315 = vld [vmem:[%s2174 + $0x1b8] sm:$0xff]
  %v3316 = vld [vmem:[%s2174 + $0x1c0] sm:$0xff]
  %v3317 = vld [vmem:[%s2174 + $0x1c8] sm:$0xff]
  %v3318 = vld [vmem:[%s2174 + $0x1d0] sm:$0xff]
  %v3319 = vld [vmem:[%s2174 + $0x1d8] sm:$0xff]
  %v3320 = vld [vmem:[%s2174 + $0x1e0] sm:$0xff]
  %v3321 = vld [vmem:[%s2174 + $0x1e8] sm:$0xff]
  %v3322 = vld [vmem:[%s2174 + $0x1f0] sm:$0xff]
  %v3323 = vld [vmem:[%s2174 + $0x1f8] sm:$0xff]
  %3324 = vmatpush.msra.mxu0 %v3320
  %3325 = vmatpush.msra.mxu0 %v3316
  %3326 = vmatpush.msra.mxu0 %v3312
  %3327 = vmatpush.msra.mxu0 %v3308
  %3328 = vmatpush.msra.mxu0 %v3304
  %3329 = vmatpush.msra.mxu0 %v3300
  %3330 = vmatpush.msra.mxu0 %v3296
  %3331 = vmatpush.msra.mxu0 %v3292
  %3332 = vmatpush.msra.mxu0 %v3288
  %3333 = vmatpush.msra.mxu0 %v3284
  %3334 = vmatpush.msra.mxu0 %v3280
  %3335 = vmatpush.msra.mxu0 %v3276
  %3336 = vmatpush.msra.mxu0 %v3272
  %3337 = vmatpush.msra.mxu0 %v3268
  %3338 = vmatpush.msra.mxu0 %v3264
  %3339 = vmatpush.msra.mxu0 %v3260
  %3340 = vmatmul.f32.gmra.mxu0 %v3253
  %v3341 = vpop.f32.mrf.mxu0
  %v3342 = vadd.f32 0.0, %v3341
  %3343 = vdwg.mxu0
  %3344 = vmatpush.msra.mxu0 %v3321
  %3345 = vmatpush.msra.mxu0 %v3317
  %3346 = vmatpush.msra.mxu0 %v3313
  %3347 = vmatpush.msra.mxu0 %v3309
  %3348 = vmatpush.msra.mxu0 %v3305
  %3349 = vmatpush.msra.mxu0 %v3301
  %3350 = vmatpush.msra.mxu0 %v3297
  %3351 = vmatpush.msra.mxu0 %v3293
  %3352 = vmatpush.msra.mxu0 %v3289
  %3353 = vmatpush.msra.mxu0 %v3285
  %3354 = vmatpush.msra.mxu0 %v3281
  %3355 = vmatpush.msra.mxu0 %v3277
  %3356 = vmatpush.msra.mxu0 %v3273
  %3357 = vmatpush.msra.mxu0 %v3269
  %3358 = vmatpush.msra.mxu0 %v3265
  %3359 = vmatpush.msra.mxu0 %v3261
  %3360 = vmatmul.f32.gmra.mxu0 %v3253
  %v3361 = vpop.f32.mrf.mxu0
  %v3362 = vadd.f32 0.0, %v3361
  %3363 = vdwg.mxu0
  %3364 = vmatpush.msra.mxu0 %v3322
  %3365 = vmatpush.msra.mxu0 %v3318
  %3366 = vmatpush.msra.mxu0 %v3314
  %3367 = vmatpush.msra.mxu0 %v3310
  %3368 = vmatpush.msra.mxu0 %v3306
  %3369 = vmatpush.msra.mxu0 %v3302
  %3370 = vmatpush.msra.mxu0 %v3298
  %3371 = vmatpush.msra.mxu0 %v3294
  %3372 = vmatpush.msra.mxu0 %v3290
  %3373 = vmatpush.msra.mxu0 %v3286
  %3374 = vmatpush.msra.mxu0 %v3282
  %3375 = vmatpush.msra.mxu0 %v3278
  %3376 = vmatpush.msra.mxu0 %v3274
  %3377 = vmatpush.msra.mxu0 %v3270
  %3378 = vmatpush.msra.mxu0 %v3266
  %3379 = vmatpush.msra.mxu0 %v3262
  %3380 = vmatmul.f32.gmra.mxu0 %v3253
  %v3381 = vpop.f32.mrf.mxu0
  %v3382 = vadd.f32 0.0, %v3381
  %3383 = vdwg.mxu0
  %3384 = vmatpush.msra.mxu0 %v3323
  %3385 = vmatpush.msra.mxu0 %v3319
  %3386 = vmatpush.msra.mxu0 %v3315
  %3387 = vmatpush.msra.mxu0 %v3311
  %3388 = vmatpush.msra.mxu0 %v3307
  %3389 = vmatpush.msra.mxu0 %v3303
  %3390 = vmatpush.msra.mxu0 %v3299
  %3391 = vmatpush.msra.mxu0 %v3295
  %3392 = vmatpush.msra.mxu0 %v3291
  %3393 = vmatpush.msra.mxu0 %v3287
  %3394 = vmatpush.msra.mxu0 %v3283
  %3395 = vmatpush.msra.mxu0 %v3279
  %3396 = vmatpush.msra.mxu0 %v3275
  %3397 = vmatpush.msra.mxu0 %v3271
  %3398 = vmatpush.msra.mxu0 %v3267
  %3399 = vmatpush.msra.mxu0 %v3263
  %3400 = vmatmul.f32.gmra.mxu0 %v3253
  %v3401 = vpop.f32.mrf.mxu0
  %v3402 = vadd.f32 0.0, %v3401
  %3403 = vdwg.mxu0
  %v3404 = vadd.f32 %v3256, %v3342
  %v3405 = vadd.f32 %v3257, %v3362
  %v3406 = vadd.f32 %v3258, %v3382
  %v3407 = vadd.f32 %v3259, %v3402
  %v3408 = vxor.u32 %v3404, 2147483648
  %v3409 = vmul.f32 %v3408, 1.442695
  %v3410 = vpow.pop %v3409
  %v3411 = vadd.f32 %v3410, 1.0
  %v3412 = vrcp.pop %v3411
  %v3413 = vmul.f32 %v3411, %v3412
  %v3414 = vsub.f32 1.0, %v3413
  %v3415 = vmul.f32 %v3412, %v3414
  %v3416 = vadd.f32 %v3412, %v3415
  %vm3417 = vweird.f32 %v3411
  %vm3418 = vweird.f32 %v3412
  %vm3419 = vmor %vm3417, %vm3418
  %v3420 = vsel %vm3419, %v3412, %v3416
  %v3421 = vand.u32 2147483647, %v3411
  %vm3422 = vcmp.eq.f32.partialorder %v3421, 8.507059e+37
  %v3423 = vand.u32 %v3411, 2147483648
  %v3424 = vor.u32 1.1754944e-38, %v3423
  %v3425 = vsel %vm3422, %v3424, %v3420
  %v3426 = vmul.f32 1.0, %v3425
  %v3427 = vxor.u32 %v3405, 2147483648
  %v3428 = vmul.f32 %v3427, 1.442695
  %v3429 = vpow.pop %v3428
  %v3430 = vadd.f32 %v3429, 1.0
  %v3431 = vrcp.pop %v3430
  %v3432 = vmul.f32 %v3430, %v3431
  %v3433 = vsub.f32 1.0, %v3432
  %v3434 = vmul.f32 %v3431, %v3433
  %v3435 = vadd.f32 %v3431, %v3434
  %vm3436 = vweird.f32 %v3430
  %vm3437 = vweird.f32 %v3431
  %vm3438 = vmor %vm3436, %vm3437
  %v3439 = vsel %vm3438, %v3431, %v3435
  %v3440 = vand.u32 2147483647, %v3430
  %vm3441 = vcmp.eq.f32.partialorder %v3440, 8.507059e+37
  %v3442 = vand.u32 %v3430, 2147483648
  %v3443 = vor.u32 1.1754944e-38, %v3442
  %v3444 = vsel %vm3441, %v3443, %v3439
  %v3445 = vmul.f32 1.0, %v3444
  %v3446 = vtanh.pop %v3406
  %v3447 = vxor.u32 %v3407, 2147483648
  %v3448 = vmul.f32 %v3447, 1.442695
  %v3449 = vpow.pop %v3448
  %v3450 = vadd.f32 %v3449, 1.0
  %v3451 = vrcp.pop %v3450
  %v3452 = vmul.f32 %v3450, %v3451
  %v3453 = vsub.f32 1.0, %v3452
  %v3454 = vmul.f32 %v3451, %v3453
  %v3455 = vadd.f32 %v3451, %v3454
  %vm3456 = vweird.f32 %v3450
  %vm3457 = vweird.f32 %v3451
  %vm3458 = vmor %vm3456, %vm3457
  %v3459 = vsel %vm3458, %v3451, %v3455
  %v3460 = vand.u32 2147483647, %v3450
  %vm3461 = vcmp.eq.f32.partialorder %v3460, 8.507059e+37
  %v3462 = vand.u32 %v3450, 2147483648
  %v3463 = vor.u32 1.1754944e-38, %v3462
  %v3464 = vsel %vm3461, %v3463, %v3459
  %v3465 = vmul.f32 1.0, %v3464
  %v3466 = vmul.f32 %v3445, %v3251
  %v3467 = vmul.f32 %v3426, %v3446
  %v3468 = vadd.f32 %v3466, %v3467
  %v3469 = vtanh.pop %v3468
  %v3470 = vmul.f32 %v3465, %v3469
  %3471 = vst [vmem:[%s1459] sm:$0xff] %v3470
  %s3472 = scalar_lea.vmem [#allocation2], 192
  %v3473 = vld [vmem:[%s3472] sm:$0xff]
  %v3474 = vld [vmem:[%s3472 + $0x8] sm:$0xff]
  %v3475 = vld [vmem:[%s3472 + $0x10] sm:$0xff]
  %v3476 = vld [vmem:[%s3472 + $0x18] sm:$0xff]
  %v3477 = vld [vmem:[%s2174] sm:$0xff]
  %v3478 = vld [vmem:[%s2174 + $0x8] sm:$0xff]
  %v3479 = vld [vmem:[%s2174 + $0x10] sm:$0xff]
  %v3480 = vld [vmem:[%s2174 + $0x18] sm:$0xff]
  %v3481 = vld [vmem:[%s2174 + $0x20] sm:$0xff]
  %v3482 = vld [vmem:[%s2174 + $0x28] sm:$0xff]
  %v3483 = vld [vmem:[%s2174 + $0x30] sm:$0xff]
  %v3484 = vld [vmem:[%s2174 + $0x38] sm:$0xff]
  %v3485 = vld [vmem:[%s2174 + $0x40] sm:$0xff]
  %v3486 = vld [vmem:[%s2174 + $0x48] sm:$0xff]
  %v3487 = vld [vmem:[%s2174 + $0x50] sm:$0xff]
  %v3488 = vld [vmem:[%s2174 + $0x58] sm:$0xff]
  %v3489 = vld [vmem:[%s2174 + $0x60] sm:$0xff]
  %v3490 = vld [vmem:[%s2174 + $0x68] sm:$0xff]
  %v3491 = vld [vmem:[%s2174 + $0x70] sm:$0xff]
  %v3492 = vld [vmem:[%s2174 + $0x78] sm:$0xff]
  %v3493 = vld [vmem:[%s2174 + $0x80] sm:$0xff]
  %v3494 = vld [vmem:[%s2174 + $0x88] sm:$0xff]
  %v3495 = vld [vmem:[%s2174 + $0x90] sm:$0xff]
  %v3496 = vld [vmem:[%s2174 + $0x98] sm:$0xff]
  %v3497 = vld [vmem:[%s2174 + $0xa0] sm:$0xff]
  %v3498 = vld [vmem:[%s2174 + $0xa8] sm:$0xff]
  %v3499 = vld [vmem:[%s2174 + $0xb0] sm:$0xff]
  %v3500 = vld [vmem:[%s2174 + $0xb8] sm:$0xff]
  %v3501 = vld [vmem:[%s2174 + $0xc0] sm:$0xff]
  %v3502 = vld [vmem:[%s2174 + $0xc8] sm:$0xff]
  %v3503 = vld [vmem:[%s2174 + $0xd0] sm:$0xff]
  %v3504 = vld [vmem:[%s2174 + $0xd8] sm:$0xff]
  %v3505 = vld [vmem:[%s2174 + $0xe0] sm:$0xff]
  %v3506 = vld [vmem:[%s2174 + $0xe8] sm:$0xff]
  %v3507 = vld [vmem:[%s2174 + $0xf0] sm:$0xff]
  %v3508 = vld [vmem:[%s2174 + $0xf8] sm:$0xff]
  %v3509 = vld [vmem:[%s2174 + $0x100] sm:$0xff]
  %v3510 = vld [vmem:[%s2174 + $0x108] sm:$0xff]
  %v3511 = vld [vmem:[%s2174 + $0x110] sm:$0xff]
  %v3512 = vld [vmem:[%s2174 + $0x118] sm:$0xff]
  %v3513 = vld [vmem:[%s2174 + $0x120] sm:$0xff]
  %v3514 = vld [vmem:[%s2174 + $0x128] sm:$0xff]
  %v3515 = vld [vmem:[%s2174 + $0x130] sm:$0xff]
  %v3516 = vld [vmem:[%s2174 + $0x138] sm:$0xff]
  %v3517 = vld [vmem:[%s2174 + $0x140] sm:$0xff]
  %v3518 = vld [vmem:[%s2174 + $0x148] sm:$0xff]
  %v3519 = vld [vmem:[%s2174 + $0x150] sm:$0xff]
  %v3520 = vld [vmem:[%s2174 + $0x158] sm:$0xff]
  %v3521 = vld [vmem:[%s2174 + $0x160] sm:$0xff]
  %v3522 = vld [vmem:[%s2174 + $0x168] sm:$0xff]
  %v3523 = vld [vmem:[%s2174 + $0x170] sm:$0xff]
  %v3524 = vld [vmem:[%s2174 + $0x178] sm:$0xff]
  %v3525 = vld [vmem:[%s2174 + $0x180] sm:$0xff]
  %v3526 = vld [vmem:[%s2174 + $0x188] sm:$0xff]
  %v3527 = vld [vmem:[%s2174 + $0x190] sm:$0xff]
  %v3528 = vld [vmem:[%s2174 + $0x198] sm:$0xff]
  %v3529 = vld [vmem:[%s2174 + $0x1a0] sm:$0xff]
  %v3530 = vld [vmem:[%s2174 + $0x1a8] sm:$0xff]
  %v3531 = vld [vmem:[%s2174 + $0x1b0] sm:$0xff]
  %v3532 = vld [vmem:[%s2174 + $0x1b8] sm:$0xff]
  %v3533 = vld [vmem:[%s2174 + $0x1c0] sm:$0xff]
  %v3534 = vld [vmem:[%s2174 + $0x1c8] sm:$0xff]
  %v3535 = vld [vmem:[%s2174 + $0x1d0] sm:$0xff]
  %v3536 = vld [vmem:[%s2174 + $0x1d8] sm:$0xff]
  %v3537 = vld [vmem:[%s2174 + $0x1e0] sm:$0xff]
  %v3538 = vld [vmem:[%s2174 + $0x1e8] sm:$0xff]
  %v3539 = vld [vmem:[%s2174 + $0x1f0] sm:$0xff]
  %v3540 = vld [vmem:[%s2174 + $0x1f8] sm:$0xff]
  %3541 = vmatpush.msra.mxu0 %v3537
  %3542 = vmatpush.msra.mxu0 %v3533
  %3543 = vmatpush.msra.mxu0 %v3529
  %3544 = vmatpush.msra.mxu0 %v3525
  %3545 = vmatpush.msra.mxu0 %v3521
  %3546 = vmatpush.msra.mxu0 %v3517
  %3547 = vmatpush.msra.mxu0 %v3513
  %3548 = vmatpush.msra.mxu0 %v3509
  %3549 = vmatpush.msra.mxu0 %v3505
  %3550 = vmatpush.msra.mxu0 %v3501
  %3551 = vmatpush.msra.mxu0 %v3497
  %3552 = vmatpush.msra.mxu0 %v3493
  %3553 = vmatpush.msra.mxu0 %v3489
  %3554 = vmatpush.msra.mxu0 %v3485
  %3555 = vmatpush.msra.mxu0 %v3481
  %3556 = vmatpush.msra.mxu0 %v3477
  %3557 = vmatmul.f32.gmra.mxu0 %v3470
  %v3558 = vpop.f32.mrf.mxu0
  %v3559 = vadd.f32 0.0, %v3558
  %3560 = vdwg.mxu0
  %3561 = vmatpush.msra.mxu0 %v3538
  %3562 = vmatpush.msra.mxu0 %v3534
  %3563 = vmatpush.msra.mxu0 %v3530
  %3564 = vmatpush.msra.mxu0 %v3526
  %3565 = vmatpush.msra.mxu0 %v3522
  %3566 = vmatpush.msra.mxu0 %v3518
  %3567 = vmatpush.msra.mxu0 %v3514
  %3568 = vmatpush.msra.mxu0 %v3510
  %3569 = vmatpush.msra.mxu0 %v3506
  %3570 = vmatpush.msra.mxu0 %v3502
  %3571 = vmatpush.msra.mxu0 %v3498
  %3572 = vmatpush.msra.mxu0 %v3494
  %3573 = vmatpush.msra.mxu0 %v3490
  %3574 = vmatpush.msra.mxu0 %v3486
  %3575 = vmatpush.msra.mxu0 %v3482
  %3576 = vmatpush.msra.mxu0 %v3478
  %3577 = vmatmul.f32.gmra.mxu0 %v3470
  %v3578 = vpop.f32.mrf.mxu0
  %v3579 = vadd.f32 0.0, %v3578
  %3580 = vdwg.mxu0
  %3581 = vmatpush.msra.mxu0 %v3539
  %3582 = vmatpush.msra.mxu0 %v3535
  %3583 = vmatpush.msra.mxu0 %v3531
  %3584 = vmatpush.msra.mxu0 %v3527
  %3585 = vmatpush.msra.mxu0 %v3523
  %3586 = vmatpush.msra.mxu0 %v3519
  %3587 = vmatpush.msra.mxu0 %v3515
  %3588 = vmatpush.msra.mxu0 %v3511
  %3589 = vmatpush.msra.mxu0 %v3507
  %3590 = vmatpush.msra.mxu0 %v3503
  %3591 = vmatpush.msra.mxu0 %v3499
  %3592 = vmatpush.msra.mxu0 %v3495
  %3593 = vmatpush.msra.mxu0 %v3491
  %3594 = vmatpush.msra.mxu0 %v3487
  %3595 = vmatpush.msra.mxu0 %v3483
  %3596 = vmatpush.msra.mxu0 %v3479
  %3597 = vmatmul.f32.gmra.mxu0 %v3470
  %v3598 = vpop.f32.mrf.mxu0
  %v3599 = vadd.f32 0.0, %v3598
  %3600 = vdwg.mxu0
  %3601 = vmatpush.msra.mxu0 %v3540
  %3602 = vmatpush.msra.mxu0 %v3536
  %3603 = vmatpush.msra.mxu0 %v3532
  %3604 = vmatpush.msra.mxu0 %v3528
  %3605 = vmatpush.msra.mxu0 %v3524
  %3606 = vmatpush.msra.mxu0 %v3520
  %3607 = vmatpush.msra.mxu0 %v3516
  %3608 = vmatpush.msra.mxu0 %v3512
  %3609 = vmatpush.msra.mxu0 %v3508
  %3610 = vmatpush.msra.mxu0 %v3504
  %3611 = vmatpush.msra.mxu0 %v3500
  %3612 = vmatpush.msra.mxu0 %v3496
  %3613 = vmatpush.msra.mxu0 %v3492
  %3614 = vmatpush.msra.mxu0 %v3488
  %3615 = vmatpush.msra.mxu0 %v3484
  %3616 = vmatpush.msra.mxu0 %v3480
  %3617 = vmatmul.f32.gmra.mxu0 %v3470
  %v3618 = vpop.f32.mrf.mxu0
  %v3619 = vadd.f32 0.0, %v3618
  %3620 = vdwg.mxu0
  %v3621 = vadd.f32 %v3473, %v3559
  %v3622 = vadd.f32 %v3474, %v3579
  %v3623 = vadd.f32 %v3475, %v3599
  %v3624 = vadd.f32 %v3476, %v3619
  %v3625 = vxor.u32 %v3621, 2147483648
  %v3626 = vmul.f32 %v3625, 1.442695
  %v3627 = vpow.pop %v3626
  %v3628 = vadd.f32 %v3627, 1.0
  %v3629 = vrcp.pop %v3628
  %v3630 = vmul.f32 %v3628, %v3629
  %v3631 = vsub.f32 1.0, %v3630
  %v3632 = vmul.f32 %v3629, %v3631
  %v3633 = vadd.f32 %v3629, %v3632
  %vm3634 = vweird.f32 %v3628
  %vm3635 = vweird.f32 %v3629
  %vm3636 = vmor %vm3634, %vm3635
  %v3637 = vsel %vm3636, %v3629, %v3633
  %v3638 = vand.u32 2147483647, %v3628
  %vm3639 = vcmp.eq.f32.partialorder %v3638, 8.507059e+37
  %v3640 = vand.u32 %v3628, 2147483648
  %v3641 = vor.u32 1.1754944e-38, %v3640
  %v3642 = vsel %vm3639, %v3641, %v3637
  %v3643 = vmul.f32 1.0, %v3642
  %v3644 = vxor.u32 %v3622, 2147483648
  %v3645 = vmul.f32 %v3644, 1.442695
  %v3646 = vpow.pop %v3645
  %v3647 = vadd.f32 %v3646, 1.0
  %v3648 = vrcp.pop %v3647
  %v3649 = vmul.f32 %v3647, %v3648
  %v3650 = vsub.f32 1.0, %v3649
  %v3651 = vmul.f32 %v3648, %v3650
  %v3652 = vadd.f32 %v3648, %v3651
  %vm3653 = vweird.f32 %v3647
  %vm3654 = vweird.f32 %v3648
  %vm3655 = vmor %vm3653, %vm3654
  %v3656 = vsel %vm3655, %v3648, %v3652
  %v3657 = vand.u32 2147483647, %v3647
  %vm3658 = vcmp.eq.f32.partialorder %v3657, 8.507059e+37
  %v3659 = vand.u32 %v3647, 2147483648
  %v3660 = vor.u32 1.1754944e-38, %v3659
  %v3661 = vsel %vm3658, %v3660, %v3656
  %v3662 = vmul.f32 1.0, %v3661
  %v3663 = vtanh.pop %v3623
  %v3664 = vxor.u32 %v3624, 2147483648
  %v3665 = vmul.f32 %v3664, 1.442695
  %v3666 = vpow.pop %v3665
  %v3667 = vadd.f32 %v3666, 1.0
  %v3668 = vrcp.pop %v3667
  %v3669 = vmul.f32 %v3667, %v3668
  %v3670 = vsub.f32 1.0, %v3669
  %v3671 = vmul.f32 %v3668, %v3670
  %v3672 = vadd.f32 %v3668, %v3671
  %vm3673 = vweird.f32 %v3667
  %vm3674 = vweird.f32 %v3668
  %vm3675 = vmor %vm3673, %vm3674
  %v3676 = vsel %vm3675, %v3668, %v3672
  %v3677 = vand.u32 2147483647, %v3667
  %vm3678 = vcmp.eq.f32.partialorder %v3677, 8.507059e+37
  %v3679 = vand.u32 %v3667, 2147483648
  %v3680 = vor.u32 1.1754944e-38, %v3679
  %v3681 = vsel %vm3678, %v3680, %v3676
  %v3682 = vmul.f32 1.0, %v3681
  %v3683 = vmul.f32 %v3662, %v3468
  %v3684 = vmul.f32 %v3643, %v3663
  %v3685 = vadd.f32 %v3683, %v3684
  %v3686 = vtanh.pop %v3685
  %v3687 = vmul.f32 %v3682, %v3686
  %3688 = vst [vmem:[%s1672] sm:$0xff] %v3687
  %s3689 = scalar_lea.vmem [#allocation2], 224
  %v3690 = vld [vmem:[%s3689] sm:$0xff]
  %v3691 = vld [vmem:[%s3689 + $0x8] sm:$0xff]
  %v3692 = vld [vmem:[%s3689 + $0x10] sm:$0xff]
  %v3693 = vld [vmem:[%s3689 + $0x18] sm:$0xff]
  %v3694 = vld [vmem:[%s2174] sm:$0xff]
  %v3695 = vld [vmem:[%s2174 + $0x8] sm:$0xff]
  %v3696 = vld [vmem:[%s2174 + $0x10] sm:$0xff]
  %v3697 = vld [vmem:[%s2174 + $0x18] sm:$0xff]
  %v3698 = vld [vmem:[%s2174 + $0x20] sm:$0xff]
  %v3699 = vld [vmem:[%s2174 + $0x28] sm:$0xff]
  %v3700 = vld [vmem:[%s2174 + $0x30] sm:$0xff]
  %v3701 = vld [vmem:[%s2174 + $0x38] sm:$0xff]
  %v3702 = vld [vmem:[%s2174 + $0x40] sm:$0xff]
  %v3703 = vld [vmem:[%s2174 + $0x48] sm:$0xff]
  %v3704 = vld [vmem:[%s2174 + $0x50] sm:$0xff]
  %v3705 = vld [vmem:[%s2174 + $0x58] sm:$0xff]
  %v3706 = vld [vmem:[%s2174 + $0x60] sm:$0xff]
  %v3707 = vld [vmem:[%s2174 + $0x68] sm:$0xff]
  %v3708 = vld [vmem:[%s2174 + $0x70] sm:$0xff]
  %v3709 = vld [vmem:[%s2174 + $0x78] sm:$0xff]
  %v3710 = vld [vmem:[%s2174 + $0x80] sm:$0xff]
  %v3711 = vld [vmem:[%s2174 + $0x88] sm:$0xff]
  %v3712 = vld [vmem:[%s2174 + $0x90] sm:$0xff]
  %v3713 = vld [vmem:[%s2174 + $0x98] sm:$0xff]
  %v3714 = vld [vmem:[%s2174 + $0xa0] sm:$0xff]
  %v3715 = vld [vmem:[%s2174 + $0xa8] sm:$0xff]
  %v3716 = vld [vmem:[%s2174 + $0xb0] sm:$0xff]
  %v3717 = vld [vmem:[%s2174 + $0xb8] sm:$0xff]
  %v3718 = vld [vmem:[%s2174 + $0xc0] sm:$0xff]
  %v3719 = vld [vmem:[%s2174 + $0xc8] sm:$0xff]
  %v3720 = vld [vmem:[%s2174 + $0xd0] sm:$0xff]
  %v3721 = vld [vmem:[%s2174 + $0xd8] sm:$0xff]
  %v3722 = vld [vmem:[%s2174 + $0xe0] sm:$0xff]
  %v3723 = vld [vmem:[%s2174 + $0xe8] sm:$0xff]
  %v3724 = vld [vmem:[%s2174 + $0xf0] sm:$0xff]
  %v3725 = vld [vmem:[%s2174 + $0xf8] sm:$0xff]
  %v3726 = vld [vmem:[%s2174 + $0x100] sm:$0xff]
  %v3727 = vld [vmem:[%s2174 + $0x108] sm:$0xff]
  %v3728 = vld [vmem:[%s2174 + $0x110] sm:$0xff]
  %v3729 = vld [vmem:[%s2174 + $0x118] sm:$0xff]
  %v3730 = vld [vmem:[%s2174 + $0x120] sm:$0xff]
  %v3731 = vld [vmem:[%s2174 + $0x128] sm:$0xff]
  %v3732 = vld [vmem:[%s2174 + $0x130] sm:$0xff]
  %v3733 = vld [vmem:[%s2174 + $0x138] sm:$0xff]
  %v3734 = vld [vmem:[%s2174 + $0x140] sm:$0xff]
  %v3735 = vld [vmem:[%s2174 + $0x148] sm:$0xff]
  %v3736 = vld [vmem:[%s2174 + $0x150] sm:$0xff]
  %v3737 = vld [vmem:[%s2174 + $0x158] sm:$0xff]
  %v3738 = vld [vmem:[%s2174 + $0x160] sm:$0xff]
  %v3739 = vld [vmem:[%s2174 + $0x168] sm:$0xff]
  %v3740 = vld [vmem:[%s2174 + $0x170] sm:$0xff]
  %v3741 = vld [vmem:[%s2174 + $0x178] sm:$0xff]
  %v3742 = vld [vmem:[%s2174 + $0x180] sm:$0xff]
  %v3743 = vld [vmem:[%s2174 + $0x188] sm:$0xff]
  %v3744 = vld [vmem:[%s2174 + $0x190] sm:$0xff]
  %v3745 = vld [vmem:[%s2174 + $0x198] sm:$0xff]
  %v3746 = vld [vmem:[%s2174 + $0x1a0] sm:$0xff]
  %v3747 = vld [vmem:[%s2174 + $0x1a8] sm:$0xff]
  %v3748 = vld [vmem:[%s2174 + $0x1b0] sm:$0xff]
  %v3749 = vld [vmem:[%s2174 + $0x1b8] sm:$0xff]
  %v3750 = vld [vmem:[%s2174 + $0x1c0] sm:$0xff]
  %v3751 = vld [vmem:[%s2174 + $0x1c8] sm:$0xff]
  %v3752 = vld [vmem:[%s2174 + $0x1d0] sm:$0xff]
  %v3753 = vld [vmem:[%s2174 + $0x1d8] sm:$0xff]
  %v3754 = vld [vmem:[%s2174 + $0x1e0] sm:$0xff]
  %v3755 = vld [vmem:[%s2174 + $0x1e8] sm:$0xff]
  %v3756 = vld [vmem:[%s2174 + $0x1f0] sm:$0xff]
  %v3757 = vld [vmem:[%s2174 + $0x1f8] sm:$0xff]
  %3758 = vmatpush.msra.mxu0 %v3754
  %3759 = vmatpush.msra.mxu0 %v3750
  %3760 = vmatpush.msra.mxu0 %v3746
  %3761 = vmatpush.msra.mxu0 %v3742
  %3762 = vmatpush.msra.mxu0 %v3738
  %3763 = vmatpush.msra.mxu0 %v3734
  %3764 = vmatpush.msra.mxu0 %v3730
  %3765 = vmatpush.msra.mxu0 %v3726
  %3766 = vmatpush.msra.mxu0 %v3722
  %3767 = vmatpush.msra.mxu0 %v3718
  %3768 = vmatpush.msra.mxu0 %v3714
  %3769 = vmatpush.msra.mxu0 %v3710
  %3770 = vmatpush.msra.mxu0 %v3706
  %3771 = vmatpush.msra.mxu0 %v3702
  %3772 = vmatpush.msra.mxu0 %v3698
  %3773 = vmatpush.msra.mxu0 %v3694
  %3774 = vmatmul.f32.gmra.mxu0 %v3687
  %v3775 = vpop.f32.mrf.mxu0
  %v3776 = vadd.f32 0.0, %v3775
  %3777 = vdwg.mxu0
  %3778 = vmatpush.msra.mxu0 %v3755
  %3779 = vmatpush.msra.mxu0 %v3751
  %3780 = vmatpush.msra.mxu0 %v3747
  %3781 = vmatpush.msra.mxu0 %v3743
  %3782 = vmatpush.msra.mxu0 %v3739
  %3783 = vmatpush.msra.mxu0 %v3735
  %3784 = vmatpush.msra.mxu0 %v3731
  %3785 = vmatpush.msra.mxu0 %v3727
  %3786 = vmatpush.msra.mxu0 %v3723
  %3787 = vmatpush.msra.mxu0 %v3719
  %3788 = vmatpush.msra.mxu0 %v3715
  %3789 = vmatpush.msra.mxu0 %v3711
  %3790 = vmatpush.msra.mxu0 %v3707
  %3791 = vmatpush.msra.mxu0 %v3703
  %3792 = vmatpush.msra.mxu0 %v3699
  %3793 = vmatpush.msra.mxu0 %v3695
  %3794 = vmatmul.f32.gmra.mxu0 %v3687
  %v3795 = vpop.f32.mrf.mxu0
  %v3796 = vadd.f32 0.0, %v3795
  %3797 = vdwg.mxu0
  %3798 = vmatpush.msra.mxu0 %v3756
  %3799 = vmatpush.msra.mxu0 %v3752
  %3800 = vmatpush.msra.mxu0 %v3748
  %3801 = vmatpush.msra.mxu0 %v3744
  %3802 = vmatpush.msra.mxu0 %v3740
  %3803 = vmatpush.msra.mxu0 %v3736
  %3804 = vmatpush.msra.mxu0 %v3732
  %3805 = vmatpush.msra.mxu0 %v3728
  %3806 = vmatpush.msra.mxu0 %v3724
  %3807 = vmatpush.msra.mxu0 %v3720
  %3808 = vmatpush.msra.mxu0 %v3716
  %3809 = vmatpush.msra.mxu0 %v3712
  %3810 = vmatpush.msra.mxu0 %v3708
  %3811 = vmatpush.msra.mxu0 %v3704
  %3812 = vmatpush.msra.mxu0 %v3700
  %3813 = vmatpush.msra.mxu0 %v3696
  %3814 = vmatmul.f32.gmra.mxu0 %v3687
  %v3815 = vpop.f32.mrf.mxu0
  %v3816 = vadd.f32 0.0, %v3815
  %3817 = vdwg.mxu0
  %3818 = vmatpush.msra.mxu0 %v3757
  %3819 = vmatpush.msra.mxu0 %v3753
  %3820 = vmatpush.msra.mxu0 %v3749
  %3821 = vmatpush.msra.mxu0 %v3745
  %3822 = vmatpush.msra.mxu0 %v3741
  %3823 = vmatpush.msra.mxu0 %v3737
  %3824 = vmatpush.msra.mxu0 %v3733
  %3825 = vmatpush.msra.mxu0 %v3729
  %3826 = vmatpush.msra.mxu0 %v3725
  %3827 = vmatpush.msra.mxu0 %v3721
  %3828 = vmatpush.msra.mxu0 %v3717
  %3829 = vmatpush.msra.mxu0 %v3713
  %3830 = vmatpush.msra.mxu0 %v3709
  %3831 = vmatpush.msra.mxu0 %v3705
  %3832 = vmatpush.msra.mxu0 %v3701
  %3833 = vmatpush.msra.mxu0 %v3697
  %3834 = vmatmul.f32.gmra.mxu0 %v3687
  %v3835 = vpop.f32.mrf.mxu0
  %v3836 = vadd.f32 0.0, %v3835
  %3837 = vdwg.mxu0
  %v3838 = vadd.f32 %v3690, %v3776
  %v3839 = vadd.f32 %v3691, %v3796
  %v3840 = vadd.f32 %v3692, %v3816
  %v3841 = vadd.f32 %v3693, %v3836
  %v3842 = vxor.u32 %v3838, 2147483648
  %v3843 = vmul.f32 %v3842, 1.442695
  %v3844 = vpow.pop %v3843
  %v3845 = vadd.f32 %v3844, 1.0
  %v3846 = vrcp.pop %v3845
  %v3847 = vmul.f32 %v3845, %v3846
  %v3848 = vsub.f32 1.0, %v3847
  %v3849 = vmul.f32 %v3846, %v3848
  %v3850 = vadd.f32 %v3846, %v3849
  %vm3851 = vweird.f32 %v3845
  %vm3852 = vweird.f32 %v3846
  %vm3853 = vmor %vm3851, %vm3852
  %v3854 = vsel %vm3853, %v3846, %v3850
  %v3855 = vand.u32 2147483647, %v3845
  %vm3856 = vcmp.eq.f32.partialorder %v3855, 8.507059e+37
  %v3857 = vand.u32 %v3845, 2147483648
  %v3858 = vor.u32 1.1754944e-38, %v3857
  %v3859 = vsel %vm3856, %v3858, %v3854
  %v3860 = vmul.f32 1.0, %v3859
  %v3861 = vxor.u32 %v3839, 2147483648
  %v3862 = vmul.f32 %v3861, 1.442695
  %v3863 = vpow.pop %v3862
  %v3864 = vadd.f32 %v3863, 1.0
  %v3865 = vrcp.pop %v3864
  %v3866 = vmul.f32 %v3864, %v3865
  %v3867 = vsub.f32 1.0, %v3866
  %v3868 = vmul.f32 %v3865, %v3867
  %v3869 = vadd.f32 %v3865, %v3868
  %vm3870 = vweird.f32 %v3864
  %vm3871 = vweird.f32 %v3865
  %vm3872 = vmor %vm3870, %vm3871
  %v3873 = vsel %vm3872, %v3865, %v3869
  %v3874 = vand.u32 2147483647, %v3864
  %vm3875 = vcmp.eq.f32.partialorder %v3874, 8.507059e+37
  %v3876 = vand.u32 %v3864, 2147483648
  %v3877 = vor.u32 1.1754944e-38, %v3876
  %v3878 = vsel %vm3875, %v3877, %v3873
  %v3879 = vmul.f32 1.0, %v3878
  %v3880 = vtanh.pop %v3840
  %v3881 = vxor.u32 %v3841, 2147483648
  %v3882 = vmul.f32 %v3881, 1.442695
  %v3883 = vpow.pop %v3882
  %v3884 = vadd.f32 %v3883, 1.0
  %v3885 = vrcp.pop %v3884
  %v3886 = vmul.f32 %v3884, %v3885
  %v3887 = vsub.f32 1.0, %v3886
  %v3888 = vmul.f32 %v3885, %v3887
  %v3889 = vadd.f32 %v3885, %v3888
  %vm3890 = vweird.f32 %v3884
  %vm3891 = vweird.f32 %v3885
  %vm3892 = vmor %vm3890, %vm3891
  %v3893 = vsel %vm3892, %v3885, %v3889
  %v3894 = vand.u32 2147483647, %v3884
  %vm3895 = vcmp.eq.f32.partialorder %v3894, 8.507059e+37
  %v3896 = vand.u32 %v3884, 2147483648
  %v3897 = vor.u32 1.1754944e-38, %v3896
  %v3898 = vsel %vm3895, %v3897, %v3893
  %v3899 = vmul.f32 1.0, %v3898
  %v3900 = vmul.f32 %v3879, %v3685
  %v3901 = vmul.f32 %v3860, %v3880
  %v3902 = vadd.f32 %v3900, %v3901
  %v3903 = vtanh.pop %v3902
  %v3904 = vmul.f32 %v3899, %v3903
  %3905 = vst [vmem:[%s1885] sm:$0xff] %v3904
  // Predicated region
  $region26: #{lstm_decoder.1} parent=0 // pred_check
    _
  $region27: #{lstm_decoder.1} parent=0 // pred_check_branch
    %3907 = sbr.rel (0) target = $region29
  $region28: #{lstm_decoder.1} parent=0 // pred_region
    _
  $region29: #{lstm_decoder.1} parent=0 // pred_fallthru
    _
  // Predicated region
  $region30: #{lstm_decoder.1} parent=0 // pred_check
    _
  $region31: #{lstm_decoder.1} parent=0 // pred_check_branch
    %3909 = sbr.rel (0) target = $region33
  $region32: #{lstm_decoder.1} parent=0 // pred_region
    _
  $region33: #{lstm_decoder.1} parent=0 // pred_fallthru
    _

</llo_original>
